<compile_context>
chip_gen: v7x
topology: tpu7x:2x2x1
jax: 0.10.0
libtpu: 0.0.40
codegen_flags: <defaults>
</compile_context>

<pallas_src>
import jax
import jax.numpy as jnp
from jax import lax
from jax.experimental import pallas as pl
from jax.experimental.pallas import tpu as pltpu


def discriminator_kernel(
    y_emb_ref,                           # (T, TB, Ep)  f32
    ctx_ref,                             # (TB, F)      f32
    att_w_ref, att_b_ref,                # (F, Hp) bf16, (1, Hp) f32
    w0i_ref, b0i_ref, w0h_ref, b0h_ref,  # dec0: (Ep,3Hp) bf16, (1,3Hp) f32, (Hp,3Hp) bf16, (1,3Hp) f32
    w1i_ref, b1i_ref, w1h_ref, b1h_ref,  # dec1: (Hp,3Hp) bf16, (1,3Hp) f32, (Hp,3Hp) bf16, (1,3Hp) f32
    out_w_ref, out_b_ref,                # (1, Hp) f32, (1, 1) f32
    valid_ref,                           # out: (TB, 1) f32
    gi0_ref,                             # scratch: (T, TB, 3Hp) f32
):
    T, TB, Ep = y_emb_ref.shape
    Hp = w0h_ref.shape[0]
    G = w0h_ref.shape[1]                 # 3 * Hp

    att_w = att_w_ref[...]
    w0i = w0i_ref[...]
    w0h = w0h_ref[...]
    w1i = w1i_ref[...]
    w1h = w1h_ref[...]
    mxu = w0h.dtype                      # bf16 matmul operands, f32 accumulation

    # ct = tanh(att(ctx)) is identical every timestep -> hoist out of the recurrence.
    ct = jnp.tanh(
        jnp.dot(ctx_ref[...].astype(mxu), att_w, preferred_element_type=jnp.float32)
        + att_b_ref[...]
    )

    # Hoist the dec0 *input* projection out of the serial recurrence: one big
    # (T*TB, Ep) x (Ep, 3Hp) matmul (dec0 input bias folded in here, once).
    y_flat = y_emb_ref[...].reshape(T * TB, Ep).astype(mxu)
    gi0_ref[...] = (
        jnp.dot(y_flat, w0i, preferred_element_type=jnp.float32) + b0i_ref[...]
    ).reshape(T, TB, G)

    # Hoist bias broadcasts (JAX does not CSE broadcast_in_dim inside the loop).
    b0h = jnp.broadcast_to(b0h_ref[...], (TB, G))
    b1i = jnp.broadcast_to(b1i_ref[...], (TB, G))
    b1h = jnp.broadcast_to(b1h_ref[...], (TB, G))

    def gru_gates(gi, gh, h):
        # PyTorch nn.GRUCell gate ordering [r, z, n]; slices are 128-lane-tile
        # aligned because Hp is a multiple of 128 (no XLU lane shifts per gate).
        r = jax.nn.sigmoid(gi[:, 0:Hp] + gh[:, 0:Hp])
        z = jax.nn.sigmoid(gi[:, Hp:2 * Hp] + gh[:, Hp:2 * Hp])
        n = jnp.tanh(gi[:, 2 * Hp:G] + r * gh[:, 2 * Hp:G])   # b_hn stays inside r*(...)
        return (1.0 - z) * n + z * h

    h_init = jnp.zeros((TB, Hp), jnp.float32)

    def step(t, h):
        gi0 = gi0_ref[t]                                       # (TB, 3Hp), precomputed
        gh0 = jnp.dot(h.astype(mxu), w0h, preferred_element_type=jnp.float32) + b0h
        h1 = gru_gates(gi0, gh0, h)
        x1 = h1 * ct
        gi1 = jnp.dot(x1.astype(mxu), w1i, preferred_element_type=jnp.float32) + b1i
        gh1 = jnp.dot(h1.astype(mxu), w1h, preferred_element_type=jnp.float32) + b1h
        o = gru_gates(gi1, gh1, h1)
        return o                                               # o becomes the new hidden state

    # Short static trip count: unroll so EUP/VPU/MXU work from adjacent steps interleaves.
    o = lax.fori_loop(0, T, step, h_init, unroll=True)

    # Classifier: a (B,Hp)@(Hp,1) matmul wastes the MXU; do VPU mul + lane reduce instead.
    logit = jnp.sum(o * out_w_ref[...], axis=-1, keepdims=True) + out_b_ref[...]
    valid_ref[...] = jax.nn.sigmoid(logit)


def discriminator_forward(y, emb_weight, ctx, kparams, *, block_b=8):
    """Glue: embedding gather + padding + pallas_call.

    y          : (T, B) int32 token ids
    emb_weight : (n_vocab, E) f32
    ctx        : (S=1, B, F) features; ctx_mask unused by _rnn_init_zero
    kparams    : padded / bf16 kernel weights from prepare_kernel_params()
    """
    T, B = y.shape
    E = emb_weight.shape[1]
    F = ctx.shape[-1]
    Hp = kparams["w0h"].shape[0]
    Ep = kparams["w0i"].shape[0]
    G = kparams["w0h"].shape[1]

    TB = block_b
    B_pad = ((B + TB - 1) // TB) * TB

    # Embedding gather stays in plain XLA.
    # TODO(synk): at realistic T*B*E, move the gather in-kernel via
    # PrefetchScalarGridSpec scalar-prefetched token ids, and block the T axis of
    # y_emb (with vmem_limit_bytes) so blocks fit v5e's 16 MiB / v7x's 32 MiB
    # scoped-VMEM defaults.
    y_emb = jnp.take(emb_weight, y, axis=0)                        # (T, B, E) f32
    y_emb = jnp.pad(y_emb, ((0, 0), (0, B_pad - B), (0, Ep - E)))  # (T, B_pad, Ep)
    ctx2d = jnp.pad(ctx[0], ((0, B_pad - B), (0, 0)))              # (B_pad, F)

    def bcast(shape):
        return pl.BlockSpec(shape, lambda b: (0,) * len(shape))

    kp = kparams
    weight_args = (kp["att_w"], kp["att_b"],
                   kp["w0i"], kp["b0i"], kp["w0h"], kp["b0h"],
                   kp["w1i"], kp["b1i"], kp["w1h"], kp["b1h"],
                   kp["out_w"], kp["out_b"])

    grid_spec = pltpu.PrefetchScalarGridSpec(
        num_scalar_prefetch=0,
        grid=(B_pad // TB,),            # batch-parallel: shards across TCs on v7x
        in_specs=[pl.BlockSpec((T, TB, Ep), lambda b: (0, b, 0)),
                  pl.BlockSpec((TB, F), lambda b: (b, 0))]
                 + [bcast(w.shape) for w in weight_args],
        out_specs=pl.BlockSpec((TB, 1), lambda b: (b, 0)),
        scratch_shapes=[pltpu.VMEM((T, TB, G), jnp.float32)],
    )

    valid = pl.pallas_call(
        discriminator_kernel,
        out_shape=jax.ShapeDtypeStruct((B_pad, 1), jnp.float32),
        grid_spec=grid_spec,
        compiler_params=pltpu.CompilerParams(
            dimension_semantics=("parallel",)),
    )(y_emb, ctx2d, *weight_args)
    return valid[:B]


# ----------------------------- parameter helpers -----------------------------

def make_params(key, n_vocab, input_size, hidden_size, feature_size):
    """Logical (unpadded, f32) parameters matching the PyTorch module."""
    ks = jax.random.split(key, 12)
    E, H, F = input_size, hidden_size, feature_size
    s = 0.1
    return {
        "emb": jax.random.normal(ks[0], (n_vocab, E), jnp.float32) * s,
        # att FF: Linear(F -> H), activ=tanh
        "att_w": jax.random.normal(ks[1], (F, H), jnp.float32) * s,
        "att_b": jax.random.normal(ks[2], (1, H), jnp.float32) * s,
        # dec0 GRUCell(E, H): weights stored transposed -> (in, 3H), gates [r,z,n]
        "w0i": jax.random.normal(ks[3], (E, 3 * H), jnp.float32) * s,
        "b0i": jax.random.normal(ks[4], (1, 3 * H), jnp.float32) * s,
        "w0h": jax.random.normal(ks[5], (H, 3 * H), jnp.float32) * s,
        "b0h": jax.random.normal(ks[6], (1, 3 * H), jnp.float32) * s,
        # dec1 GRUCell(H, H)
        "w1i": jax.random.normal(ks[7], (H, 3 * H), jnp.float32) * s,
        "b1i": jax.random.normal(ks[8], (1, 3 * H), jnp.float32) * s,
        "w1h": jax.random.normal(ks[9], (H, 3 * H), jnp.float32) * s,
        "b1h": jax.random.normal(ks[10], (1, 3 * H), jnp.float32) * s,
        # out2prob_classif FF: Linear(H -> 1), activ=sigmoid
        "out_w": jax.random.normal(ks[11], (H, 1), jnp.float32) * s,
        "out_b": jnp.zeros((1, 1), jnp.float32),
    }


def _pad_gate_cols(w, H, Hp):
    """(lead, 3H) -> (lead, 3Hp), zero-padding each gate block to a lane tile."""
    lead = w.shape[0]
    w3 = w.reshape(lead, 3, H)
    w3 = jnp.pad(w3, ((0, 0), (0, 0), (0, Hp - H)))
    return w3.reshape(lead, 3 * Hp)


def _pad_rows(w, new_rows):
    return jnp.pad(w, ((0, new_rows - w.shape[0]), (0, 0)))


def prepare_kernel_params(p, H, Hp, E, Ep, mxu_dtype=jnp.bfloat16):
    """Pad hidden/embedding dims to lane tiles; matmul weights in bf16, biases f32."""
    f32 = jnp.float32
    return {
        "att_w": jnp.pad(p["att_w"], ((0, 0), (0, Hp - H))).astype(mxu_dtype),
        "att_b": jnp.pad(p["att_b"], ((0, 0), (0, Hp - H))).astype(f32),
        "w0i": _pad_rows(_pad_gate_cols(p["w0i"], H, Hp), Ep).astype(mxu_dtype),
        "b0i": _pad_gate_cols(p["b0i"], H, Hp).astype(f32),
        "w0h": _pad_rows(_pad_gate_cols(p["w0h"], H, Hp), Hp).astype(mxu_dtype),
        "b0h": _pad_gate_cols(p["b0h"], H, Hp).astype(f32),
        "w1i": _pad_rows(_pad_gate_cols(p["w1i"], H, Hp), Hp).astype(mxu_dtype),
        "b1i": _pad_gate_cols(p["b1i"], H, Hp).astype(f32),
        "w1h": _pad_rows(_pad_gate_cols(p["w1h"], H, Hp), Hp).astype(mxu_dtype),
        "b1h": _pad_gate_cols(p["b1h"], H, Hp).astype(f32),
        "out_w": jnp.pad(p["out_w"].T, ((0, 0), (0, Hp - H))).astype(f32),   # (1, Hp)
        "out_b": p["out_b"].astype(f32),
    }


def reference_forward(y, ctx, p):
    """Pure-JAX f32 reference mirroring the PyTorch forward, for a sanity check."""
    H = p["w0h"].shape[0]
    y_emb = jnp.take(p["emb"], y, axis=0)
    ct = jnp.tanh(ctx[0] @ p["att_w"] + p["att_b"])
    h = jnp.zeros((ctx.shape[1], H), jnp.float32)

    def gru(x, h, wi, bi, wh, bh):
        gi = x @ wi + bi
        gh = h @ wh + bh
        r = jax.nn.sigmoid(gi[:, :H] + gh[:, :H])
        z = jax.nn.sigmoid(gi[:, H:2 * H] + gh[:, H:2 * H])
        n = jnp.tanh(gi[:, 2 * H:] + r * gh[:, 2 * H:])
        return (1.0 - z) * n + z * h

    o = h
    for t in range(y_emb.shape[0]):
        h1 = gru(y_emb[t], h, p["w0i"], p["b0i"], p["w0h"], p["b0h"])
        o = gru(h1 * ct, h1, p["w1i"], p["b1i"], p["w1h"], p["b1h"])
        h = o
    return jax.nn.sigmoid(o @ p["out_w"] + p["out_b"])


if __name__ == "__main__":
    # Small shapes consistent with the module's forward.
    T, B = 8, 2
    n_vocab = 20
    input_size = 32      # embedding dim / GRUCell-0 input
    hidden_size = 32
    feature_size = 16
    S = 1                # att(features).squeeze(0) implies a single feature row

    # Lane-tile padded sizes used by the kernel.
    Hp = max(128, ((hidden_size + 127) // 128) * 128)
    Ep = max(128, ((input_size + 127) // 128) * 128)

    key = jax.random.PRNGKey(0)
    k_p, k_y, k_ctx = jax.random.split(key, 3)
    params = make_params(k_p, n_vocab, input_size, hidden_size, feature_size)
    kparams = prepare_kernel_params(params, hidden_size, Hp, input_size, Ep)

    y = jax.random.randint(k_y, (T, B), 0, n_vocab, dtype=jnp.int32)
    ctx = jax.random.normal(k_ctx, (S, B, feature_size), jnp.float32)
    # ctx_mask is unused by _rnn_init_zero / f_next, so it is not materialized.

    valid = discriminator_forward(y, params["emb"], ctx, kparams)
    valid = jax.block_until_ready(valid)

    ref = reference_forward(y, ctx, params)
    assert valid.shape == (B, 1)
    # bf16 matmul operands (f32 accumulation) -> loose-but-safe tolerance vs f32 ref.
    assert jnp.allclose(valid, ref, atol=2e-2, rtol=2e-2), (valid, ref)

    print("KERNEL_OK")
</pallas_src>

<mosaic_0001>
module attributes {stable_mosaic.version = 11 : i64} {
  func.func @discriminator_kernel(%arg0: i32, %arg1: memref<8x8x128xf32, #tpu.memory_space<vmem>>, %arg2: memref<8x16xf32, #tpu.memory_space<vmem>>, %arg3: memref<16x128xbf16, #tpu.memory_space<vmem>>, %arg4: memref<1x128xf32, #tpu.memory_space<vmem>>, %arg5: memref<128x384xbf16, #tpu.memory_space<vmem>>, %arg6: memref<1x384xf32, #tpu.memory_space<vmem>>, %arg7: memref<128x384xbf16, #tpu.memory_space<vmem>>, %arg8: memref<1x384xf32, #tpu.memory_space<vmem>>, %arg9: memref<128x384xbf16, #tpu.memory_space<vmem>>, %arg10: memref<1x384xf32, #tpu.memory_space<vmem>>, %arg11: memref<128x384xbf16, #tpu.memory_space<vmem>>, %arg12: memref<1x384xf32, #tpu.memory_space<vmem>>, %arg13: memref<1x128xf32, #tpu.memory_space<vmem>>, %arg14: memref<1x1xf32, #tpu.memory_space<vmem>>, %arg15: memref<8x1xf32, #tpu.memory_space<vmem>>, %arg16: memref<8x8x384xf32, #tpu.memory_space<vmem>>) attributes {dimension_semantics = [#tpu.dimension_semantics<parallel>], iteration_bounds = array<i64: 1>, scalar_prefetch = 0 : i64, scratch_operands = 1 : i64, tpu.core_type = #tpu.core_type<tc>, window_params = [{transform_indices = @transform_0, window_bounds = array<i64: 8, 8, 128>}, {transform_indices = @transform_1, window_bounds = array<i64: 8, 16>}, {pipeline_mode = #tpu.pipeline_mode<synchronous>, transform_indices = @transform_2, window_bounds = array<i64: 16, 128>}, {pipeline_mode = #tpu.pipeline_mode<synchronous>, transform_indices = @transform_3, window_bounds = array<i64: 1, 128>}, {pipeline_mode = #tpu.pipeline_mode<synchronous>, transform_indices = @transform_4, window_bounds = array<i64: 128, 384>}, {pipeline_mode = #tpu.pipeline_mode<synchronous>, transform_indices = @transform_5, window_bounds = array<i64: 1, 384>}, {pipeline_mode = #tpu.pipeline_mode<synchronous>, transform_indices = @transform_6, window_bounds = array<i64: 128, 384>}, {pipeline_mode = #tpu.pipeline_mode<synchronous>, transform_indices = @transform_7, window_bounds = array<i64: 1, 384>}, {pipeline_mode = #tpu.pipeline_mode<synchronous>, transform_indices = @transform_8, window_bounds = array<i64: 128, 384>}, {pipeline_mode = #tpu.pipeline_mode<synchronous>, transform_indices = @transform_9, window_bounds = array<i64: 1, 384>}, {pipeline_mode = #tpu.pipeline_mode<synchronous>, transform_indices = @transform_10, window_bounds = array<i64: 128, 384>}, {pipeline_mode = #tpu.pipeline_mode<synchronous>, transform_indices = @transform_11, window_bounds = array<i64: 1, 384>}, {pipeline_mode = #tpu.pipeline_mode<synchronous>, transform_indices = @transform_12, window_bounds = array<i64: 1, 128>}, {pipeline_mode = #tpu.pipeline_mode<synchronous>, transform_indices = @transform_13, window_bounds = array<i64: 1, 1>}, {transform_indices = @transform_14, window_bounds = array<i64: 8, 1>}]} {
    %c0 = arith.constant 0 : index
    %c0_0 = arith.constant 0 : index
    %0 = vector.load %arg3[%c0, %c0_0] : memref<16x128xbf16, #tpu.memory_space<vmem>>, vector<16x128xbf16>
    %c0_1 = arith.constant 0 : index
    %c0_2 = arith.constant 0 : index
    %1 = vector.load %arg5[%c0_1, %c0_2] : memref<128x384xbf16, #tpu.memory_space<vmem>>, vector<128x384xbf16>
    %c0_3 = arith.constant 0 : index
    %c0_4 = arith.constant 0 : index
    %2 = vector.load %arg7[%c0_3, %c0_4] : memref<128x384xbf16, #tpu.memory_space<vmem>>, vector<128x384xbf16>
    %c0_5 = arith.constant 0 : index
    %c0_6 = arith.constant 0 : index
    %3 = vector.load %arg9[%c0_5, %c0_6] : memref<128x384xbf16, #tpu.memory_space<vmem>>, vector<128x384xbf16>
    %c0_7 = arith.constant 0 : index
    %c0_8 = arith.constant 0 : index
    %4 = vector.load %arg11[%c0_7, %c0_8] : memref<128x384xbf16, #tpu.memory_space<vmem>>, vector<128x384xbf16>
    %c0_9 = arith.constant 0 : index
    %c0_10 = arith.constant 0 : index
    %5 = vector.load %arg2[%c0_9, %c0_10] : memref<8x16xf32, #tpu.memory_space<vmem>>, vector<8x16xf32>
    %6 = arith.truncf %5 : vector<8x16xf32> to vector<8x16xbf16>
    %cst = arith.constant dense<0.000000e+00> : vector<8x128xf32>
    %7 = tpu.matmul %6, %0, %cst {dimension_numbers = #tpu.dot_dimension_numbers<[1], [0], [0], [1], [0, 0, 1, 1], [], []>} : vector<8x16xbf16>, vector<16x128xbf16>, vector<8x128xf32> -> vector<8x128xf32>
    %c0_11 = arith.constant 0 : index
    %c0_12 = arith.constant 0 : index
    %8 = vector.load %arg4[%c0_11, %c0_12] : memref<1x128xf32, #tpu.memory_space<vmem>>, vector<1x128xf32>
    %9 = vector.broadcast %8 : vector<1x128xf32> to vector<8x128xf32>
    %10 = arith.addf %7, %9 : vector<8x128xf32>
    %11 = math.tanh %10 : vector<8x128xf32>
    %c0_13 = arith.constant 0 : index
    %c0_14 = arith.constant 0 : index
    %c0_15 = arith.constant 0 : index
    %12 = vector.load %arg1[%c0_13, %c0_14, %c0_15] : memref<8x8x128xf32, #tpu.memory_space<vmem>>, vector<8x8x128xf32>
    %13 = vector.shape_cast %12 : vector<8x8x128xf32> to vector<64x128xf32>
    %14 = arith.truncf %13 : vector<64x128xf32> to vector<64x128xbf16>
    %cst_16 = arith.constant dense<0.000000e+00> : vector<64x384xf32>
    %15 = tpu.matmul %14, %1, %cst_16 {dimension_numbers = #tpu.dot_dimension_numbers<[1], [0], [0], [1], [0, 0, 1, 1], [], []>} : vector<64x128xbf16>, vector<128x384xbf16>, vector<64x384xf32> -> vector<64x384xf32>
    %c0_17 = arith.constant 0 : index
    %c0_18 = arith.constant 0 : index
    %16 = vector.load %arg6[%c0_17, %c0_18] : memref<1x384xf32, #tpu.memory_space<vmem>>, vector<1x384xf32>
    %17 = vector.broadcast %16 : vector<1x384xf32> to vector<64x384xf32>
    %18 = arith.addf %15, %17 : vector<64x384xf32>
    %19 = vector.shape_cast %18 : vector<64x384xf32> to vector<8x8x384xf32>
    %c0_19 = arith.constant 0 : index
    %c0_20 = arith.constant 0 : index
    %c0_21 = arith.constant 0 : index
    %20 = vector.load %arg16[%c0_19, %c0_20, %c0_21] : memref<8x8x384xf32, #tpu.memory_space<vmem>>, vector<8x8x384xf32>
    tpu.vector_store %arg16[%c0_19, %c0_20, %c0_21], %19 {strides = array<i32>} : memref<8x8x384xf32, #tpu.memory_space<vmem>>, vector<8x8x384xf32>,
    %c0_22 = arith.constant 0 : index
    %c0_23 = arith.constant 0 : index
    %21 = vector.load %arg8[%c0_22, %c0_23] : memref<1x384xf32, #tpu.memory_space<vmem>>, vector<1x384xf32>
    %22 = vector.shape_cast %21 : vector<1x384xf32> to vector<1x384xf32>
    %23 = vector.broadcast %22 : vector<1x384xf32> to vector<8x384xf32>
    %c0_24 = arith.constant 0 : index
    %c0_25 = arith.constant 0 : index
    %24 = vector.load %arg10[%c0_24, %c0_25] : memref<1x384xf32, #tpu.memory_space<vmem>>, vector<1x384xf32>
    %25 = vector.shape_cast %24 : vector<1x384xf32> to vector<1x384xf32>
    %26 = vector.broadcast %25 : vector<1x384xf32> to vector<8x384xf32>
    %c0_26 = arith.constant 0 : index
    %c0_27 = arith.constant 0 : index
    %27 = vector.load %arg12[%c0_26, %c0_27] : memref<1x384xf32, #tpu.memory_space<vmem>>, vector<1x384xf32>
    %28 = vector.shape_cast %27 : vector<1x384xf32> to vector<1x384xf32>
    %29 = vector.broadcast %28 : vector<1x384xf32> to vector<8x384xf32>
    %cst_28 = arith.constant 0.000000e+00 : f32
    %30 = vector.broadcast %cst_28 : f32 to vector<8x128xf32>
    %c0_i32 = arith.constant 0 : i32
    %31 = arith.index_cast %c0_i32 : i32 to index
    %c0_29 = arith.constant 0 : index
    %c0_30 = arith.constant 0 : index
    %32 = vector.load %arg16[%31, %c0_29, %c0_30] : memref<8x8x384xf32, #tpu.memory_space<vmem>>, vector<1x8x384xf32>
    %33 = vector.shape_cast %32 : vector<1x8x384xf32> to vector<8x384xf32>
    %34 = arith.truncf %30 : vector<8x128xf32> to vector<8x128xbf16>
    %cst_31 = arith.constant dense<0.000000e+00> : vector<8x384xf32>
    %35 = tpu.matmul %34, %2, %cst_31 {dimension_numbers = #tpu.dot_dimension_numbers<[1], [0], [0], [1], [0, 0, 1, 1], [], []>} : vector<8x128xbf16>, vector<128x384xbf16>, vector<8x384xf32> -> vector<8x384xf32>
    %36 = arith.addf %35, %23 : vector<8x384xf32>
    %37 = vector.extract_strided_slice %33 {offsets = [0, 0], sizes = [8, 128], strides = [1, 1]} : vector<8x384xf32> to vector<8x128xf32>
    %38 = vector.extract_strided_slice %36 {offsets = [0, 0], sizes = [8, 128], strides = [1, 1]} : vector<8x384xf32> to vector<8x128xf32>
    %39 = arith.addf %37, %38 : vector<8x128xf32>
    %40 = arith.negf %39 : vector<8x128xf32>
    %41 = math.exp %40 : vector<8x128xf32>
    %cst_32 = arith.constant 1.000000e+00 : f32
    %42 = vector.broadcast %cst_32 : f32 to vector<8x128xf32>
    %43 = arith.addf %42, %41 : vector<8x128xf32>
    %44 = arith.divf %42, %43 : vector<8x128xf32>
    %45 = vector.extract_strided_slice %33 {offsets = [0, 128], sizes = [8, 128], strides = [1, 1]} : vector<8x384xf32> to vector<8x128xf32>
    %46 = vector.extract_strided_slice %36 {offsets = [0, 128], sizes = [8, 128], strides = [1, 1]} : vector<8x384xf32> to vector<8x128xf32>
    %47 = arith.addf %45, %46 : vector<8x128xf32>
    %48 = arith.negf %47 : vector<8x128xf32>
    %49 = math.exp %48 : vector<8x128xf32>
    %cst_33 = arith.constant 1.000000e+00 : f32
    %50 = vector.broadcast %cst_33 : f32 to vector<8x128xf32>
    %51 = arith.addf %50, %49 : vector<8x128xf32>
    %52 = arith.divf %50, %51 : vector<8x128xf32>
    %53 = vector.extract_strided_slice %33 {offsets = [0, 256], sizes = [8, 128], strides = [1, 1]} : vector<8x384xf32> to vector<8x128xf32>
    %54 = vector.extract_strided_slice %36 {offsets = [0, 256], sizes = [8, 128], strides = [1, 1]} : vector<8x384xf32> to vector<8x128xf32>
    %55 = arith.mulf %44, %54 : vector<8x128xf32>
    %56 = arith.addf %53, %55 : vector<8x128xf32>
    %57 = math.tanh %56 : vector<8x128xf32>
    %cst_34 = arith.constant 1.000000e+00 : f32
    %58 = vector.broadcast %cst_34 : f32 to vector<8x128xf32>
    %59 = arith.subf %58, %52 : vector<8x128xf32>
    %60 = arith.mulf %59, %57 : vector<8x128xf32>
    %61 = arith.mulf %52, %30 : vector<8x128xf32>
    %62 = arith.addf %60, %61 : vector<8x128xf32>
    %63 = arith.mulf %62, %11 : vector<8x128xf32>
    %64 = arith.truncf %63 : vector<8x128xf32> to vector<8x128xbf16>
    %cst_35 = arith.constant dense<0.000000e+00> : vector<8x384xf32>
    %65 = tpu.matmul %64, %3, %cst_35 {dimension_numbers = #tpu.dot_dimension_numbers<[1], [0], [0], [1], [0, 0, 1, 1], [], []>} : vector<8x128xbf16>, vector<128x384xbf16>, vector<8x384xf32> -> vector<8x384xf32>
    %66 = arith.addf %65, %26 : vector<8x384xf32>
    %67 = arith.truncf %62 : vector<8x128xf32> to vector<8x128xbf16>
    %cst_36 = arith.constant dense<0.000000e+00> : vector<8x384xf32>
    %68 = tpu.matmul %67, %4, %cst_36 {dimension_numbers = #tpu.dot_dimension_numbers<[1], [0], [0], [1], [0, 0, 1, 1], [], []>} : vector<8x128xbf16>, vector<128x384xbf16>, vector<8x384xf32> -> vector<8x384xf32>
    %69 = arith.addf %68, %29 : vector<8x384xf32>
    %70 = vector.extract_strided_slice %66 {offsets = [0, 0], sizes = [8, 128], strides = [1, 1]} : vector<8x384xf32> to vector<8x128xf32>
    %71 = vector.extract_strided_slice %69 {offsets = [0, 0], sizes = [8, 128], strides = [1, 1]} : vector<8x384xf32> to vector<8x128xf32>
    %72 = arith.addf %70, %71 : vector<8x128xf32>
    %73 = arith.negf %72 : vector<8x128xf32>
    %74 = math.exp %73 : vector<8x128xf32>
    %cst_37 = arith.constant 1.000000e+00 : f32
    %75 = vector.broadcast %cst_37 : f32 to vector<8x128xf32>
    %76 = arith.addf %75, %74 : vector<8x128xf32>
    %77 = arith.divf %75, %76 : vector<8x128xf32>
    %78 = vector.extract_strided_slice %66 {offsets = [0, 128], sizes = [8, 128], strides = [1, 1]} : vector<8x384xf32> to vector<8x128xf32>
    %79 = vector.extract_strided_slice %69 {offsets = [0, 128], sizes = [8, 128], strides = [1, 1]} : vector<8x384xf32> to vector<8x128xf32>
    %80 = arith.addf %78, %79 : vector<8x128xf32>
    %81 = arith.negf %80 : vector<8x128xf32>
    %82 = math.exp %81 : vector<8x128xf32>
    %cst_38 = arith.constant 1.000000e+00 : f32
    %83 = vector.broadcast %cst_38 : f32 to vector<8x128xf32>
    %84 = arith.addf %83, %82 : vector<8x128xf32>
    %85 = arith.divf %83, %84 : vector<8x128xf32>
    %86 = vector.extract_strided_slice %66 {offsets = [0, 256], sizes = [8, 128], strides = [1, 1]} : vector<8x384xf32> to vector<8x128xf32>
    %87 = vector.extract_strided_slice %69 {offsets = [0, 256], sizes = [8, 128], strides = [1, 1]} : vector<8x384xf32> to vector<8x128xf32>
    %88 = arith.mulf %77, %87 : vector<8x128xf32>
    %89 = arith.addf %86, %88 : vector<8x128xf32>
    %90 = math.tanh %89 : vector<8x128xf32>
    %cst_39 = arith.constant 1.000000e+00 : f32
    %91 = vector.broadcast %cst_39 : f32 to vector<8x128xf32>
    %92 = arith.subf %91, %85 : vector<8x128xf32>
    %93 = arith.mulf %92, %90 : vector<8x128xf32>
    %94 = arith.mulf %85, %62 : vector<8x128xf32>
    %95 = arith.addf %93, %94 : vector<8x128xf32>
    %c1_i32 = arith.constant 1 : i32
    %96 = arith.index_cast %c1_i32 : i32 to index
    %c0_40 = arith.constant 0 : index
    %c0_41 = arith.constant 0 : index
    %97 = vector.load %arg16[%96, %c0_40, %c0_41] : memref<8x8x384xf32, #tpu.memory_space<vmem>>, vector<1x8x384xf32>
    %98 = vector.shape_cast %97 : vector<1x8x384xf32> to vector<8x384xf32>
    %99 = arith.truncf %95 : vector<8x128xf32> to vector<8x128xbf16>
    %cst_42 = arith.constant dense<0.000000e+00> : vector<8x384xf32>
    %100 = tpu.matmul %99, %2, %cst_42 {dimension_numbers = #tpu.dot_dimension_numbers<[1], [0], [0], [1], [0, 0, 1, 1], [], []>} : vector<8x128xbf16>, vector<128x384xbf16>, vector<8x384xf32> -> vector<8x384xf32>
    %101 = arith.addf %100, %23 : vector<8x384xf32>
    %102 = vector.extract_strided_slice %98 {offsets = [0, 0], sizes = [8, 128], strides = [1, 1]} : vector<8x384xf32> to vector<8x128xf32>
    %103 = vector.extract_strided_slice %101 {offsets = [0, 0], sizes = [8, 128], strides = [1, 1]} : vector<8x384xf32> to vector<8x128xf32>
    %104 = arith.addf %102, %103 : vector<8x128xf32>
    %105 = arith.negf %104 : vector<8x128xf32>
    %106 = math.exp %105 : vector<8x128xf32>
    %cst_43 = arith.constant 1.000000e+00 : f32
    %107 = vector.broadcast %cst_43 : f32 to vector<8x128xf32>
    %108 = arith.addf %107, %106 : vector<8x128xf32>
    %109 = arith.divf %107, %108 : vector<8x128xf32>
    %110 = vector.extract_strided_slice %98 {offsets = [0, 128], sizes = [8, 128], strides = [1, 1]} : vector<8x384xf32> to vector<8x128xf32>
    %111 = vector.extract_strided_slice %101 {offsets = [0, 128], sizes = [8, 128], strides = [1, 1]} : vector<8x384xf32> to vector<8x128xf32>
    %112 = arith.addf %110, %111 : vector<8x128xf32>
    %113 = arith.negf %112 : vector<8x128xf32>
    %114 = math.exp %113 : vector<8x128xf32>
    %cst_44 = arith.constant 1.000000e+00 : f32
    %115 = vector.broadcast %cst_44 : f32 to vector<8x128xf32>
    %116 = arith.addf %115, %114 : vector<8x128xf32>
    %117 = arith.divf %115, %116 : vector<8x128xf32>
    %118 = vector.extract_strided_slice %98 {offsets = [0, 256], sizes = [8, 128], strides = [1, 1]} : vector<8x384xf32> to vector<8x128xf32>
    %119 = vector.extract_strided_slice %101 {offsets = [0, 256], sizes = [8, 128], strides = [1, 1]} : vector<8x384xf32> to vector<8x128xf32>
    %120 = arith.mulf %109, %119 : vector<8x128xf32>
    %121 = arith.addf %118, %120 : vector<8x128xf32>
    %122 = math.tanh %121 : vector<8x128xf32>
    %cst_45 = arith.constant 1.000000e+00 : f32
    %123 = vector.broadcast %cst_45 : f32 to vector<8x128xf32>
    %124 = arith.subf %123, %117 : vector<8x128xf32>
    %125 = arith.mulf %124, %122 : vector<8x128xf32>
    %126 = arith.mulf %117, %95 : vector<8x128xf32>
    %127 = arith.addf %125, %126 : vector<8x128xf32>
    %128 = arith.mulf %127, %11 : vector<8x128xf32>
    %129 = arith.truncf %128 : vector<8x128xf32> to vector<8x128xbf16>
    %cst_46 = arith.constant dense<0.000000e+00> : vector<8x384xf32>
    %130 = tpu.matmul %129, %3, %cst_46 {dimension_numbers = #tpu.dot_dimension_numbers<[1], [0], [0], [1], [0, 0, 1, 1], [], []>} : vector<8x128xbf16>, vector<128x384xbf16>, vector<8x384xf32> -> vector<8x384xf32>
    %131 = arith.addf %130, %26 : vector<8x384xf32>
    %132 = arith.truncf %127 : vector<8x128xf32> to vector<8x128xbf16>
    %cst_47 = arith.constant dense<0.000000e+00> : vector<8x384xf32>
    %133 = tpu.matmul %132, %4, %cst_47 {dimension_numbers = #tpu.dot_dimension_numbers<[1], [0], [0], [1], [0, 0, 1, 1], [], []>} : vector<8x128xbf16>, vector<128x384xbf16>, vector<8x384xf32> -> vector<8x384xf32>
    %134 = arith.addf %133, %29 : vector<8x384xf32>
    %135 = vector.extract_strided_slice %131 {offsets = [0, 0], sizes = [8, 128], strides = [1, 1]} : vector<8x384xf32> to vector<8x128xf32>
    %136 = vector.extract_strided_slice %134 {offsets = [0, 0], sizes = [8, 128], strides = [1, 1]} : vector<8x384xf32> to vector<8x128xf32>
    %137 = arith.addf %135, %136 : vector<8x128xf32>
    %138 = arith.negf %137 : vector<8x128xf32>
    %139 = math.exp %138 : vector<8x128xf32>
    %cst_48 = arith.constant 1.000000e+00 : f32
    %140 = vector.broadcast %cst_48 : f32 to vector<8x128xf32>
    %141 = arith.addf %140, %139 : vector<8x128xf32>
    %142 = arith.divf %140, %141 : vector<8x128xf32>
    %143 = vector.extract_strided_slice %131 {offsets = [0, 128], sizes = [8, 128], strides = [1, 1]} : vector<8x384xf32> to vector<8x128xf32>
    %144 = vector.extract_strided_slice %134 {offsets = [0, 128], sizes = [8, 128], strides = [1, 1]} : vector<8x384xf32> to vector<8x128xf32>
    %145 = arith.addf %143, %144 : vector<8x128xf32>
    %146 = arith.negf %145 : vector<8x128xf32>
    %147 = math.exp %146 : vector<8x128xf32>
    %cst_49 = arith.constant 1.000000e+00 : f32
    %148 = vector.broadcast %cst_49 : f32 to vector<8x128xf32>
    %149 = arith.addf %148, %147 : vector<8x128xf32>
    %150 = arith.divf %148, %149 : vector<8x128xf32>
    %151 = vector.extract_strided_slice %131 {offsets = [0, 256], sizes = [8, 128], strides = [1, 1]} : vector<8x384xf32> to vector<8x128xf32>
    %152 = vector.extract_strided_slice %134 {offsets = [0, 256], sizes = [8, 128], strides = [1, 1]} : vector<8x384xf32> to vector<8x128xf32>
    %153 = arith.mulf %142, %152 : vector<8x128xf32>
    %154 = arith.addf %151, %153 : vector<8x128xf32>
    %155 = math.tanh %154 : vector<8x128xf32>
    %cst_50 = arith.constant 1.000000e+00 : f32
    %156 = vector.broadcast %cst_50 : f32 to vector<8x128xf32>
    %157 = arith.subf %156, %150 : vector<8x128xf32>
    %158 = arith.mulf %157, %155 : vector<8x128xf32>
    %159 = arith.mulf %150, %127 : vector<8x128xf32>
    %160 = arith.addf %158, %159 : vector<8x128xf32>
    %c2_i32 = arith.constant 2 : i32
    %161 = arith.index_cast %c2_i32 : i32 to index
    %c0_51 = arith.constant 0 : index
    %c0_52 = arith.constant 0 : index
    %162 = vector.load %arg16[%161, %c0_51, %c0_52] : memref<8x8x384xf32, #tpu.memory_space<vmem>>, vector<1x8x384xf32>
    %163 = vector.shape_cast %162 : vector<1x8x384xf32> to vector<8x384xf32>
    %164 = arith.truncf %160 : vector<8x128xf32> to vector<8x128xbf16>
    %cst_53 = arith.constant dense<0.000000e+00> : vector<8x384xf32>
    %165 = tpu.matmul %164, %2, %cst_53 {dimension_numbers = #tpu.dot_dimension_numbers<[1], [0], [0], [1], [0, 0, 1, 1], [], []>} : vector<8x128xbf16>, vector<128x384xbf16>, vector<8x384xf32> -> vector<8x384xf32>
    %166 = arith.addf %165, %23 : vector<8x384xf32>
    %167 = vector.extract_strided_slice %163 {offsets = [0, 0], sizes = [8, 128], strides = [1, 1]} : vector<8x384xf32> to vector<8x128xf32>
    %168 = vector.extract_strided_slice %166 {offsets = [0, 0], sizes = [8, 128], strides = [1, 1]} : vector<8x384xf32> to vector<8x128xf32>
    %169 = arith.addf %167, %168 : vector<8x128xf32>
    %170 = arith.negf %169 : vector<8x128xf32>
    %171 = math.exp %170 : vector<8x128xf32>
    %cst_54 = arith.constant 1.000000e+00 : f32
    %172 = vector.broadcast %cst_54 : f32 to vector<8x128xf32>
    %173 = arith.addf %172, %171 : vector<8x128xf32>
    %174 = arith.divf %172, %173 : vector<8x128xf32>
    %175 = vector.extract_strided_slice %163 {offsets = [0, 128], sizes = [8, 128], strides = [1, 1]} : vector<8x384xf32> to vector<8x128xf32>
    %176 = vector.extract_strided_slice %166 {offsets = [0, 128], sizes = [8, 128], strides = [1, 1]} : vector<8x384xf32> to vector<8x128xf32>
    %177 = arith.addf %175, %176 : vector<8x128xf32>
    %178 = arith.negf %177 : vector<8x128xf32>
    %179 = math.exp %178 : vector<8x128xf32>
    %cst_55 = arith.constant 1.000000e+00 : f32
    %180 = vector.broadcast %cst_55 : f32 to vector<8x128xf32>
    %181 = arith.addf %180, %179 : vector<8x128xf32>
    %182 = arith.divf %180, %181 : vector<8x128xf32>
    %183 = vector.extract_strided_slice %163 {offsets = [0, 256], sizes = [8, 128], strides = [1, 1]} : vector<8x384xf32> to vector<8x128xf32>
    %184 = vector.extract_strided_slice %166 {offsets = [0, 256], sizes = [8, 128], strides = [1, 1]} : vector<8x384xf32> to vector<8x128xf32>
    %185 = arith.mulf %174, %184 : vector<8x128xf32>
    %186 = arith.addf %183, %185 : vector<8x128xf32>
    %187 = math.tanh %186 : vector<8x128xf32>
    %cst_56 = arith.constant 1.000000e+00 : f32
    %188 = vector.broadcast %cst_56 : f32 to vector<8x128xf32>
    %189 = arith.subf %188, %182 : vector<8x128xf32>
    %190 = arith.mulf %189, %187 : vector<8x128xf32>
    %191 = arith.mulf %182, %160 : vector<8x128xf32>
    %192 = arith.addf %190, %191 : vector<8x128xf32>
    %193 = arith.mulf %192, %11 : vector<8x128xf32>
    %194 = arith.truncf %193 : vector<8x128xf32> to vector<8x128xbf16>
    %cst_57 = arith.constant dense<0.000000e+00> : vector<8x384xf32>
    %195 = tpu.matmul %194, %3, %cst_57 {dimension_numbers = #tpu.dot_dimension_numbers<[1], [0], [0], [1], [0, 0, 1, 1], [], []>} : vector<8x128xbf16>, vector<128x384xbf16>, vector<8x384xf32> -> vector<8x384xf32>
    %196 = arith.addf %195, %26 : vector<8x384xf32>
    %197 = arith.truncf %192 : vector<8x128xf32> to vector<8x128xbf16>
    %cst_58 = arith.constant dense<0.000000e+00> : vector<8x384xf32>
    %198 = tpu.matmul %197, %4, %cst_58 {dimension_numbers = #tpu.dot_dimension_numbers<[1], [0], [0], [1], [0, 0, 1, 1], [], []>} : vector<8x128xbf16>, vector<128x384xbf16>, vector<8x384xf32> -> vector<8x384xf32>
    %199 = arith.addf %198, %29 : vector<8x384xf32>
    %200 = vector.extract_strided_slice %196 {offsets = [0, 0], sizes = [8, 128], strides = [1, 1]} : vector<8x384xf32> to vector<8x128xf32>
    %201 = vector.extract_strided_slice %199 {offsets = [0, 0], sizes = [8, 128], strides = [1, 1]} : vector<8x384xf32> to vector<8x128xf32>
    %202 = arith.addf %200, %201 : vector<8x128xf32>
    %203 = arith.negf %202 : vector<8x128xf32>
    %204 = math.exp %203 : vector<8x128xf32>
    %cst_59 = arith.constant 1.000000e+00 : f32
    %205 = vector.broadcast %cst_59 : f32 to vector<8x128xf32>
    %206 = arith.addf %205, %204 : vector<8x128xf32>
    %207 = arith.divf %205, %206 : vector<8x128xf32>
    %208 = vector.extract_strided_slice %196 {offsets = [0, 128], sizes = [8, 128], strides = [1, 1]} : vector<8x384xf32> to vector<8x128xf32>
    %209 = vector.extract_strided_slice %199 {offsets = [0, 128], sizes = [8, 128], strides = [1, 1]} : vector<8x384xf32> to vector<8x128xf32>
    %210 = arith.addf %208, %209 : vector<8x128xf32>
    %211 = arith.negf %210 : vector<8x128xf32>
    %212 = math.exp %211 : vector<8x128xf32>
    %cst_60 = arith.constant 1.000000e+00 : f32
    %213 = vector.broadcast %cst_60 : f32 to vector<8x128xf32>
    %214 = arith.addf %213, %212 : vector<8x128xf32>
    %215 = arith.divf %213, %214 : vector<8x128xf32>
    %216 = vector.extract_strided_slice %196 {offsets = [0, 256], sizes = [8, 128], strides = [1, 1]} : vector<8x384xf32> to vector<8x128xf32>
    %217 = vector.extract_strided_slice %199 {offsets = [0, 256], sizes = [8, 128], strides = [1, 1]} : vector<8x384xf32> to vector<8x128xf32>
    %218 = arith.mulf %207, %217 : vector<8x128xf32>
    %219 = arith.addf %216, %218 : vector<8x128xf32>
    %220 = math.tanh %219 : vector<8x128xf32>
    %cst_61 = arith.constant 1.000000e+00 : f32
    %221 = vector.broadcast %cst_61 : f32 to vector<8x128xf32>
    %222 = arith.subf %221, %215 : vector<8x128xf32>
    %223 = arith.mulf %222, %220 : vector<8x128xf32>
    %224 = arith.mulf %215, %192 : vector<8x128xf32>
    %225 = arith.addf %223, %224 : vector<8x128xf32>
    %c3_i32 = arith.constant 3 : i32
    %226 = arith.index_cast %c3_i32 : i32 to index
    %c0_62 = arith.constant 0 : index
    %c0_63 = arith.constant 0 : index
    %227 = vector.load %arg16[%226, %c0_62, %c0_63] : memref<8x8x384xf32, #tpu.memory_space<vmem>>, vector<1x8x384xf32>
    %228 = vector.shape_cast %227 : vector<1x8x384xf32> to vector<8x384xf32>
    %229 = arith.truncf %225 : vector<8x128xf32> to vector<8x128xbf16>
    %cst_64 = arith.constant dense<0.000000e+00> : vector<8x384xf32>
    %230 = tpu.matmul %229, %2, %cst_64 {dimension_numbers = #tpu.dot_dimension_numbers<[1], [0], [0], [1], [0, 0, 1, 1], [], []>} : vector<8x128xbf16>, vector<128x384xbf16>, vector<8x384xf32> -> vector<8x384xf32>
    %231 = arith.addf %230, %23 : vector<8x384xf32>
    %232 = vector.extract_strided_slice %228 {offsets = [0, 0], sizes = [8, 128], strides = [1, 1]} : vector<8x384xf32> to vector<8x128xf32>
    %233 = vector.extract_strided_slice %231 {offsets = [0, 0], sizes = [8, 128], strides = [1, 1]} : vector<8x384xf32> to vector<8x128xf32>
    %234 = arith.addf %232, %233 : vector<8x128xf32>
    %235 = arith.negf %234 : vector<8x128xf32>
    %236 = math.exp %235 : vector<8x128xf32>
    %cst_65 = arith.constant 1.000000e+00 : f32
    %237 = vector.broadcast %cst_65 : f32 to vector<8x128xf32>
    %238 = arith.addf %237, %236 : vector<8x128xf32>
    %239 = arith.divf %237, %238 : vector<8x128xf32>
    %240 = vector.extract_strided_slice %228 {offsets = [0, 128], sizes = [8, 128], strides = [1, 1]} : vector<8x384xf32> to vector<8x128xf32>
    %241 = vector.extract_strided_slice %231 {offsets = [0, 128], sizes = [8, 128], strides = [1, 1]} : vector<8x384xf32> to vector<8x128xf32>
    %242 = arith.addf %240, %241 : vector<8x128xf32>
    %243 = arith.negf %242 : vector<8x128xf32>
    %244 = math.exp %243 : vector<8x128xf32>
    %cst_66 = arith.constant 1.000000e+00 : f32
    %245 = vector.broadcast %cst_66 : f32 to vector<8x128xf32>
    %246 = arith.addf %245, %244 : vector<8x128xf32>
    %247 = arith.divf %245, %246 : vector<8x128xf32>
    %248 = vector.extract_strided_slice %228 {offsets = [0, 256], sizes = [8, 128], strides = [1, 1]} : vector<8x384xf32> to vector<8x128xf32>
    %249 = vector.extract_strided_slice %231 {offsets = [0, 256], sizes = [8, 128], strides = [1, 1]} : vector<8x384xf32> to vector<8x128xf32>
    %250 = arith.mulf %239, %249 : vector<8x128xf32>
    %251 = arith.addf %248, %250 : vector<8x128xf32>
    %252 = math.tanh %251 : vector<8x128xf32>
    %cst_67 = arith.constant 1.000000e+00 : f32
    %253 = vector.broadcast %cst_67 : f32 to vector<8x128xf32>
    %254 = arith.subf %253, %247 : vector<8x128xf32>
    %255 = arith.mulf %254, %252 : vector<8x128xf32>
    %256 = arith.mulf %247, %225 : vector<8x128xf32>
    %257 = arith.addf %255, %256 : vector<8x128xf32>
    %258 = arith.mulf %257, %11 : vector<8x128xf32>
    %259 = arith.truncf %258 : vector<8x128xf32> to vector<8x128xbf16>
    %cst_68 = arith.constant dense<0.000000e+00> : vector<8x384xf32>
    %260 = tpu.matmul %259, %3, %cst_68 {dimension_numbers = #tpu.dot_dimension_numbers<[1], [0], [0], [1], [0, 0, 1, 1], [], []>} : vector<8x128xbf16>, vector<128x384xbf16>, vector<8x384xf32> -> vector<8x384xf32>
    %261 = arith.addf %260, %26 : vector<8x384xf32>
    %262 = arith.truncf %257 : vector<8x128xf32> to vector<8x128xbf16>
    %cst_69 = arith.constant dense<0.000000e+00> : vector<8x384xf32>
    %263 = tpu.matmul %262, %4, %cst_69 {dimension_numbers = #tpu.dot_dimension_numbers<[1], [0], [0], [1], [0, 0, 1, 1], [], []>} : vector<8x128xbf16>, vector<128x384xbf16>, vector<8x384xf32> -> vector<8x384xf32>
    %264 = arith.addf %263, %29 : vector<8x384xf32>
    %265 = vector.extract_strided_slice %261 {offsets = [0, 0], sizes = [8, 128], strides = [1, 1]} : vector<8x384xf32> to vector<8x128xf32>
    %266 = vector.extract_strided_slice %264 {offsets = [0, 0], sizes = [8, 128], strides = [1, 1]} : vector<8x384xf32> to vector<8x128xf32>
    %267 = arith.addf %265, %266 : vector<8x128xf32>
    %268 = arith.negf %267 : vector<8x128xf32>
    %269 = math.exp %268 : vector<8x128xf32>
    %cst_70 = arith.constant 1.000000e+00 : f32
    %270 = vector.broadcast %cst_70 : f32 to vector<8x128xf32>
    %271 = arith.addf %270, %269 : vector<8x128xf32>
    %272 = arith.divf %270, %271 : vector<8x128xf32>
    %273 = vector.extract_strided_slice %261 {offsets = [0, 128], sizes = [8, 128], strides = [1, 1]} : vector<8x384xf32> to vector<8x128xf32>
    %274 = vector.extract_strided_slice %264 {offsets = [0, 128], sizes = [8, 128], strides = [1, 1]} : vector<8x384xf32> to vector<8x128xf32>
    %275 = arith.addf %273, %274 : vector<8x128xf32>
    %276 = arith.negf %275 : vector<8x128xf32>
    %277 = math.exp %276 : vector<8x128xf32>
    %cst_71 = arith.constant 1.000000e+00 : f32
    %278 = vector.broadcast %cst_71 : f32 to vector<8x128xf32>
    %279 = arith.addf %278, %277 : vector<8x128xf32>
    %280 = arith.divf %278, %279 : vector<8x128xf32>
    %281 = vector.extract_strided_slice %261 {offsets = [0, 256], sizes = [8, 128], strides = [1, 1]} : vector<8x384xf32> to vector<8x128xf32>
    %282 = vector.extract_strided_slice %264 {offsets = [0, 256], sizes = [8, 128], strides = [1, 1]} : vector<8x384xf32> to vector<8x128xf32>
    %283 = arith.mulf %272, %282 : vector<8x128xf32>
    %284 = arith.addf %281, %283 : vector<8x128xf32>
    %285 = math.tanh %284 : vector<8x128xf32>
    %cst_72 = arith.constant 1.000000e+00 : f32
    %286 = vector.broadcast %cst_72 : f32 to vector<8x128xf32>
    %287 = arith.subf %286, %280 : vector<8x128xf32>
    %288 = arith.mulf %287, %285 : vector<8x128xf32>
    %289 = arith.mulf %280, %257 : vector<8x128xf32>
    %290 = arith.addf %288, %289 : vector<8x128xf32>
    %c4_i32 = arith.constant 4 : i32
    %291 = arith.index_cast %c4_i32 : i32 to index
    %c0_73 = arith.constant 0 : index
    %c0_74 = arith.constant 0 : index
    %292 = vector.load %arg16[%291, %c0_73, %c0_74] : memref<8x8x384xf32, #tpu.memory_space<vmem>>, vector<1x8x384xf32>
    %293 = vector.shape_cast %292 : vector<1x8x384xf32> to vector<8x384xf32>
    %294 = arith.truncf %290 : vector<8x128xf32> to vector<8x128xbf16>
    %cst_75 = arith.constant dense<0.000000e+00> : vector<8x384xf32>
    %295 = tpu.matmul %294, %2, %cst_75 {dimension_numbers = #tpu.dot_dimension_numbers<[1], [0], [0], [1], [0, 0, 1, 1], [], []>} : vector<8x128xbf16>, vector<128x384xbf16>, vector<8x384xf32> -> vector<8x384xf32>
    %296 = arith.addf %295, %23 : vector<8x384xf32>
    %297 = vector.extract_strided_slice %293 {offsets = [0, 0], sizes = [8, 128], strides = [1, 1]} : vector<8x384xf32> to vector<8x128xf32>
    %298 = vector.extract_strided_slice %296 {offsets = [0, 0], sizes = [8, 128], strides = [1, 1]} : vector<8x384xf32> to vector<8x128xf32>
    %299 = arith.addf %297, %298 : vector<8x128xf32>
    %300 = arith.negf %299 : vector<8x128xf32>
    %301 = math.exp %300 : vector<8x128xf32>
    %cst_76 = arith.constant 1.000000e+00 : f32
    %302 = vector.broadcast %cst_76 : f32 to vector<8x128xf32>
    %303 = arith.addf %302, %301 : vector<8x128xf32>
    %304 = arith.divf %302, %303 : vector<8x128xf32>
    %305 = vector.extract_strided_slice %293 {offsets = [0, 128], sizes = [8, 128], strides = [1, 1]} : vector<8x384xf32> to vector<8x128xf32>
    %306 = vector.extract_strided_slice %296 {offsets = [0, 128], sizes = [8, 128], strides = [1, 1]} : vector<8x384xf32> to vector<8x128xf32>
    %307 = arith.addf %305, %306 : vector<8x128xf32>
    %308 = arith.negf %307 : vector<8x128xf32>
    %309 = math.exp %308 : vector<8x128xf32>
    %cst_77 = arith.constant 1.000000e+00 : f32
    %310 = vector.broadcast %cst_77 : f32 to vector<8x128xf32>
    %311 = arith.addf %310, %309 : vector<8x128xf32>
    %312 = arith.divf %310, %311 : vector<8x128xf32>
    %313 = vector.extract_strided_slice %293 {offsets = [0, 256], sizes = [8, 128], strides = [1, 1]} : vector<8x384xf32> to vector<8x128xf32>
    %314 = vector.extract_strided_slice %296 {offsets = [0, 256], sizes = [8, 128], strides = [1, 1]} : vector<8x384xf32> to vector<8x128xf32>
    %315 = arith.mulf %304, %314 : vector<8x128xf32>
    %316 = arith.addf %313, %315 : vector<8x128xf32>
    %317 = math.tanh %316 : vector<8x128xf32>
    %cst_78 = arith.constant 1.000000e+00 : f32
    %318 = vector.broadcast %cst_78 : f32 to vector<8x128xf32>
    %319 = arith.subf %318, %312 : vector<8x128xf32>
    %320 = arith.mulf %319, %317 : vector<8x128xf32>
    %321 = arith.mulf %312, %290 : vector<8x128xf32>
    %322 = arith.addf %320, %321 : vector<8x128xf32>
    %323 = arith.mulf %322, %11 : vector<8x128xf32>
    %324 = arith.truncf %323 : vector<8x128xf32> to vector<8x128xbf16>
    %cst_79 = arith.constant dense<0.000000e+00> : vector<8x384xf32>
    %325 = tpu.matmul %324, %3, %cst_79 {dimension_numbers = #tpu.dot_dimension_numbers<[1], [0], [0], [1], [0, 0, 1, 1], [], []>} : vector<8x128xbf16>, vector<128x384xbf16>, vector<8x384xf32> -> vector<8x384xf32>
    %326 = arith.addf %325, %26 : vector<8x384xf32>
    %327 = arith.truncf %322 : vector<8x128xf32> to vector<8x128xbf16>
    %cst_80 = arith.constant dense<0.000000e+00> : vector<8x384xf32>
    %328 = tpu.matmul %327, %4, %cst_80 {dimension_numbers = #tpu.dot_dimension_numbers<[1], [0], [0], [1], [0, 0, 1, 1], [], []>} : vector<8x128xbf16>, vector<128x384xbf16>, vector<8x384xf32> -> vector<8x384xf32>
    %329 = arith.addf %328, %29 : vector<8x384xf32>
    %330 = vector.extract_strided_slice %326 {offsets = [0, 0], sizes = [8, 128], strides = [1, 1]} : vector<8x384xf32> to vector<8x128xf32>
    %331 = vector.extract_strided_slice %329 {offsets = [0, 0], sizes = [8, 128], strides = [1, 1]} : vector<8x384xf32> to vector<8x128xf32>
    %332 = arith.addf %330, %331 : vector<8x128xf32>
    %333 = arith.negf %332 : vector<8x128xf32>
    %334 = math.exp %333 : vector<8x128xf32>
    %cst_81 = arith.constant 1.000000e+00 : f32
    %335 = vector.broadcast %cst_81 : f32 to vector<8x128xf32>
    %336 = arith.addf %335, %334 : vector<8x128xf32>
    %337 = arith.divf %335, %336 : vector<8x128xf32>
    %338 = vector.extract_strided_slice %326 {offsets = [0, 128], sizes = [8, 128], strides = [1, 1]} : vector<8x384xf32> to vector<8x128xf32>
    %339 = vector.extract_strided_slice %329 {offsets = [0, 128], sizes = [8, 128], strides = [1, 1]} : vector<8x384xf32> to vector<8x128xf32>
    %340 = arith.addf %338, %339 : vector<8x128xf32>
    %341 = arith.negf %340 : vector<8x128xf32>
    %342 = math.exp %341 : vector<8x128xf32>
    %cst_82 = arith.constant 1.000000e+00 : f32
    %343 = vector.broadcast %cst_82 : f32 to vector<8x128xf32>
    %344 = arith.addf %343, %342 : vector<8x128xf32>
    %345 = arith.divf %343, %344 : vector<8x128xf32>
    %346 = vector.extract_strided_slice %326 {offsets = [0, 256], sizes = [8, 128], strides = [1, 1]} : vector<8x384xf32> to vector<8x128xf32>
    %347 = vector.extract_strided_slice %329 {offsets = [0, 256], sizes = [8, 128], strides = [1, 1]} : vector<8x384xf32> to vector<8x128xf32>
    %348 = arith.mulf %337, %347 : vector<8x128xf32>
    %349 = arith.addf %346, %348 : vector<8x128xf32>
    %350 = math.tanh %349 : vector<8x128xf32>
    %cst_83 = arith.constant 1.000000e+00 : f32
    %351 = vector.broadcast %cst_83 : f32 to vector<8x128xf32>
    %352 = arith.subf %351, %345 : vector<8x128xf32>
    %353 = arith.mulf %352, %350 : vector<8x128xf32>
    %354 = arith.mulf %345, %322 : vector<8x128xf32>
    %355 = arith.addf %353, %354 : vector<8x128xf32>
    %c5_i32 = arith.constant 5 : i32
    %356 = arith.index_cast %c5_i32 : i32 to index
    %c0_84 = arith.constant 0 : index
    %c0_85 = arith.constant 0 : index
    %357 = vector.load %arg16[%356, %c0_84, %c0_85] : memref<8x8x384xf32, #tpu.memory_space<vmem>>, vector<1x8x384xf32>
    %358 = vector.shape_cast %357 : vector<1x8x384xf32> to vector<8x384xf32>
    %359 = arith.truncf %355 : vector<8x128xf32> to vector<8x128xbf16>
    %cst_86 = arith.constant dense<0.000000e+00> : vector<8x384xf32>
    %360 = tpu.matmul %359, %2, %cst_86 {dimension_numbers = #tpu.dot_dimension_numbers<[1], [0], [0], [1], [0, 0, 1, 1], [], []>} : vector<8x128xbf16>, vector<128x384xbf16>, vector<8x384xf32> -> vector<8x384xf32>
    %361 = arith.addf %360, %23 : vector<8x384xf32>
    %362 = vector.extract_strided_slice %358 {offsets = [0, 0], sizes = [8, 128], strides = [1, 1]} : vector<8x384xf32> to vector<8x128xf32>
    %363 = vector.extract_strided_slice %361 {offsets = [0, 0], sizes = [8, 128], strides = [1, 1]} : vector<8x384xf32> to vector<8x128xf32>
    %364 = arith.addf %362, %363 : vector<8x128xf32>
    %365 = arith.negf %364 : vector<8x128xf32>
    %366 = math.exp %365 : vector<8x128xf32>
    %cst_87 = arith.constant 1.000000e+00 : f32
    %367 = vector.broadcast %cst_87 : f32 to vector<8x128xf32>
    %368 = arith.addf %367, %366 : vector<8x128xf32>
    %369 = arith.divf %367, %368 : vector<8x128xf32>
    %370 = vector.extract_strided_slice %358 {offsets = [0, 128], sizes = [8, 128], strides = [1, 1]} : vector<8x384xf32> to vector<8x128xf32>
    %371 = vector.extract_strided_slice %361 {offsets = [0, 128], sizes = [8, 128], strides = [1, 1]} : vector<8x384xf32> to vector<8x128xf32>
    %372 = arith.addf %370, %371 : vector<8x128xf32>
    %373 = arith.negf %372 : vector<8x128xf32>
    %374 = math.exp %373 : vector<8x128xf32>
    %cst_88 = arith.constant 1.000000e+00 : f32
    %375 = vector.broadcast %cst_88 : f32 to vector<8x128xf32>
    %376 = arith.addf %375, %374 : vector<8x128xf32>
    %377 = arith.divf %375, %376 : vector<8x128xf32>
    %378 = vector.extract_strided_slice %358 {offsets = [0, 256], sizes = [8, 128], strides = [1, 1]} : vector<8x384xf32> to vector<8x128xf32>
    %379 = vector.extract_strided_slice %361 {offsets = [0, 256], sizes = [8, 128], strides = [1, 1]} : vector<8x384xf32> to vector<8x128xf32>
    %380 = arith.mulf %369, %379 : vector<8x128xf32>
    %381 = arith.addf %378, %380 : vector<8x128xf32>
    %382 = math.tanh %381 : vector<8x128xf32>
    %cst_89 = arith.constant 1.000000e+00 : f32
    %383 = vector.broadcast %cst_89 : f32 to vector<8x128xf32>
    %384 = arith.subf %383, %377 : vector<8x128xf32>
    %385 = arith.mulf %384, %382 : vector<8x128xf32>
    %386 = arith.mulf %377, %355 : vector<8x128xf32>
    %387 = arith.addf %385, %386 : vector<8x128xf32>
    %388 = arith.mulf %387, %11 : vector<8x128xf32>
    %389 = arith.truncf %388 : vector<8x128xf32> to vector<8x128xbf16>
    %cst_90 = arith.constant dense<0.000000e+00> : vector<8x384xf32>
    %390 = tpu.matmul %389, %3, %cst_90 {dimension_numbers = #tpu.dot_dimension_numbers<[1], [0], [0], [1], [0, 0, 1, 1], [], []>} : vector<8x128xbf16>, vector<128x384xbf16>, vector<8x384xf32> -> vector<8x384xf32>
    %391 = arith.addf %390, %26 : vector<8x384xf32>
    %392 = arith.truncf %387 : vector<8x128xf32> to vector<8x128xbf16>
    %cst_91 = arith.constant dense<0.000000e+00> : vector<8x384xf32>
    %393 = tpu.matmul %392, %4, %cst_91 {dimension_numbers = #tpu.dot_dimension_numbers<[1], [0], [0], [1], [0, 0, 1, 1], [], []>} : vector<8x128xbf16>, vector<128x384xbf16>, vector<8x384xf32> -> vector<8x384xf32>
    %394 = arith.addf %393, %29 : vector<8x384xf32>
    %395 = vector.extract_strided_slice %391 {offsets = [0, 0], sizes = [8, 128], strides = [1, 1]} : vector<8x384xf32> to vector<8x128xf32>
    %396 = vector.extract_strided_slice %394 {offsets = [0, 0], sizes = [8, 128], strides = [1, 1]} : vector<8x384xf32> to vector<8x128xf32>
    %397 = arith.addf %395, %396 : vector<8x128xf32>
    %398 = arith.negf %397 : vector<8x128xf32>
    %399 = math.exp %398 : vector<8x128xf32>
    %cst_92 = arith.constant 1.000000e+00 : f32
    %400 = vector.broadcast %cst_92 : f32 to vector<8x128xf32>
    %401 = arith.addf %400, %399 : vector<8x128xf32>
    %402 = arith.divf %400, %401 : vector<8x128xf32>
    %403 = vector.extract_strided_slice %391 {offsets = [0, 128], sizes = [8, 128], strides = [1, 1]} : vector<8x384xf32> to vector<8x128xf32>
    %404 = vector.extract_strided_slice %394 {offsets = [0, 128], sizes = [8, 128], strides = [1, 1]} : vector<8x384xf32> to vector<8x128xf32>
    %405 = arith.addf %403, %404 : vector<8x128xf32>
    %406 = arith.negf %405 : vector<8x128xf32>
    %407 = math.exp %406 : vector<8x128xf32>
    %cst_93 = arith.constant 1.000000e+00 : f32
    %408 = vector.broadcast %cst_93 : f32 to vector<8x128xf32>
    %409 = arith.addf %408, %407 : vector<8x128xf32>
    %410 = arith.divf %408, %409 : vector<8x128xf32>
    %411 = vector.extract_strided_slice %391 {offsets = [0, 256], sizes = [8, 128], strides = [1, 1]} : vector<8x384xf32> to vector<8x128xf32>
    %412 = vector.extract_strided_slice %394 {offsets = [0, 256], sizes = [8, 128], strides = [1, 1]} : vector<8x384xf32> to vector<8x128xf32>
    %413 = arith.mulf %402, %412 : vector<8x128xf32>
    %414 = arith.addf %411, %413 : vector<8x128xf32>
    %415 = math.tanh %414 : vector<8x128xf32>
    %cst_94 = arith.constant 1.000000e+00 : f32
    %416 = vector.broadcast %cst_94 : f32 to vector<8x128xf32>
    %417 = arith.subf %416, %410 : vector<8x128xf32>
    %418 = arith.mulf %417, %415 : vector<8x128xf32>
    %419 = arith.mulf %410, %387 : vector<8x128xf32>
    %420 = arith.addf %418, %419 : vector<8x128xf32>
    %c6_i32 = arith.constant 6 : i32
    %421 = arith.index_cast %c6_i32 : i32 to index
    %c0_95 = arith.constant 0 : index
    %c0_96 = arith.constant 0 : index
    %422 = vector.load %arg16[%421, %c0_95, %c0_96] : memref<8x8x384xf32, #tpu.memory_space<vmem>>, vector<1x8x384xf32>
    %423 = vector.shape_cast %422 : vector<1x8x384xf32> to vector<8x384xf32>
    %424 = arith.truncf %420 : vector<8x128xf32> to vector<8x128xbf16>
    %cst_97 = arith.constant dense<0.000000e+00> : vector<8x384xf32>
    %425 = tpu.matmul %424, %2, %cst_97 {dimension_numbers = #tpu.dot_dimension_numbers<[1], [0], [0], [1], [0, 0, 1, 1], [], []>} : vector<8x128xbf16>, vector<128x384xbf16>, vector<8x384xf32> -> vector<8x384xf32>
    %426 = arith.addf %425, %23 : vector<8x384xf32>
    %427 = vector.extract_strided_slice %423 {offsets = [0, 0], sizes = [8, 128], strides = [1, 1]} : vector<8x384xf32> to vector<8x128xf32>
    %428 = vector.extract_strided_slice %426 {offsets = [0, 0], sizes = [8, 128], strides = [1, 1]} : vector<8x384xf32> to vector<8x128xf32>
    %429 = arith.addf %427, %428 : vector<8x128xf32>
    %430 = arith.negf %429 : vector<8x128xf32>
    %431 = math.exp %430 : vector<8x128xf32>
    %cst_98 = arith.constant 1.000000e+00 : f32
    %432 = vector.broadcast %cst_98 : f32 to vector<8x128xf32>
    %433 = arith.addf %432, %431 : vector<8x128xf32>
    %434 = arith.divf %432, %433 : vector<8x128xf32>
    %435 = vector.extract_strided_slice %423 {offsets = [0, 128], sizes = [8, 128], strides = [1, 1]} : vector<8x384xf32> to vector<8x128xf32>
    %436 = vector.extract_strided_slice %426 {offsets = [0, 128], sizes = [8, 128], strides = [1, 1]} : vector<8x384xf32> to vector<8x128xf32>
    %437 = arith.addf %435, %436 : vector<8x128xf32>
    %438 = arith.negf %437 : vector<8x128xf32>
    %439 = math.exp %438 : vector<8x128xf32>
    %cst_99 = arith.constant 1.000000e+00 : f32
    %440 = vector.broadcast %cst_99 : f32 to vector<8x128xf32>
    %441 = arith.addf %440, %439 : vector<8x128xf32>
    %442 = arith.divf %440, %441 : vector<8x128xf32>
    %443 = vector.extract_strided_slice %423 {offsets = [0, 256], sizes = [8, 128], strides = [1, 1]} : vector<8x384xf32> to vector<8x128xf32>
    %444 = vector.extract_strided_slice %426 {offsets = [0, 256], sizes = [8, 128], strides = [1, 1]} : vector<8x384xf32> to vector<8x128xf32>
    %445 = arith.mulf %434, %444 : vector<8x128xf32>
    %446 = arith.addf %443, %445 : vector<8x128xf32>
    %447 = math.tanh %446 : vector<8x128xf32>
    %cst_100 = arith.constant 1.000000e+00 : f32
    %448 = vector.broadcast %cst_100 : f32 to vector<8x128xf32>
    %449 = arith.subf %448, %442 : vector<8x128xf32>
    %450 = arith.mulf %449, %447 : vector<8x128xf32>
    %451 = arith.mulf %442, %420 : vector<8x128xf32>
    %452 = arith.addf %450, %451 : vector<8x128xf32>
    %453 = arith.mulf %452, %11 : vector<8x128xf32>
    %454 = arith.truncf %453 : vector<8x128xf32> to vector<8x128xbf16>
    %cst_101 = arith.constant dense<0.000000e+00> : vector<8x384xf32>
    %455 = tpu.matmul %454, %3, %cst_101 {dimension_numbers = #tpu.dot_dimension_numbers<[1], [0], [0], [1], [0, 0, 1, 1], [], []>} : vector<8x128xbf16>, vector<128x384xbf16>, vector<8x384xf32> -> vector<8x384xf32>
    %456 = arith.addf %455, %26 : vector<8x384xf32>
    %457 = arith.truncf %452 : vector<8x128xf32> to vector<8x128xbf16>
    %cst_102 = arith.constant dense<0.000000e+00> : vector<8x384xf32>
    %458 = tpu.matmul %457, %4, %cst_102 {dimension_numbers = #tpu.dot_dimension_numbers<[1], [0], [0], [1], [0, 0, 1, 1], [], []>} : vector<8x128xbf16>, vector<128x384xbf16>, vector<8x384xf32> -> vector<8x384xf32>
    %459 = arith.addf %458, %29 : vector<8x384xf32>
    %460 = vector.extract_strided_slice %456 {offsets = [0, 0], sizes = [8, 128], strides = [1, 1]} : vector<8x384xf32> to vector<8x128xf32>
    %461 = vector.extract_strided_slice %459 {offsets = [0, 0], sizes = [8, 128], strides = [1, 1]} : vector<8x384xf32> to vector<8x128xf32>
    %462 = arith.addf %460, %461 : vector<8x128xf32>
    %463 = arith.negf %462 : vector<8x128xf32>
    %464 = math.exp %463 : vector<8x128xf32>
    %cst_103 = arith.constant 1.000000e+00 : f32
    %465 = vector.broadcast %cst_103 : f32 to vector<8x128xf32>
    %466 = arith.addf %465, %464 : vector<8x128xf32>
    %467 = arith.divf %465, %466 : vector<8x128xf32>
    %468 = vector.extract_strided_slice %456 {offsets = [0, 128], sizes = [8, 128], strides = [1, 1]} : vector<8x384xf32> to vector<8x128xf32>
    %469 = vector.extract_strided_slice %459 {offsets = [0, 128], sizes = [8, 128], strides = [1, 1]} : vector<8x384xf32> to vector<8x128xf32>
    %470 = arith.addf %468, %469 : vector<8x128xf32>
    %471 = arith.negf %470 : vector<8x128xf32>
    %472 = math.exp %471 : vector<8x128xf32>
    %cst_104 = arith.constant 1.000000e+00 : f32
    %473 = vector.broadcast %cst_104 : f32 to vector<8x128xf32>
    %474 = arith.addf %473, %472 : vector<8x128xf32>
    %475 = arith.divf %473, %474 : vector<8x128xf32>
    %476 = vector.extract_strided_slice %456 {offsets = [0, 256], sizes = [8, 128], strides = [1, 1]} : vector<8x384xf32> to vector<8x128xf32>
    %477 = vector.extract_strided_slice %459 {offsets = [0, 256], sizes = [8, 128], strides = [1, 1]} : vector<8x384xf32> to vector<8x128xf32>
    %478 = arith.mulf %467, %477 : vector<8x128xf32>
    %479 = arith.addf %476, %478 : vector<8x128xf32>
    %480 = math.tanh %479 : vector<8x128xf32>
    %cst_105 = arith.constant 1.000000e+00 : f32
    %481 = vector.broadcast %cst_105 : f32 to vector<8x128xf32>
    %482 = arith.subf %481, %475 : vector<8x128xf32>
    %483 = arith.mulf %482, %480 : vector<8x128xf32>
    %484 = arith.mulf %475, %452 : vector<8x128xf32>
    %485 = arith.addf %483, %484 : vector<8x128xf32>
    %c7_i32 = arith.constant 7 : i32
    %486 = arith.index_cast %c7_i32 : i32 to index
    %c0_106 = arith.constant 0 : index
    %c0_107 = arith.constant 0 : index
    %487 = vector.load %arg16[%486, %c0_106, %c0_107] : memref<8x8x384xf32, #tpu.memory_space<vmem>>, vector<1x8x384xf32>
    %488 = vector.shape_cast %487 : vector<1x8x384xf32> to vector<8x384xf32>
    %489 = arith.truncf %485 : vector<8x128xf32> to vector<8x128xbf16>
    %cst_108 = arith.constant dense<0.000000e+00> : vector<8x384xf32>
    %490 = tpu.matmul %489, %2, %cst_108 {dimension_numbers = #tpu.dot_dimension_numbers<[1], [0], [0], [1], [0, 0, 1, 1], [], []>} : vector<8x128xbf16>, vector<128x384xbf16>, vector<8x384xf32> -> vector<8x384xf32>
    %491 = arith.addf %490, %23 : vector<8x384xf32>
    %492 = vector.extract_strided_slice %488 {offsets = [0, 0], sizes = [8, 128], strides = [1, 1]} : vector<8x384xf32> to vector<8x128xf32>
    %493 = vector.extract_strided_slice %491 {offsets = [0, 0], sizes = [8, 128], strides = [1, 1]} : vector<8x384xf32> to vector<8x128xf32>
    %494 = arith.addf %492, %493 : vector<8x128xf32>
    %495 = arith.negf %494 : vector<8x128xf32>
    %496 = math.exp %495 : vector<8x128xf32>
    %cst_109 = arith.constant 1.000000e+00 : f32
    %497 = vector.broadcast %cst_109 : f32 to vector<8x128xf32>
    %498 = arith.addf %497, %496 : vector<8x128xf32>
    %499 = arith.divf %497, %498 : vector<8x128xf32>
    %500 = vector.extract_strided_slice %488 {offsets = [0, 128], sizes = [8, 128], strides = [1, 1]} : vector<8x384xf32> to vector<8x128xf32>
    %501 = vector.extract_strided_slice %491 {offsets = [0, 128], sizes = [8, 128], strides = [1, 1]} : vector<8x384xf32> to vector<8x128xf32>
    %502 = arith.addf %500, %501 : vector<8x128xf32>
    %503 = arith.negf %502 : vector<8x128xf32>
    %504 = math.exp %503 : vector<8x128xf32>
    %cst_110 = arith.constant 1.000000e+00 : f32
    %505 = vector.broadcast %cst_110 : f32 to vector<8x128xf32>
    %506 = arith.addf %505, %504 : vector<8x128xf32>
    %507 = arith.divf %505, %506 : vector<8x128xf32>
    %508 = vector.extract_strided_slice %488 {offsets = [0, 256], sizes = [8, 128], strides = [1, 1]} : vector<8x384xf32> to vector<8x128xf32>
    %509 = vector.extract_strided_slice %491 {offsets = [0, 256], sizes = [8, 128], strides = [1, 1]} : vector<8x384xf32> to vector<8x128xf32>
    %510 = arith.mulf %499, %509 : vector<8x128xf32>
    %511 = arith.addf %508, %510 : vector<8x128xf32>
    %512 = math.tanh %511 : vector<8x128xf32>
    %cst_111 = arith.constant 1.000000e+00 : f32
    %513 = vector.broadcast %cst_111 : f32 to vector<8x128xf32>
    %514 = arith.subf %513, %507 : vector<8x128xf32>
    %515 = arith.mulf %514, %512 : vector<8x128xf32>
    %516 = arith.mulf %507, %485 : vector<8x128xf32>
    %517 = arith.addf %515, %516 : vector<8x128xf32>
    %518 = arith.mulf %517, %11 : vector<8x128xf32>
    %519 = arith.truncf %518 : vector<8x128xf32> to vector<8x128xbf16>
    %cst_112 = arith.constant dense<0.000000e+00> : vector<8x384xf32>
    %520 = tpu.matmul %519, %3, %cst_112 {dimension_numbers = #tpu.dot_dimension_numbers<[1], [0], [0], [1], [0, 0, 1, 1], [], []>} : vector<8x128xbf16>, vector<128x384xbf16>, vector<8x384xf32> -> vector<8x384xf32>
    %521 = arith.addf %520, %26 : vector<8x384xf32>
    %522 = arith.truncf %517 : vector<8x128xf32> to vector<8x128xbf16>
    %cst_113 = arith.constant dense<0.000000e+00> : vector<8x384xf32>
    %523 = tpu.matmul %522, %4, %cst_113 {dimension_numbers = #tpu.dot_dimension_numbers<[1], [0], [0], [1], [0, 0, 1, 1], [], []>} : vector<8x128xbf16>, vector<128x384xbf16>, vector<8x384xf32> -> vector<8x384xf32>
    %524 = arith.addf %523, %29 : vector<8x384xf32>
    %525 = vector.extract_strided_slice %521 {offsets = [0, 0], sizes = [8, 128], strides = [1, 1]} : vector<8x384xf32> to vector<8x128xf32>
    %526 = vector.extract_strided_slice %524 {offsets = [0, 0], sizes = [8, 128], strides = [1, 1]} : vector<8x384xf32> to vector<8x128xf32>
    %527 = arith.addf %525, %526 : vector<8x128xf32>
    %528 = arith.negf %527 : vector<8x128xf32>
    %529 = math.exp %528 : vector<8x128xf32>
    %cst_114 = arith.constant 1.000000e+00 : f32
    %530 = vector.broadcast %cst_114 : f32 to vector<8x128xf32>
    %531 = arith.addf %530, %529 : vector<8x128xf32>
    %532 = arith.divf %530, %531 : vector<8x128xf32>
    %533 = vector.extract_strided_slice %521 {offsets = [0, 128], sizes = [8, 128], strides = [1, 1]} : vector<8x384xf32> to vector<8x128xf32>
    %534 = vector.extract_strided_slice %524 {offsets = [0, 128], sizes = [8, 128], strides = [1, 1]} : vector<8x384xf32> to vector<8x128xf32>
    %535 = arith.addf %533, %534 : vector<8x128xf32>
    %536 = arith.negf %535 : vector<8x128xf32>
    %537 = math.exp %536 : vector<8x128xf32>
    %cst_115 = arith.constant 1.000000e+00 : f32
    %538 = vector.broadcast %cst_115 : f32 to vector<8x128xf32>
    %539 = arith.addf %538, %537 : vector<8x128xf32>
    %540 = arith.divf %538, %539 : vector<8x128xf32>
    %541 = vector.extract_strided_slice %521 {offsets = [0, 256], sizes = [8, 128], strides = [1, 1]} : vector<8x384xf32> to vector<8x128xf32>
    %542 = vector.extract_strided_slice %524 {offsets = [0, 256], sizes = [8, 128], strides = [1, 1]} : vector<8x384xf32> to vector<8x128xf32>
    %543 = arith.mulf %532, %542 : vector<8x128xf32>
    %544 = arith.addf %541, %543 : vector<8x128xf32>
    %545 = math.tanh %544 : vector<8x128xf32>
    %cst_116 = arith.constant 1.000000e+00 : f32
    %546 = vector.broadcast %cst_116 : f32 to vector<8x128xf32>
    %547 = arith.subf %546, %540 : vector<8x128xf32>
    %548 = arith.mulf %547, %545 : vector<8x128xf32>
    %549 = arith.mulf %540, %517 : vector<8x128xf32>
    %550 = arith.addf %548, %549 : vector<8x128xf32>
    %c8_i32 = arith.constant 8 : i32
    %c0_117 = arith.constant 0 : index
    %c0_118 = arith.constant 0 : index
    %551 = vector.load %arg13[%c0_117, %c0_118] : memref<1x128xf32, #tpu.memory_space<vmem>>, vector<1x128xf32>
    %552 = vector.broadcast %551 : vector<1x128xf32> to vector<8x128xf32>
    %553 = arith.mulf %550, %552 : vector<8x128xf32>
    %cst_119 = arith.constant dense<0.000000e+00> : vector<8xf32>
    %554 = vector.multi_reduction <add>, %553, %cst_119 [1] : vector<8x128xf32> to vector<8xf32>
    %555 = vector.shape_cast %554 : vector<8xf32> to vector<8x1xf32>
    %c0_120 = arith.constant 0 : index
    %c0_121 = arith.constant 0 : index
    %556 = vector.load %arg14[%c0_120, %c0_121] : memref<1x1xf32, #tpu.memory_space<vmem>>, vector<1x1xf32>
    %557 = vector.broadcast %556 : vector<1x1xf32> to vector<8x1xf32>
    %558 = arith.addf %555, %557 : vector<8x1xf32>
    %559 = arith.negf %558 : vector<8x1xf32>
    %560 = math.exp %559 : vector<8x1xf32>
    %cst_122 = arith.constant 1.000000e+00 : f32
    %561 = vector.broadcast %cst_122 : f32 to vector<8x1xf32>
    %562 = arith.addf %561, %560 : vector<8x1xf32>
    %563 = arith.divf %561, %562 : vector<8x1xf32>
    %c0_123 = arith.constant 0 : index
    %c0_124 = arith.constant 0 : index
    %564 = vector.load %arg15[%c0_123, %c0_124] : memref<8x1xf32, #tpu.memory_space<vmem>>, vector<8x1xf32>
    tpu.vector_store %arg15[%c0_123, %c0_124], %563 {strides = array<i32>} : memref<8x1xf32, #tpu.memory_space<vmem>>, vector<8x1xf32>,
    return
  }
  func.func @transform_0(%arg0: i32) -> (i32, i32, i32) {
    %c0_i32 = arith.constant 0 : i32
    %c0_i32_0 = arith.constant 0 : i32
    %c0_i32_1 = arith.constant 0 : i32
    return %c0_i32, %arg0, %c0_i32_0 : i32, i32, i32
  }
  func.func @transform_1(%arg0: i32) -> (i32, i32) {
    %c0_i32 = arith.constant 0 : i32
    %c0_i32_0 = arith.constant 0 : i32
    return %arg0, %c0_i32 : i32, i32
  }
  func.func @transform_2(%arg0: i32) -> (i32, i32) {
    %c0_i32 = arith.constant 0 : i32
    %c0_i32_0 = arith.constant 0 : i32
    %c0_i32_1 = arith.constant 0 : i32
    return %c0_i32, %c0_i32_0 : i32, i32
  }
  func.func @transform_3(%arg0: i32) -> (i32, i32) {
    %c0_i32 = arith.constant 0 : i32
    %c0_i32_0 = arith.constant 0 : i32
    %c0_i32_1 = arith.constant 0 : i32
    return %c0_i32, %c0_i32_0 : i32, i32
  }
  func.func @transform_4(%arg0: i32) -> (i32, i32) {
    %c0_i32 = arith.constant 0 : i32
    %c0_i32_0 = arith.constant 0 : i32
    %c0_i32_1 = arith.constant 0 : i32
    return %c0_i32, %c0_i32_0 : i32, i32
  }
  func.func @transform_5(%arg0: i32) -> (i32, i32) {
    %c0_i32 = arith.constant 0 : i32
    %c0_i32_0 = arith.constant 0 : i32
    %c0_i32_1 = arith.constant 0 : i32
    return %c0_i32, %c0_i32_0 : i32, i32
  }
  func.func @transform_6(%arg0: i32) -> (i32, i32) {
    %c0_i32 = arith.constant 0 : i32
    %c0_i32_0 = arith.constant 0 : i32
    %c0_i32_1 = arith.constant 0 : i32
    return %c0_i32, %c0_i32_0 : i32, i32
  }
  func.func @transform_7(%arg0: i32) -> (i32, i32) {
    %c0_i32 = arith.constant 0 : i32
    %c0_i32_0 = arith.constant 0 : i32
    %c0_i32_1 = arith.constant 0 : i32
    return %c0_i32, %c0_i32_0 : i32, i32
  }
  func.func @transform_8(%arg0: i32) -> (i32, i32) {
    %c0_i32 = arith.constant 0 : i32
    %c0_i32_0 = arith.constant 0 : i32
    %c0_i32_1 = arith.constant 0 : i32
    return %c0_i32, %c0_i32_0 : i32, i32
  }
  func.func @transform_9(%arg0: i32) -> (i32, i32) {
    %c0_i32 = arith.constant 0 : i32
    %c0_i32_0 = arith.constant 0 : i32
    %c0_i32_1 = arith.constant 0 : i32
    return %c0_i32, %c0_i32_0 : i32, i32
  }
  func.func @transform_10(%arg0: i32) -> (i32, i32) {
    %c0_i32 = arith.constant 0 : i32
    %c0_i32_0 = arith.constant 0 : i32
    %c0_i32_1 = arith.constant 0 : i32
    return %c0_i32, %c0_i32_0 : i32, i32
  }
  func.func @transform_11(%arg0: i32) -> (i32, i32) {
    %c0_i32 = arith.constant 0 : i32
    %c0_i32_0 = arith.constant 0 : i32
    %c0_i32_1 = arith.constant 0 : i32
    return %c0_i32, %c0_i32_0 : i32, i32
  }
  func.func @transform_12(%arg0: i32) -> (i32, i32) {
    %c0_i32 = arith.constant 0 : i32
    %c0_i32_0 = arith.constant 0 : i32
    %c0_i32_1 = arith.constant 0 : i32
    return %c0_i32, %c0_i32_0 : i32, i32
  }
  func.func @transform_13(%arg0: i32) -> (i32, i32) {
    %c0_i32 = arith.constant 0 : i32
    %c0_i32_0 = arith.constant 0 : i32
    %c0_i32_1 = arith.constant 0 : i32
    return %c0_i32, %c0_i32_0 : i32, i32
  }
  func.func @transform_14(%arg0: i32) -> (i32, i32) {
    %c0_i32 = arith.constant 0 : i32
    %c0_i32_0 = arith.constant 0 : i32
    return %arg0, %c0_i32 : i32, i32
  }
}

</mosaic_0001>

<llo_original>
// kernel: tpu_custom_call.1
$region0: #{tpu_custom_call.1}
  #allocation0 [shape = 'u32[]', space=smem, size = 0x4, offset = 0x4, fixed_abs, tag = 'smem constant byte address 0x4 - core index']
  #allocation1 [shape = 'u32[144,128]{1,0:T(1,128)}', space=vmem, size = 0x12000, scoped, tag = 'internal scratch']
  #allocation2 [shape = 'f32[8,8,384]{2,1,0:T(8,128)}', space=vmem, size = 0x18000, scoped, tag = 'scratch operand']
  #allocation3 [shape = 'f32[1,1]{1,0:T(1,128)S(1)}', space=vmem, size = 0x200, scoped, tag = 'scoped memory for tpu_custom_call.1']
  %s0 = inlined_call_operand.hbm [shape: f32[8,8,128], index: 0, kind: input, shape index: {}]
  %s1 = inlined_call_operand.hbm [shape: f32[8,16], index: 1, kind: input, shape index: {}]
  %s2 = inlined_call_operand.vmem [shape: bf16[16,128], index: 2, kind: input, shape index: {}]
  %s3 = inlined_call_operand.vmem [shape: f32[1,128], index: 3, kind: input, shape index: {}]
  %s4 = inlined_call_operand.hbm [shape: bf16[128,384], index: 4, kind: input, shape index: {}]
  %s5 = inlined_call_operand.vmem [shape: f32[1,384], index: 5, kind: input, shape index: {}]
  %s6 = inlined_call_operand.hbm [shape: bf16[128,384], index: 6, kind: input, shape index: {}]
  %s7 = inlined_call_operand.vmem [shape: f32[1,384], index: 7, kind: input, shape index: {}]
  %s8 = inlined_call_operand.hbm [shape: bf16[128,384], index: 8, kind: input, shape index: {}]
  %s9 = inlined_call_operand.vmem [shape: f32[1,384], index: 9, kind: input, shape index: {}]
  %s10 = inlined_call_operand.hbm [shape: bf16[128,384], index: 10, kind: input, shape index: {}]
  %s11 = inlined_call_operand.vmem [shape: f32[1,384], index: 11, kind: input, shape index: {}]
  %s12 = inlined_call_operand.vmem [shape: f32[1,128], index: 12, kind: input, shape index: {}]
  %s13 = inlined_call_operand.<no memory space> [shape: f32[1,1], index: 13, kind: input, shape index: {}]
  %s14 = inlined_call_operand.vmem [shape: f32[8,1], index: 14, kind: output, shape index: {}]
  %s15 = sld [smem:[#allocation0]]
  $region90: #{tpu_custom_call.1} parent=0
    _
  %s17 = ssub.s32 1, %s15
  %s18 = scalar_select 0, %s17, %s15
  %v19 = vstv %s13
  %20 = vst [vmem:[#allocation3] sm:$0x1] %v19
  $region1: #{tpu_custom_call.1} parent=0
    #allocation4 [shape = 'u8[32768]{0}', space=vmem, size = 0x8000, scoped, tag = 'input window, operand 0, single buffered']
    #allocation5 [shape = 's32[1]{0}', space=sflag, size = 0x4, scoped, tag = 'scoped memory for tpu_custom_call.1']
    #allocation6 [shape = 'u8[4096]{0}', space=vmem, size = 0x1000, scoped, tag = 'input window, operand 1, single buffered']
    #allocation7 [shape = 's32[1]{0}', space=sflag, size = 0x4, scoped, tag = 'scoped memory for tpu_custom_call.1']
    #allocation8 [shape = 'u8[98304]{0}', space=vmem, size = 0x18000, scoped, tag = 'input window, operand 4, single buffered']
    #allocation9 [shape = 'u8[98304]{0}', space=vmem, size = 0x18000, scoped, tag = 'input window, operand 6, single buffered']
    #allocation10 [shape = 's32[1]{0}', space=sflag, size = 0x4, scoped, tag = 'scoped memory for tpu_custom_call.1']
    #allocation11 [shape = 'u8[98304]{0}', space=vmem, size = 0x18000, scoped, tag = 'input window, operand 8, single buffered']
    #allocation12 [shape = 'u8[98304]{0}', space=vmem, size = 0x18000, scoped, tag = 'input window, operand 10, single buffered']
    #allocation13 [shape = 's32[1]{0}', space=sflag, size = 0x4, scoped, tag = 'scoped memory for tpu_custom_call.1']
    %21 = vsyncpa [#allocation5], 0
    %22 = vsyncpa [#allocation7], 0
    %23 = vsyncpa [#allocation10], 0
    %24 = vsyncpa [#allocation13], 0
    // Predicated region
    $region2: #{tpu_custom_call.1} parent=1 // pred_check
      _
    $region3: #{tpu_custom_call.1} parent=1 // pred_check_branch
      %26 = sbr.rel (0) target = $region5
    $region4: #{tpu_custom_call.1} parent=1 // pred_region
      %s28 = ssub.s32 1024, 1024
      %29 = vsyncadd [#allocation5], %s28
      %s30 = sshll.u32 [#allocation4], 4
      %s31 = int_to_ptr.vmem [resolvable:$true] %s30
      %36 = dma.hbm_to_vmem [thread:$0]  %s0, 1024, %s31, [#allocation5], 128, 128, 8
    $region5: #{tpu_custom_call.1} parent=1 // pred_fallthru
      _
    // Predicated region
    $region6: #{tpu_custom_call.1} parent=1 // pred_check
      _
    $region7: #{tpu_custom_call.1} parent=1 // pred_check_branch
      %38 = sbr.rel (0) target = $region9
    $region8: #{tpu_custom_call.1} parent=1 // pred_region
      %s40 = ssub.s32 128, 128
      %41 = vsyncadd [#allocation7], %s40
      %s43 = sshll.u32 [#allocation6], 4
      %s44 = int_to_ptr.vmem [resolvable:$true] %s43
      %46 = dma.hbm_to_vmem [thread:$0]  %s1, 128, %s44, [#allocation7]
    $region9: #{tpu_custom_call.1} parent=1 // pred_fallthru
      _
    // Predicated region
    $region10: #{tpu_custom_call.1} parent=1 // pred_check
      _
    $region11: #{tpu_custom_call.1} parent=1 // pred_check_branch
      %48 = sbr.rel (0) target = $region13
    $region12: #{tpu_custom_call.1} parent=1 // pred_region
      _
    $region13: #{tpu_custom_call.1} parent=1 // pred_fallthru
      _
    // Predicated region
    $region14: #{tpu_custom_call.1} parent=1 // pred_check
      _
    $region15: #{tpu_custom_call.1} parent=1 // pred_check_branch
      %50 = sbr.rel (0) target = $region17
    $region16: #{tpu_custom_call.1} parent=1 // pred_region
      _
    $region17: #{tpu_custom_call.1} parent=1 // pred_fallthru
      _
    // Predicated region
    $region18: #{tpu_custom_call.1} parent=1 // pred_check
      _
    $region19: #{tpu_custom_call.1} parent=1 // pred_check_branch
      %52 = sbr.rel (0) target = $region21
    $region20: #{tpu_custom_call.1} parent=1 // pred_region
      %s54 = ssub.s32 3072, 3072
      %55 = vsyncadd [#allocation7], %s54
      %s56 = sshll.u32 [#allocation8], 4
      %s57 = int_to_ptr.vmem [resolvable:$true] %s56
      %62 = dma.hbm_to_vmem [thread:$0]  %s4, 3072, %s57, [#allocation7], 192, 192, 12
    $region21: #{tpu_custom_call.1} parent=1 // pred_fallthru
      _
    // Predicated region
    $region22: #{tpu_custom_call.1} parent=1 // pred_check
      _
    $region23: #{tpu_custom_call.1} parent=1 // pred_check_branch
      %64 = sbr.rel (0) target = $region25
    $region24: #{tpu_custom_call.1} parent=1 // pred_region
      _
    $region25: #{tpu_custom_call.1} parent=1 // pred_fallthru
      _
    // Predicated region
    $region26: #{tpu_custom_call.1} parent=1 // pred_check
      _
    $region27: #{tpu_custom_call.1} parent=1 // pred_check_branch
      %66 = sbr.rel (0) target = $region29
    $region28: #{tpu_custom_call.1} parent=1 // pred_region
      %s68 = ssub.s32 3072, 3072
      %69 = vsyncadd [#allocation10], %s68
      %s70 = sshll.u32 [#allocation9], 4
      %s71 = int_to_ptr.vmem [resolvable:$true] %s70
      %76 = dma.hbm_to_vmem [thread:$0]  %s6, 3072, %s71, [#allocation10], 192, 192, 12
    $region29: #{tpu_custom_call.1} parent=1 // pred_fallthru
      _
    // Predicated region
    $region30: #{tpu_custom_call.1} parent=1 // pred_check
      _
    $region31: #{tpu_custom_call.1} parent=1 // pred_check_branch
      %78 = sbr.rel (0) target = $region33
    $region32: #{tpu_custom_call.1} parent=1 // pred_region
      _
    $region33: #{tpu_custom_call.1} parent=1 // pred_fallthru
      _
    // Predicated region
    $region34: #{tpu_custom_call.1} parent=1 // pred_check
      _
    $region35: #{tpu_custom_call.1} parent=1 // pred_check_branch
      %80 = sbr.rel (0) target = $region37
    $region36: #{tpu_custom_call.1} parent=1 // pred_region
      %s82 = ssub.s32 3072, 3072
      %83 = vsyncadd [#allocation10], %s82
      %s84 = sshll.u32 [#allocation11], 4
      %s85 = int_to_ptr.vmem [resolvable:$true] %s84
      %90 = dma.hbm_to_vmem [thread:$0]  %s8, 3072, %s85, [#allocation10], 192, 192, 12
    $region37: #{tpu_custom_call.1} parent=1 // pred_fallthru
      _
    // Predicated region
    $region38: #{tpu_custom_call.1} parent=1 // pred_check
      _
    $region39: #{tpu_custom_call.1} parent=1 // pred_check_branch
      %92 = sbr.rel (0) target = $region41
    $region40: #{tpu_custom_call.1} parent=1 // pred_region
      _
    $region41: #{tpu_custom_call.1} parent=1 // pred_fallthru
      _
    // Predicated region
    $region42: #{tpu_custom_call.1} parent=1 // pred_check
      _
    $region43: #{tpu_custom_call.1} parent=1 // pred_check_branch
      %94 = sbr.rel (0) target = $region45
    $region44: #{tpu_custom_call.1} parent=1 // pred_region
      %s96 = ssub.s32 3072, 3072
      %97 = vsyncadd [#allocation13], %s96
      %s98 = sshll.u32 [#allocation12], 4
      %s99 = int_to_ptr.vmem [resolvable:$true] %s98
      %104 = dma.hbm_to_vmem [thread:$0]  %s10, 3072, %s99, [#allocation13], 192, 192, 12
    $region45: #{tpu_custom_call.1} parent=1 // pred_fallthru
      _
    // Predicated region
    $region46: #{tpu_custom_call.1} parent=1 // pred_check
      _
    $region47: #{tpu_custom_call.1} parent=1 // pred_check_branch
      %106 = sbr.rel (0) target = $region49
    $region48: #{tpu_custom_call.1} parent=1 // pred_region
      _
    $region49: #{tpu_custom_call.1} parent=1 // pred_fallthru
      _
    // Predicated region
    $region50: #{tpu_custom_call.1} parent=1 // pred_check
      _
    $region51: #{tpu_custom_call.1} parent=1 // pred_check_branch
      %108 = sbr.rel (0) target = $region53
    $region52: #{tpu_custom_call.1} parent=1 // pred_region
      _
    $region53: #{tpu_custom_call.1} parent=1 // pred_fallthru
      _
    // Predicated region
    $region54: #{tpu_custom_call.1} parent=1 // pred_check
      _
    $region55: #{tpu_custom_call.1} parent=1 // pred_check_branch
      %110 = sbr.rel (0) target = $region57
    $region56: #{tpu_custom_call.1} parent=1 // pred_region
      _
    $region57: #{tpu_custom_call.1} parent=1 // pred_fallthru
      _
    // Predicated region
    $region58: #{tpu_custom_call.1} parent=1 // pred_check
      _
    $region59: #{tpu_custom_call.1} parent=1 // pred_check_branch
      %112 = sbr.rel (0) target = $region61
    $region60: #{tpu_custom_call.1} parent=1 // pred_region
      %113 = dma.done [#allocation5], 1024
    $region61: #{tpu_custom_call.1} parent=1 // pred_fallthru
      _
    // Predicated region
    $region62: #{tpu_custom_call.1} parent=1 // pred_check
      _
    $region63: #{tpu_custom_call.1} parent=1 // pred_check_branch
      %115 = sbr.rel (0) target = $region65
    $region64: #{tpu_custom_call.1} parent=1 // pred_region
      %116 = dma.done [#allocation7], 128
    $region65: #{tpu_custom_call.1} parent=1 // pred_fallthru
      _
    // Predicated region
    $region66: #{tpu_custom_call.1} parent=1 // pred_check
      _
    $region67: #{tpu_custom_call.1} parent=1 // pred_check_branch
      %118 = sbr.rel (0) target = $region69
    $region68: #{tpu_custom_call.1} parent=1 // pred_region
      %119 = dma.done [#allocation7], 3072
    $region69: #{tpu_custom_call.1} parent=1 // pred_fallthru
      _
    // Predicated region
    $region70: #{tpu_custom_call.1} parent=1 // pred_check
      _
    $region71: #{tpu_custom_call.1} parent=1 // pred_check_branch
      %121 = sbr.rel (0) target = $region73
    $region72: #{tpu_custom_call.1} parent=1 // pred_region
      %122 = dma.done [#allocation10], 3072
    $region73: #{tpu_custom_call.1} parent=1 // pred_fallthru
      _
    // Predicated region
    $region74: #{tpu_custom_call.1} parent=1 // pred_check
      _
    $region75: #{tpu_custom_call.1} parent=1 // pred_check_branch
      %124 = sbr.rel (0) target = $region77
    $region76: #{tpu_custom_call.1} parent=1 // pred_region
      %125 = dma.done [#allocation10], 3072
    $region77: #{tpu_custom_call.1} parent=1 // pred_fallthru
      _
    // Predicated region
    $region78: #{tpu_custom_call.1} parent=1 // pred_check
      _
    $region79: #{tpu_custom_call.1} parent=1 // pred_check_branch
      %127 = sbr.rel (0) target = $region81
    $region80: #{tpu_custom_call.1} parent=1 // pred_region
      %128 = dma.done [#allocation13], 3072
    $region81: #{tpu_custom_call.1} parent=1 // pred_fallthru
      _
    %v130 = vld [vmem:[%s2] sm:$0xf]
    %v131 = vld [vmem:[%s2 + $0x4] sm:$0xf]
    %v132 = vld [vmem:[#allocation8] sm:$0xff]
    %v133 = vld [vmem:[#allocation8 + $0x8] sm:$0xf]
    %v134 = vld [vmem:[#allocation8 + $0xc] sm:$0xff]
    %v135 = vld [vmem:[#allocation8 + $0x14] sm:$0xf]
    %v136 = vld [vmem:[#allocation8 + $0x18] sm:$0xff]
    %v137 = vld [vmem:[#allocation8 + $0x20] sm:$0xf]
    %v138 = vld [vmem:[#allocation8 + $0x24] sm:$0xff]
    %v139 = vld [vmem:[#allocation8 + $0x2c] sm:$0xf]
    %v140 = vld [vmem:[#allocation8 + $0x30] sm:$0xff]
    %v141 = vld [vmem:[#allocation8 + $0x38] sm:$0xf]
    %v142 = vld [vmem:[#allocation8 + $0x3c] sm:$0xff]
    %v143 = vld [vmem:[#allocation8 + $0x44] sm:$0xf]
    %v144 = vld [vmem:[#allocation8 + $0x48] sm:$0xff]
    %v145 = vld [vmem:[#allocation8 + $0x50] sm:$0xf]
    %v146 = vld [vmem:[#allocation8 + $0x54] sm:$0xff]
    %v147 = vld [vmem:[#allocation8 + $0x5c] sm:$0xf]
    %v148 = vld [vmem:[#allocation8 + $0x60] sm:$0xff]
    %v149 = vld [vmem:[#allocation8 + $0x68] sm:$0xf]
    %v150 = vld [vmem:[#allocation8 + $0x6c] sm:$0xff]
    %v151 = vld [vmem:[#allocation8 + $0x74] sm:$0xf]
    %v152 = vld [vmem:[#allocation8 + $0x78] sm:$0xff]
    %v153 = vld [vmem:[#allocation8 + $0x80] sm:$0xf]
    %v154 = vld [vmem:[#allocation8 + $0x84] sm:$0xff]
    %v155 = vld [vmem:[#allocation8 + $0x8c] sm:$0xf]
    %v156 = vld [vmem:[#allocation8 + $0x90] sm:$0xff]
    %v157 = vld [vmem:[#allocation8 + $0x98] sm:$0xf]
    %v158 = vld [vmem:[#allocation8 + $0x9c] sm:$0xff]
    %v159 = vld [vmem:[#allocation8 + $0xa4] sm:$0xf]
    %v160 = vld [vmem:[#allocation8 + $0xa8] sm:$0xff]
    %v161 = vld [vmem:[#allocation8 + $0xb0] sm:$0xf]
    %v162 = vld [vmem:[#allocation8 + $0xb4] sm:$0xff]
    %v163 = vld [vmem:[#allocation8 + $0xbc] sm:$0xf]
    %v164 = vld [vmem:[#allocation9] sm:$0xff]
    %v165 = vld [vmem:[#allocation9 + $0x8] sm:$0xf]
    %v166 = vld [vmem:[#allocation9 + $0xc] sm:$0xff]
    %v167 = vld [vmem:[#allocation9 + $0x14] sm:$0xf]
    %v168 = vld [vmem:[#allocation9 + $0x18] sm:$0xff]
    %v169 = vld [vmem:[#allocation9 + $0x20] sm:$0xf]
    %v170 = vld [vmem:[#allocation9 + $0x24] sm:$0xff]
    %v171 = vld [vmem:[#allocation9 + $0x2c] sm:$0xf]
    %v172 = vld [vmem:[#allocation9 + $0x30] sm:$0xff]
    %v173 = vld [vmem:[#allocation9 + $0x38] sm:$0xf]
    %v174 = vld [vmem:[#allocation9 + $0x3c] sm:$0xff]
    %v175 = vld [vmem:[#allocation9 + $0x44] sm:$0xf]
    %v176 = vld [vmem:[#allocation9 + $0x48] sm:$0xff]
    %v177 = vld [vmem:[#allocation9 + $0x50] sm:$0xf]
    %v178 = vld [vmem:[#allocation9 + $0x54] sm:$0xff]
    %v179 = vld [vmem:[#allocation9 + $0x5c] sm:$0xf]
    %v180 = vld [vmem:[#allocation9 + $0x60] sm:$0xff]
    %v181 = vld [vmem:[#allocation9 + $0x68] sm:$0xf]
    %v182 = vld [vmem:[#allocation9 + $0x6c] sm:$0xff]
    %v183 = vld [vmem:[#allocation9 + $0x74] sm:$0xf]
    %v184 = vld [vmem:[#allocation9 + $0x78] sm:$0xff]
    %v185 = vld [vmem:[#allocation9 + $0x80] sm:$0xf]
    %v186 = vld [vmem:[#allocation9 + $0x84] sm:$0xff]
    %v187 = vld [vmem:[#allocation9 + $0x8c] sm:$0xf]
    %v188 = vld [vmem:[#allocation9 + $0x90] sm:$0xff]
    %v189 = vld [vmem:[#allocation9 + $0x98] sm:$0xf]
    %v190 = vld [vmem:[#allocation9 + $0x9c] sm:$0xff]
    %v191 = vld [vmem:[#allocation9 + $0xa4] sm:$0xf]
    %v192 = vld [vmem:[#allocation9 + $0xa8] sm:$0xff]
    %v193 = vld [vmem:[#allocation9 + $0xb0] sm:$0xf]
    %v194 = vld [vmem:[#allocation9 + $0xb4] sm:$0xff]
    %v195 = vld [vmem:[#allocation9 + $0xbc] sm:$0xf]
    %v196 = vld [vmem:[#allocation11] sm:$0xff]
    %v197 = vld [vmem:[#allocation11 + $0x8] sm:$0xf]
    %v198 = vld [vmem:[#allocation11 + $0xc] sm:$0xff]
    %v199 = vld [vmem:[#allocation11 + $0x14] sm:$0xf]
    %v200 = vld [vmem:[#allocation11 + $0x18] sm:$0xff]
    %v201 = vld [vmem:[#allocation11 + $0x20] sm:$0xf]
    %v202 = vld [vmem:[#allocation11 + $0x24] sm:$0xff]
    %v203 = vld [vmem:[#allocation11 + $0x2c] sm:$0xf]
    %v204 = vld [vmem:[#allocation11 + $0x30] sm:$0xff]
    %v205 = vld [vmem:[#allocation11 + $0x38] sm:$0xf]
    %v206 = vld [vmem:[#allocation11 + $0x3c] sm:$0xff]
    %v207 = vld [vmem:[#allocation11 + $0x44] sm:$0xf]
    %v208 = vld [vmem:[#allocation11 + $0x48] sm:$0xff]
    %v209 = vld [vmem:[#allocation11 + $0x50] sm:$0xf]
    %v210 = vld [vmem:[#allocation11 + $0x54] sm:$0xff]
    %v211 = vld [vmem:[#allocation11 + $0x5c] sm:$0xf]
    %v212 = vld [vmem:[#allocation11 + $0x60] sm:$0xff]
    %v213 = vld [vmem:[#allocation11 + $0x68] sm:$0xf]
    %v214 = vld [vmem:[#allocation11 + $0x6c] sm:$0xff]
    %v215 = vld [vmem:[#allocation11 + $0x74] sm:$0xf]
    %v216 = vld [vmem:[#allocation11 + $0x78] sm:$0xff]
    %v217 = vld [vmem:[#allocation11 + $0x80] sm:$0xf]
    %v218 = vld [vmem:[#allocation11 + $0x84] sm:$0xff]
    %v219 = vld [vmem:[#allocation11 + $0x8c] sm:$0xf]
    %v220 = vld [vmem:[#allocation11 + $0x90] sm:$0xff]
    %v221 = vld [vmem:[#allocation11 + $0x98] sm:$0xf]
    %v222 = vld [vmem:[#allocation11 + $0x9c] sm:$0xff]
    %v223 = vld [vmem:[#allocation11 + $0xa4] sm:$0xf]
    %v224 = vld [vmem:[#allocation11 + $0xa8] sm:$0xff]
    %v225 = vld [vmem:[#allocation11 + $0xb0] sm:$0xf]
    %v226 = vld [vmem:[#allocation11 + $0xb4] sm:$0xff]
    %v227 = vld [vmem:[#allocation11 + $0xbc] sm:$0xf]
    %v228 = vld [vmem:[#allocation12] sm:$0xff]
    %v229 = vld [vmem:[#allocation12 + $0x8] sm:$0xf]
    %v230 = vld [vmem:[#allocation12 + $0xc] sm:$0xff]
    %v231 = vld [vmem:[#allocation12 + $0x14] sm:$0xf]
    %v232 = vld [vmem:[#allocation12 + $0x18] sm:$0xff]
    %v233 = vld [vmem:[#allocation12 + $0x20] sm:$0xf]
    %v234 = vld [vmem:[#allocation12 + $0x24] sm:$0xff]
    %v235 = vld [vmem:[#allocation12 + $0x2c] sm:$0xf]
    %v236 = vld [vmem:[#allocation12 + $0x30] sm:$0xff]
    %v237 = vld [vmem:[#allocation12 + $0x38] sm:$0xf]
    %v238 = vld [vmem:[#allocation12 + $0x3c] sm:$0xff]
    %v239 = vld [vmem:[#allocation12 + $0x44] sm:$0xf]
    %v240 = vld [vmem:[#allocation12 + $0x48] sm:$0xff]
    %v241 = vld [vmem:[#allocation12 + $0x50] sm:$0xf]
    %v242 = vld [vmem:[#allocation12 + $0x54] sm:$0xff]
    %v243 = vld [vmem:[#allocation12 + $0x5c] sm:$0xf]
    %v244 = vld [vmem:[#allocation12 + $0x60] sm:$0xff]
    %v245 = vld [vmem:[#allocation12 + $0x68] sm:$0xf]
    %v246 = vld [vmem:[#allocation12 + $0x6c] sm:$0xff]
    %v247 = vld [vmem:[#allocation12 + $0x74] sm:$0xf]
    %v248 = vld [vmem:[#allocation12 + $0x78] sm:$0xff]
    %v249 = vld [vmem:[#allocation12 + $0x80] sm:$0xf]
    %v250 = vld [vmem:[#allocation12 + $0x84] sm:$0xff]
    %v251 = vld [vmem:[#allocation12 + $0x8c] sm:$0xf]
    %v252 = vld [vmem:[#allocation12 + $0x90] sm:$0xff]
    %v253 = vld [vmem:[#allocation12 + $0x98] sm:$0xf]
    %v254 = vld [vmem:[#allocation12 + $0x9c] sm:$0xff]
    %v255 = vld [vmem:[#allocation12 + $0xa4] sm:$0xf]
    %v256 = vld [vmem:[#allocation12 + $0xa8] sm:$0xff]
    %v257 = vld [vmem:[#allocation12 + $0xb0] sm:$0xf]
    %v258 = vld [vmem:[#allocation12 + $0xb4] sm:$0xff]
    %v259 = vld [vmem:[#allocation12 + $0xbc] sm:$0xf]
    %v260 = vld [vmem:[#allocation6] sm:$0xff]
    %v261 = vpack.c.bf16 %v260, %v260
    %v262 = vld [vmem:[%s3] sm:$0x1]
    %v264 = vlaneseq
    %v265 = vshrl.u32 %v264, 7
    %v266 = vsub.s32 0, %v265
    %v267 = vrot.slane %v262, %v266
    %v271 = vunpack.c.l.b16 %v130
    %v272 = vunpack.c.l.b16 %v131
    %v273 = vpack.c.b16 %v272, %v271
    %vm275 = vcmask 130048
    %v277 = vsel %vm275, %v261, 0
    %279 = vmatprep.subr.bf16.mxu0 0
    %280 = vmatpush1.bf16.msra.mxu0 %v273
    %281 = vmatprep.subr.bf16.mxu0 0
    %282 = vmatpush1.bf16.msra.mxu0 0
    %283 = vmatprep.subr.bf16.mxu0 0
    %284 = vmatpush1.bf16.msra.mxu0 0
    %285 = vmatprep.subr.bf16.mxu0 0
    %286 = vmatpush1.bf16.msra.mxu0 0
    %287 = vmatprep.subr.bf16.mxu0 0
    %288 = vmatpush1.bf16.msra.mxu0 0
    %289 = vmatprep.subr.bf16.mxu0 0
    %290 = vmatpush1.bf16.msra.mxu0 0
    %291 = vmatprep.subr.bf16.mxu0 0
    %292 = vmatpush1.bf16.msra.mxu0 0
    %293 = vmatprep.subr.bf16.mxu0 0
    %294 = vmatpush1.bf16.msra.mxu0 0
    %295 = vmatprep.subr.bf16.mxu0 0
    %296 = vmatpush1.bf16.msra.mxu0 0
    %297 = vmatprep.subr.bf16.mxu0 0
    %298 = vmatpush1.bf16.msra.mxu0 0
    %299 = vmatprep.subr.bf16.mxu0 0
    %300 = vmatpush1.bf16.msra.mxu0 0
    %301 = vmatprep.subr.bf16.mxu0 0
    %302 = vmatpush1.bf16.msra.mxu0 0
    %303 = vmatprep.subr.bf16.mxu0 0
    %304 = vmatpush1.bf16.msra.mxu0 0
    %305 = vmatprep.subr.bf16.mxu0 0
    %306 = vmatpush1.bf16.msra.mxu0 0
    %307 = vmatprep.subr.bf16.mxu0 0
    %308 = vmatpush1.bf16.msra.mxu0 0
    %309 = vmatprep.subr.bf16.mxu0 0
    %310 = vmatpush1.bf16.msra.mxu0 0
    %311 = vmatprep.mubr.bf16.mxu0 0
    %312 = vmatmul.mubr.bf16.gmra.mrb[0].mxu0 %v277
    %v313 = vpop.f32.mrb[0].mxu0
    %v314 = vadd.f32 %v267, %v313
    %v315 = vpop.f32.mrb[0].mxu0
    %v316 = vpop.f32.mrb[0].mxu0
    %v317 = vpop.f32.mrb[0].mxu0
    %318 = vdwg.mxu0
    %v319 = vtanh.pop %v314
    %v320 = vld [vmem:[#allocation4] sm:$0xff]
    %v321 = vld [vmem:[#allocation4 + $0x8] sm:$0xff]
    %v322 = vld [vmem:[#allocation4 + $0x10] sm:$0xff]
    %v323 = vld [vmem:[#allocation4 + $0x18] sm:$0xff]
    %v324 = vld [vmem:[#allocation4 + $0x20] sm:$0xff]
    %v325 = vld [vmem:[#allocation4 + $0x28] sm:$0xff]
    %v326 = vld [vmem:[#allocation4 + $0x30] sm:$0xff]
    %v327 = vld [vmem:[#allocation4 + $0x38] sm:$0xff]
    %v328 = vpack.c.bf16 %v321, %v320
    %v329 = vpack.c.bf16 %v323, %v322
    %v330 = vpack.c.bf16 %v325, %v324
    %v331 = vpack.c.bf16 %v327, %v326
    %v332 = vld [vmem:[%s5] sm:$0x7]
    %v334 = vlaneseq
    %v335 = vshrl.u32 %v334, 7
    %v336 = vsub.s32 0, %v335
    %v337 = vrot.slane %v332, %v336
    %v338 = vlaneseq
    %v339 = vshrl.u32 %v338, 7
    %v340 = vsub.s32 1, %v339
    %v341 = vrot.slane %v332, %v340
    %v342 = vlaneseq
    %v343 = vshrl.u32 %v342, 7
    %v344 = vsub.s32 2, %v343
    %v345 = vrot.slane %v332, %v344
    %v381 = vunpack.c.l.b16 %v132
    %v382 = vunpack.c.h.b16 %v132
    %v383 = vunpack.c.l.b16 %v133
    %v384 = vunpack.c.l.b16 %v134
    %v385 = vunpack.c.h.b16 %v134
    %v386 = vunpack.c.l.b16 %v135
    %v387 = vunpack.c.l.b16 %v136
    %v388 = vunpack.c.h.b16 %v136
    %v389 = vunpack.c.l.b16 %v137
    %v390 = vunpack.c.l.b16 %v138
    %v391 = vunpack.c.h.b16 %v138
    %v392 = vunpack.c.l.b16 %v139
    %v393 = vunpack.c.l.b16 %v140
    %v394 = vunpack.c.h.b16 %v140
    %v395 = vunpack.c.l.b16 %v141
    %v396 = vunpack.c.l.b16 %v142
    %v397 = vunpack.c.h.b16 %v142
    %v398 = vunpack.c.l.b16 %v143
    %v399 = vunpack.c.l.b16 %v144
    %v400 = vunpack.c.h.b16 %v144
    %v401 = vunpack.c.l.b16 %v145
    %v402 = vunpack.c.l.b16 %v146
    %v403 = vunpack.c.h.b16 %v146
    %v404 = vunpack.c.l.b16 %v147
    %v405 = vunpack.c.l.b16 %v148
    %v406 = vunpack.c.h.b16 %v148
    %v407 = vunpack.c.l.b16 %v149
    %v408 = vunpack.c.l.b16 %v150
    %v409 = vunpack.c.h.b16 %v150
    %v410 = vunpack.c.l.b16 %v151
    %v411 = vunpack.c.l.b16 %v152
    %v412 = vunpack.c.h.b16 %v152
    %v413 = vunpack.c.l.b16 %v153
    %v414 = vunpack.c.l.b16 %v154
    %v415 = vunpack.c.h.b16 %v154
    %v416 = vunpack.c.l.b16 %v155
    %v417 = vunpack.c.l.b16 %v156
    %v418 = vunpack.c.h.b16 %v156
    %v419 = vunpack.c.l.b16 %v157
    %v420 = vunpack.c.l.b16 %v158
    %v421 = vunpack.c.h.b16 %v158
    %v422 = vunpack.c.l.b16 %v159
    %v423 = vunpack.c.l.b16 %v160
    %v424 = vunpack.c.h.b16 %v160
    %v425 = vunpack.c.l.b16 %v161
    %v426 = vunpack.c.l.b16 %v162
    %v427 = vunpack.c.h.b16 %v162
    %v428 = vunpack.c.l.b16 %v163
    %v429 = vpack.c.b16 %v384, %v381
    %v430 = vpack.c.b16 %v385, %v382
    %v431 = vpack.c.b16 %v386, %v383
    %v432 = vpack.c.b16 %v390, %v387
    %v433 = vpack.c.b16 %v391, %v388
    %v434 = vpack.c.b16 %v392, %v389
    %v435 = vpack.c.b16 %v396, %v393
    %v436 = vpack.c.b16 %v397, %v394
    %v437 = vpack.c.b16 %v398, %v395
    %v438 = vpack.c.b16 %v402, %v399
    %v439 = vpack.c.b16 %v403, %v400
    %v440 = vpack.c.b16 %v404, %v401
    %v441 = vpack.c.b16 %v408, %v405
    %v442 = vpack.c.b16 %v409, %v406
    %v443 = vpack.c.b16 %v410, %v407
    %v444 = vpack.c.b16 %v414, %v411
    %v445 = vpack.c.b16 %v415, %v412
    %v446 = vpack.c.b16 %v416, %v413
    %v447 = vpack.c.b16 %v420, %v417
    %v448 = vpack.c.b16 %v421, %v418
    %v449 = vpack.c.b16 %v422, %v419
    %v450 = vpack.c.b16 %v426, %v423
    %v451 = vpack.c.b16 %v427, %v424
    %v452 = vpack.c.b16 %v428, %v425
    %477 = vmatprep.subr.bf16.mxu0 %v430
    %478 = vmatpush1.bf16.msra.mxu0 %v429
    %479 = vmatprep.subr.bf16.mxu0 %v433
    %480 = vmatpush1.bf16.msra.mxu0 %v432
    %481 = vmatprep.subr.bf16.mxu0 %v436
    %482 = vmatpush1.bf16.msra.mxu0 %v435
    %483 = vmatprep.subr.bf16.mxu0 %v439
    %484 = vmatpush1.bf16.msra.mxu0 %v438
    %485 = vmatprep.subr.bf16.mxu0 %v442
    %486 = vmatpush1.bf16.msra.mxu0 %v441
    %487 = vmatprep.subr.bf16.mxu0 %v445
    %488 = vmatpush1.bf16.msra.mxu0 %v444
    %489 = vmatprep.subr.bf16.mxu0 %v448
    %490 = vmatpush1.bf16.msra.mxu0 %v447
    %491 = vmatprep.subr.bf16.mxu0 %v451
    %492 = vmatpush1.bf16.msra.mxu0 %v450
    %493 = vmatprep.subr.bf16.mxu0 0
    %494 = vmatpush1.bf16.msra.mxu0 0
    %495 = vmatprep.subr.bf16.mxu0 0
    %496 = vmatpush1.bf16.msra.mxu0 0
    %497 = vmatprep.subr.bf16.mxu0 0
    %498 = vmatpush1.bf16.msra.mxu0 0
    %499 = vmatprep.subr.bf16.mxu0 0
    %500 = vmatpush1.bf16.msra.mxu0 0
    %501 = vmatprep.subr.bf16.mxu0 0
    %502 = vmatpush1.bf16.msra.mxu0 0
    %503 = vmatprep.subr.bf16.mxu0 0
    %504 = vmatpush1.bf16.msra.mxu0 0
    %505 = vmatprep.subr.bf16.mxu0 0
    %506 = vmatpush1.bf16.msra.mxu0 0
    %507 = vmatprep.subr.bf16.mxu0 0
    %508 = vmatpush1.bf16.msra.mxu0 0
    %509 = vmatprep.mubr.bf16.mxu0 0
    %510 = vmatmul.mubr.bf16.gmra.mrb[0].mxu0 %v328
    %v511 = vpop.f32.mrb[0].mxu0
    %v512 = vadd.f32 %v337, %v511
    %v513 = vpop.f32.mrb[0].mxu0
    %v514 = vadd.f32 %v341, %v513
    %v515 = vpop.f32.mrb[0].mxu0
    %v516 = vadd.f32 %v337, %v515
    %v517 = vpop.f32.mrb[0].mxu0
    %v518 = vadd.f32 %v341, %v517
    %519 = vmatprep.mubr.bf16.mxu0 0
    %520 = vmatmul.mubr.bf16.gmra.mrb[0].mxu0 %v329
    %v521 = vpop.f32.mrb[0].mxu0
    %v522 = vadd.f32 %v337, %v521
    %v523 = vpop.f32.mrb[0].mxu0
    %v524 = vadd.f32 %v341, %v523
    %v525 = vpop.f32.mrb[0].mxu0
    %v526 = vadd.f32 %v337, %v525
    %v527 = vpop.f32.mrb[0].mxu0
    %v528 = vadd.f32 %v341, %v527
    %529 = vmatprep.mubr.bf16.mxu0 0
    %530 = vmatmul.mubr.bf16.gmra.mrb[0].mxu0 %v330
    %v531 = vpop.f32.mrb[0].mxu0
    %v532 = vadd.f32 %v337, %v531
    %v533 = vpop.f32.mrb[0].mxu0
    %v534 = vadd.f32 %v341, %v533
    %v535 = vpop.f32.mrb[0].mxu0
    %v536 = vadd.f32 %v337, %v535
    %v537 = vpop.f32.mrb[0].mxu0
    %v538 = vadd.f32 %v341, %v537
    %539 = vmatprep.mubr.bf16.mxu0 0
    %540 = vmatmul.mubr.bf16.gmra.mrb[0].mxu0 %v331
    %v541 = vpop.f32.mrb[0].mxu0
    %v542 = vadd.f32 %v337, %v541
    %v543 = vpop.f32.mrb[0].mxu0
    %v544 = vadd.f32 %v341, %v543
    %v545 = vpop.f32.mrb[0].mxu0
    %v546 = vadd.f32 %v337, %v545
    %v547 = vpop.f32.mrb[0].mxu0
    %v548 = vadd.f32 %v341, %v547
    %549 = vdwg.mxu0
    %550 = vmatprep.subr.bf16.mxu0 0
    %551 = vmatpush1.bf16.msra.mxu0 %v431
    %552 = vmatprep.subr.bf16.mxu0 0
    %553 = vmatpush1.bf16.msra.mxu0 %v434
    %554 = vmatprep.subr.bf16.mxu0 0
    %555 = vmatpush1.bf16.msra.mxu0 %v437
    %556 = vmatprep.subr.bf16.mxu0 0
    %557 = vmatpush1.bf16.msra.mxu0 %v440
    %558 = vmatprep.subr.bf16.mxu0 0
    %559 = vmatpush1.bf16.msra.mxu0 %v443
    %560 = vmatprep.subr.bf16.mxu0 0
    %561 = vmatpush1.bf16.msra.mxu0 %v446
    %562 = vmatprep.subr.bf16.mxu0 0
    %563 = vmatpush1.bf16.msra.mxu0 %v449
    %564 = vmatprep.subr.bf16.mxu0 0
    %565 = vmatpush1.bf16.msra.mxu0 %v452
    %566 = vmatprep.subr.bf16.mxu0 0
    %567 = vmatpush1.bf16.msra.mxu0 0
    %568 = vmatprep.subr.bf16.mxu0 0
    %569 = vmatpush1.bf16.msra.mxu0 0
    %570 = vmatprep.subr.bf16.mxu0 0
    %571 = vmatpush1.bf16.msra.mxu0 0
    %572 = vmatprep.subr.bf16.mxu0 0
    %573 = vmatpush1.bf16.msra.mxu0 0
    %574 = vmatprep.subr.bf16.mxu0 0
    %575 = vmatpush1.bf16.msra.mxu0 0
    %576 = vmatprep.subr.bf16.mxu0 0
    %577 = vmatpush1.bf16.msra.mxu0 0
    %578 = vmatprep.subr.bf16.mxu0 0
    %579 = vmatpush1.bf16.msra.mxu0 0
    %580 = vmatprep.subr.bf16.mxu0 0
    %581 = vmatpush1.bf16.msra.mxu0 0
    %582 = vmatprep.mubr.bf16.mxu0 0
    %583 = vmatmul.mubr.bf16.gmra.mrb[0].mxu0 %v328
    %v584 = vpop.f32.mrb[0].mxu0
    %v585 = vadd.f32 %v345, %v584
    %v586 = vpop.f32.mrb[0].mxu0
    %v587 = vpop.f32.mrb[0].mxu0
    %v588 = vadd.f32 %v345, %v587
    %v589 = vpop.f32.mrb[0].mxu0
    %590 = vmatprep.mubr.bf16.mxu0 0
    %591 = vmatmul.mubr.bf16.gmra.mrb[0].mxu0 %v329
    %v592 = vpop.f32.mrb[0].mxu0
    %v593 = vadd.f32 %v345, %v592
    %v594 = vpop.f32.mrb[0].mxu0
    %v595 = vpop.f32.mrb[0].mxu0
    %v596 = vadd.f32 %v345, %v595
    %v597 = vpop.f32.mrb[0].mxu0
    %598 = vmatprep.mubr.bf16.mxu0 0
    %599 = vmatmul.mubr.bf16.gmra.mrb[0].mxu0 %v330
    %v600 = vpop.f32.mrb[0].mxu0
    %v601 = vadd.f32 %v345, %v600
    %v602 = vpop.f32.mrb[0].mxu0
    %v603 = vpop.f32.mrb[0].mxu0
    %v604 = vadd.f32 %v345, %v603
    %v605 = vpop.f32.mrb[0].mxu0
    %606 = vmatprep.mubr.bf16.mxu0 0
    %607 = vmatmul.mubr.bf16.gmra.mrb[0].mxu0 %v331
    %v608 = vpop.f32.mrb[0].mxu0
    %v609 = vadd.f32 %v345, %v608
    %v610 = vpop.f32.mrb[0].mxu0
    %v611 = vpop.f32.mrb[0].mxu0
    %v612 = vadd.f32 %v345, %v611
    %v613 = vpop.f32.mrb[0].mxu0
    %614 = vdwg.mxu0
    %615 = vst [vmem:[#allocation2] sm:$0xff] %v512
    %616 = vst [vmem:[#allocation2 + $0x8] sm:$0xff] %v514
    %617 = vst [vmem:[#allocation2 + $0x10] sm:$0xff] %v585
    %618 = vst [vmem:[#allocation2 + $0x18] sm:$0xff] %v516
    %619 = vst [vmem:[#allocation2 + $0x20] sm:$0xff] %v518
    %620 = vst [vmem:[#allocation2 + $0x28] sm:$0xff] %v588
    %621 = vst [vmem:[#allocation2 + $0x30] sm:$0xff] %v522
    %622 = vst [vmem:[#allocation2 + $0x38] sm:$0xff] %v524
    %623 = vst [vmem:[#allocation2 + $0x40] sm:$0xff] %v593
    %624 = vst [vmem:[#allocation2 + $0x48] sm:$0xff] %v526
    %625 = vst [vmem:[#allocation2 + $0x50] sm:$0xff] %v528
    %626 = vst [vmem:[#allocation2 + $0x58] sm:$0xff] %v596
    %627 = vst [vmem:[#allocation2 + $0x60] sm:$0xff] %v532
    %628 = vst [vmem:[#allocation2 + $0x68] sm:$0xff] %v534
    %629 = vst [vmem:[#allocation2 + $0x70] sm:$0xff] %v601
    %630 = vst [vmem:[#allocation2 + $0x78] sm:$0xff] %v536
    %631 = vst [vmem:[#allocation2 + $0x80] sm:$0xff] %v538
    %632 = vst [vmem:[#allocation2 + $0x88] sm:$0xff] %v604
    %633 = vst [vmem:[#allocation2 + $0x90] sm:$0xff] %v542
    %634 = vst [vmem:[#allocation2 + $0x98] sm:$0xff] %v544
    %635 = vst [vmem:[#allocation2 + $0xa0] sm:$0xff] %v609
    %636 = vst [vmem:[#allocation2 + $0xa8] sm:$0xff] %v546
    %637 = vst [vmem:[#allocation2 + $0xb0] sm:$0xff] %v548
    %638 = vst [vmem:[#allocation2 + $0xb8] sm:$0xff] %v612
    %v639 = vld [vmem:[%s7] sm:$0x7]
    %v641 = vlaneseq
    %v642 = vshrl.u32 %v641, 7
    %v643 = vsub.s32 0, %v642
    %v644 = vrot.slane %v639, %v643
    %v645 = vlaneseq
    %v646 = vshrl.u32 %v645, 7
    %v647 = vsub.s32 1, %v646
    %v648 = vrot.slane %v639, %v647
    %v649 = vlaneseq
    %v650 = vshrl.u32 %v649, 7
    %v651 = vsub.s32 2, %v650
    %v652 = vrot.slane %v639, %v651
    %v656 = vld [vmem:[%s9] sm:$0x7]
    %v658 = vlaneseq
    %v659 = vshrl.u32 %v658, 7
    %v660 = vsub.s32 0, %v659
    %v661 = vrot.slane %v656, %v660
    %v662 = vlaneseq
    %v663 = vshrl.u32 %v662, 7
    %v664 = vsub.s32 1, %v663
    %v665 = vrot.slane %v656, %v664
    %v666 = vlaneseq
    %v667 = vshrl.u32 %v666, 7
    %v668 = vsub.s32 2, %v667
    %v669 = vrot.slane %v656, %v668
    %v673 = vld [vmem:[%s11] sm:$0x7]
    %v675 = vlaneseq
    %v676 = vshrl.u32 %v675, 7
    %v677 = vsub.s32 0, %v676
    %v678 = vrot.slane %v673, %v677
    %v679 = vlaneseq
    %v680 = vshrl.u32 %v679, 7
    %v681 = vsub.s32 1, %v680
    %v682 = vrot.slane %v673, %v681
    %v683 = vlaneseq
    %v684 = vshrl.u32 %v683, 7
    %v685 = vsub.s32 2, %v684
    %v686 = vrot.slane %v673, %v685
    %v690 = vld [vmem:[#allocation2] sm:$0xff]
    %v691 = vld [vmem:[#allocation2 + $0x8] sm:$0xff]
    %v692 = vld [vmem:[#allocation2 + $0x10] sm:$0xff]
    %v725 = vunpack.c.l.b16 %v164
    %v726 = vunpack.c.h.b16 %v164
    %v727 = vunpack.c.l.b16 %v165
    %v728 = vunpack.c.l.b16 %v166
    %v729 = vunpack.c.h.b16 %v166
    %v730 = vunpack.c.l.b16 %v167
    %v731 = vunpack.c.l.b16 %v168
    %v732 = vunpack.c.h.b16 %v168
    %v733 = vunpack.c.l.b16 %v169
    %v734 = vunpack.c.l.b16 %v170
    %v735 = vunpack.c.h.b16 %v170
    %v736 = vunpack.c.l.b16 %v171
    %v737 = vunpack.c.l.b16 %v172
    %v738 = vunpack.c.h.b16 %v172
    %v739 = vunpack.c.l.b16 %v173
    %v740 = vunpack.c.l.b16 %v174
    %v741 = vunpack.c.h.b16 %v174
    %v742 = vunpack.c.l.b16 %v175
    %v743 = vunpack.c.l.b16 %v176
    %v744 = vunpack.c.h.b16 %v176
    %v745 = vunpack.c.l.b16 %v177
    %v746 = vunpack.c.l.b16 %v178
    %v747 = vunpack.c.h.b16 %v178
    %v748 = vunpack.c.l.b16 %v179
    %v749 = vunpack.c.l.b16 %v180
    %v750 = vunpack.c.h.b16 %v180
    %v751 = vunpack.c.l.b16 %v181
    %v752 = vunpack.c.l.b16 %v182
    %v753 = vunpack.c.h.b16 %v182
    %v754 = vunpack.c.l.b16 %v183
    %v755 = vunpack.c.l.b16 %v184
    %v756 = vunpack.c.h.b16 %v184
    %v757 = vunpack.c.l.b16 %v185
    %v758 = vunpack.c.l.b16 %v186
    %v759 = vunpack.c.h.b16 %v186
    %v760 = vunpack.c.l.b16 %v187
    %v761 = vunpack.c.l.b16 %v188
    %v762 = vunpack.c.h.b16 %v188
    %v763 = vunpack.c.l.b16 %v189
    %v764 = vunpack.c.l.b16 %v190
    %v765 = vunpack.c.h.b16 %v190
    %v766 = vunpack.c.l.b16 %v191
    %v767 = vunpack.c.l.b16 %v192
    %v768 = vunpack.c.h.b16 %v192
    %v769 = vunpack.c.l.b16 %v193
    %v770 = vunpack.c.l.b16 %v194
    %v771 = vunpack.c.h.b16 %v194
    %v772 = vunpack.c.l.b16 %v195
    %v773 = vpack.c.b16 %v728, %v725
    %v774 = vpack.c.b16 %v729, %v726
    %v775 = vpack.c.b16 %v730, %v727
    %v776 = vpack.c.b16 %v734, %v731
    %v777 = vpack.c.b16 %v735, %v732
    %v778 = vpack.c.b16 %v736, %v733
    %v779 = vpack.c.b16 %v740, %v737
    %v780 = vpack.c.b16 %v741, %v738
    %v781 = vpack.c.b16 %v742, %v739
    %v782 = vpack.c.b16 %v746, %v743
    %v783 = vpack.c.b16 %v747, %v744
    %v784 = vpack.c.b16 %v748, %v745
    %v785 = vpack.c.b16 %v752, %v749
    %v786 = vpack.c.b16 %v753, %v750
    %v787 = vpack.c.b16 %v754, %v751
    %v788 = vpack.c.b16 %v758, %v755
    %v789 = vpack.c.b16 %v759, %v756
    %v790 = vpack.c.b16 %v760, %v757
    %v791 = vpack.c.b16 %v764, %v761
    %v792 = vpack.c.b16 %v765, %v762
    %v793 = vpack.c.b16 %v766, %v763
    %v794 = vpack.c.b16 %v770, %v767
    %v795 = vpack.c.b16 %v771, %v768
    %v796 = vpack.c.b16 %v772, %v769
    %821 = vmatprep.subr.bf16.mxu0 %v774
    %822 = vmatpush1.bf16.msra.mxu0 %v773
    %823 = vmatprep.subr.bf16.mxu0 %v777
    %824 = vmatpush1.bf16.msra.mxu0 %v776
    %825 = vmatprep.subr.bf16.mxu0 %v780
    %826 = vmatpush1.bf16.msra.mxu0 %v779
    %827 = vmatprep.subr.bf16.mxu0 %v783
    %828 = vmatpush1.bf16.msra.mxu0 %v782
    %829 = vmatprep.subr.bf16.mxu0 %v786
    %830 = vmatpush1.bf16.msra.mxu0 %v785
    %831 = vmatprep.subr.bf16.mxu0 %v789
    %832 = vmatpush1.bf16.msra.mxu0 %v788
    %833 = vmatprep.subr.bf16.mxu0 %v792
    %834 = vmatpush1.bf16.msra.mxu0 %v791
    %835 = vmatprep.subr.bf16.mxu0 %v795
    %836 = vmatpush1.bf16.msra.mxu0 %v794
    %837 = vmatprep.subr.bf16.mxu0 0
    %838 = vmatpush1.bf16.msra.mxu0 0
    %839 = vmatprep.subr.bf16.mxu0 0
    %840 = vmatpush1.bf16.msra.mxu0 0
    %841 = vmatprep.subr.bf16.mxu0 0
    %842 = vmatpush1.bf16.msra.mxu0 0
    %843 = vmatprep.subr.bf16.mxu0 0
    %844 = vmatpush1.bf16.msra.mxu0 0
    %845 = vmatprep.subr.bf16.mxu0 0
    %846 = vmatpush1.bf16.msra.mxu0 0
    %847 = vmatprep.subr.bf16.mxu0 0
    %848 = vmatpush1.bf16.msra.mxu0 0
    %849 = vmatprep.subr.bf16.mxu0 0
    %850 = vmatpush1.bf16.msra.mxu0 0
    %851 = vmatprep.subr.bf16.mxu0 0
    %852 = vmatpush1.bf16.msra.mxu0 0
    %853 = vmatprep.mubr.bf16.mxu0 0
    %854 = vmatmul.mubr.bf16.gmra.mrb[0].mxu0 0
    %v855 = vpop.f32.mrb[0].mxu0
    %v856 = vadd.f32 %v644, %v855
    %v857 = vpop.f32.mrb[0].mxu0
    %v858 = vadd.f32 %v648, %v857
    %v859 = vpop.f32.mrb[0].mxu0
    %v860 = vpop.f32.mrb[0].mxu0
    %861 = vdwg.mxu0
    %862 = vmatprep.subr.bf16.mxu0 0
    %863 = vmatpush1.bf16.msra.mxu0 %v775
    %864 = vmatprep.subr.bf16.mxu0 0
    %865 = vmatpush1.bf16.msra.mxu0 %v778
    %866 = vmatprep.subr.bf16.mxu0 0
    %867 = vmatpush1.bf16.msra.mxu0 %v781
    %868 = vmatprep.subr.bf16.mxu0 0
    %869 = vmatpush1.bf16.msra.mxu0 %v784
    %870 = vmatprep.subr.bf16.mxu0 0
    %871 = vmatpush1.bf16.msra.mxu0 %v787
    %872 = vmatprep.subr.bf16.mxu0 0
    %873 = vmatpush1.bf16.msra.mxu0 %v790
    %874 = vmatprep.subr.bf16.mxu0 0
    %875 = vmatpush1.bf16.msra.mxu0 %v793
    %876 = vmatprep.subr.bf16.mxu0 0
    %877 = vmatpush1.bf16.msra.mxu0 %v796
    %878 = vmatprep.subr.bf16.mxu0 0
    %879 = vmatpush1.bf16.msra.mxu0 0
    %880 = vmatprep.subr.bf16.mxu0 0
    %881 = vmatpush1.bf16.msra.mxu0 0
    %882 = vmatprep.subr.bf16.mxu0 0
    %883 = vmatpush1.bf16.msra.mxu0 0
    %884 = vmatprep.subr.bf16.mxu0 0
    %885 = vmatpush1.bf16.msra.mxu0 0
    %886 = vmatprep.subr.bf16.mxu0 0
    %887 = vmatpush1.bf16.msra.mxu0 0
    %888 = vmatprep.subr.bf16.mxu0 0
    %889 = vmatpush1.bf16.msra.mxu0 0
    %890 = vmatprep.subr.bf16.mxu0 0
    %891 = vmatpush1.bf16.msra.mxu0 0
    %892 = vmatprep.subr.bf16.mxu0 0
    %893 = vmatpush1.bf16.msra.mxu0 0
    %894 = vmatprep.mubr.bf16.mxu0 0
    %895 = vmatmul.mubr.bf16.gmra.mrb[0].mxu0 0
    %v896 = vpop.f32.mrb[0].mxu0
    %v897 = vadd.f32 %v652, %v896
    %v898 = vpop.f32.mrb[0].mxu0
    %v899 = vpop.f32.mrb[0].mxu0
    %v900 = vpop.f32.mrb[0].mxu0
    %901 = vdwg.mxu0
    %v902 = vadd.f32 %v690, %v856
    %v903 = vxor.u32 %v902, 2147483648
    %v904 = vmul.f32 %v903, 1.442695
    %v905 = vpow.pop %v904
    %v906 = vadd.f32 %v905, 1.0
    %v907 = vrcp.pop %v906
    %v908 = vmul.f32 1.0, %v907
    %v909 = vadd.f32 %v691, %v858
    %v910 = vxor.u32 %v909, 2147483648
    %v911 = vmul.f32 %v910, 1.442695
    %v912 = vpow.pop %v911
    %v913 = vadd.f32 %v912, 1.0
    %v914 = vrcp.pop %v913
    %v915 = vmul.f32 1.0, %v914
    %v916 = vmul.f32 %v908, %v897
    %v917 = vadd.f32 %v692, %v916
    %v918 = vtanh.pop %v917
    %v919 = vsub.f32 1.0, %v915
    %v920 = vmul.f32 %v919, %v918
    %v921 = vmul.f32 %v915, 0.0
    %v922 = vadd.f32 %v920, %v921
    %v923 = vmul.f32 %v922, %v319
    %v924 = vpack.c.bf16 %v923, %v923
    %v957 = vunpack.c.l.b16 %v196
    %v958 = vunpack.c.h.b16 %v196
    %v959 = vunpack.c.l.b16 %v197
    %v960 = vunpack.c.l.b16 %v198
    %v961 = vunpack.c.h.b16 %v198
    %v962 = vunpack.c.l.b16 %v199
    %v963 = vunpack.c.l.b16 %v200
    %v964 = vunpack.c.h.b16 %v200
    %v965 = vunpack.c.l.b16 %v201
    %v966 = vunpack.c.l.b16 %v202
    %v967 = vunpack.c.h.b16 %v202
    %v968 = vunpack.c.l.b16 %v203
    %v969 = vunpack.c.l.b16 %v204
    %v970 = vunpack.c.h.b16 %v204
    %v971 = vunpack.c.l.b16 %v205
    %v972 = vunpack.c.l.b16 %v206
    %v973 = vunpack.c.h.b16 %v206
    %v974 = vunpack.c.l.b16 %v207
    %v975 = vunpack.c.l.b16 %v208
    %v976 = vunpack.c.h.b16 %v208
    %v977 = vunpack.c.l.b16 %v209
    %v978 = vunpack.c.l.b16 %v210
    %v979 = vunpack.c.h.b16 %v210
    %v980 = vunpack.c.l.b16 %v211
    %v981 = vunpack.c.l.b16 %v212
    %v982 = vunpack.c.h.b16 %v212
    %v983 = vunpack.c.l.b16 %v213
    %v984 = vunpack.c.l.b16 %v214
    %v985 = vunpack.c.h.b16 %v214
    %v986 = vunpack.c.l.b16 %v215
    %v987 = vunpack.c.l.b16 %v216
    %v988 = vunpack.c.h.b16 %v216
    %v989 = vunpack.c.l.b16 %v217
    %v990 = vunpack.c.l.b16 %v218
    %v991 = vunpack.c.h.b16 %v218
    %v992 = vunpack.c.l.b16 %v219
    %v993 = vunpack.c.l.b16 %v220
    %v994 = vunpack.c.h.b16 %v220
    %v995 = vunpack.c.l.b16 %v221
    %v996 = vunpack.c.l.b16 %v222
    %v997 = vunpack.c.h.b16 %v222
    %v998 = vunpack.c.l.b16 %v223
    %v999 = vunpack.c.l.b16 %v224
    %v1000 = vunpack.c.h.b16 %v224
    %v1001 = vunpack.c.l.b16 %v225
    %v1002 = vunpack.c.l.b16 %v226
    %v1003 = vunpack.c.h.b16 %v226
    %v1004 = vunpack.c.l.b16 %v227
    %v1005 = vpack.c.b16 %v960, %v957
    %v1006 = vpack.c.b16 %v961, %v958
    %v1007 = vpack.c.b16 %v962, %v959
    %v1008 = vpack.c.b16 %v966, %v963
    %v1009 = vpack.c.b16 %v967, %v964
    %v1010 = vpack.c.b16 %v968, %v965
    %v1011 = vpack.c.b16 %v972, %v969
    %v1012 = vpack.c.b16 %v973, %v970
    %v1013 = vpack.c.b16 %v974, %v971
    %v1014 = vpack.c.b16 %v978, %v975
    %v1015 = vpack.c.b16 %v979, %v976
    %v1016 = vpack.c.b16 %v980, %v977
    %v1017 = vpack.c.b16 %v984, %v981
    %v1018 = vpack.c.b16 %v985, %v982
    %v1019 = vpack.c.b16 %v986, %v983
    %v1020 = vpack.c.b16 %v990, %v987
    %v1021 = vpack.c.b16 %v991, %v988
    %v1022 = vpack.c.b16 %v992, %v989
    %v1023 = vpack.c.b16 %v996, %v993
    %v1024 = vpack.c.b16 %v997, %v994
    %v1025 = vpack.c.b16 %v998, %v995
    %v1026 = vpack.c.b16 %v1002, %v999
    %v1027 = vpack.c.b16 %v1003, %v1000
    %v1028 = vpack.c.b16 %v1004, %v1001
    %1053 = vmatprep.subr.bf16.mxu0 %v1006
    %1054 = vmatpush1.bf16.msra.mxu0 %v1005
    %1055 = vmatprep.subr.bf16.mxu0 %v1009
    %1056 = vmatpush1.bf16.msra.mxu0 %v1008
    %1057 = vmatprep.subr.bf16.mxu0 %v1012
    %1058 = vmatpush1.bf16.msra.mxu0 %v1011
    %1059 = vmatprep.subr.bf16.mxu0 %v1015
    %1060 = vmatpush1.bf16.msra.mxu0 %v1014
    %1061 = vmatprep.subr.bf16.mxu0 %v1018
    %1062 = vmatpush1.bf16.msra.mxu0 %v1017
    %1063 = vmatprep.subr.bf16.mxu0 %v1021
    %1064 = vmatpush1.bf16.msra.mxu0 %v1020
    %1065 = vmatprep.subr.bf16.mxu0 %v1024
    %1066 = vmatpush1.bf16.msra.mxu0 %v1023
    %1067 = vmatprep.subr.bf16.mxu0 %v1027
    %1068 = vmatpush1.bf16.msra.mxu0 %v1026
    %1069 = vmatprep.subr.bf16.mxu0 0
    %1070 = vmatpush1.bf16.msra.mxu0 0
    %1071 = vmatprep.subr.bf16.mxu0 0
    %1072 = vmatpush1.bf16.msra.mxu0 0
    %1073 = vmatprep.subr.bf16.mxu0 0
    %1074 = vmatpush1.bf16.msra.mxu0 0
    %1075 = vmatprep.subr.bf16.mxu0 0
    %1076 = vmatpush1.bf16.msra.mxu0 0
    %1077 = vmatprep.subr.bf16.mxu0 0
    %1078 = vmatpush1.bf16.msra.mxu0 0
    %1079 = vmatprep.subr.bf16.mxu0 0
    %1080 = vmatpush1.bf16.msra.mxu0 0
    %1081 = vmatprep.subr.bf16.mxu0 0
    %1082 = vmatpush1.bf16.msra.mxu0 0
    %1083 = vmatprep.subr.bf16.mxu0 0
    %1084 = vmatpush1.bf16.msra.mxu0 0
    %1085 = vmatprep.mubr.bf16.mxu0 0
    %1086 = vmatmul.mubr.bf16.gmra.mrb[0].mxu0 %v924
    %v1087 = vpop.f32.mrb[0].mxu0
    %v1088 = vadd.f32 %v661, %v1087
    %v1089 = vpop.f32.mrb[0].mxu0
    %v1090 = vadd.f32 %v665, %v1089
    %v1091 = vpop.f32.mrb[0].mxu0
    %v1092 = vpop.f32.mrb[0].mxu0
    %1093 = vdwg.mxu0
    %1094 = vmatprep.subr.bf16.mxu0 0
    %1095 = vmatpush1.bf16.msra.mxu0 %v1007
    %1096 = vmatprep.subr.bf16.mxu0 0
    %1097 = vmatpush1.bf16.msra.mxu0 %v1010
    %1098 = vmatprep.subr.bf16.mxu0 0
    %1099 = vmatpush1.bf16.msra.mxu0 %v1013
    %1100 = vmatprep.subr.bf16.mxu0 0
    %1101 = vmatpush1.bf16.msra.mxu0 %v1016
    %1102 = vmatprep.subr.bf16.mxu0 0
    %1103 = vmatpush1.bf16.msra.mxu0 %v1019
    %1104 = vmatprep.subr.bf16.mxu0 0
    %1105 = vmatpush1.bf16.msra.mxu0 %v1022
    %1106 = vmatprep.subr.bf16.mxu0 0
    %1107 = vmatpush1.bf16.msra.mxu0 %v1025
    %1108 = vmatprep.subr.bf16.mxu0 0
    %1109 = vmatpush1.bf16.msra.mxu0 %v1028
    %1110 = vmatprep.subr.bf16.mxu0 0
    %1111 = vmatpush1.bf16.msra.mxu0 0
    %1112 = vmatprep.subr.bf16.mxu0 0
    %1113 = vmatpush1.bf16.msra.mxu0 0
    %1114 = vmatprep.subr.bf16.mxu0 0
    %1115 = vmatpush1.bf16.msra.mxu0 0
    %1116 = vmatprep.subr.bf16.mxu0 0
    %1117 = vmatpush1.bf16.msra.mxu0 0
    %1118 = vmatprep.subr.bf16.mxu0 0
    %1119 = vmatpush1.bf16.msra.mxu0 0
    %1120 = vmatprep.subr.bf16.mxu0 0
    %1121 = vmatpush1.bf16.msra.mxu0 0
    %1122 = vmatprep.subr.bf16.mxu0 0
    %1123 = vmatpush1.bf16.msra.mxu0 0
    %1124 = vmatprep.subr.bf16.mxu0 0
    %1125 = vmatpush1.bf16.msra.mxu0 0
    %1126 = vmatprep.mubr.bf16.mxu0 0
    %1127 = vmatmul.mubr.bf16.gmra.mrb[0].mxu0 %v924
    %v1128 = vpop.f32.mrb[0].mxu0
    %v1129 = vadd.f32 %v669, %v1128
    %v1130 = vpop.f32.mrb[0].mxu0
    %v1131 = vpop.f32.mrb[0].mxu0
    %v1132 = vpop.f32.mrb[0].mxu0
    %1133 = vdwg.mxu0
    %v1134 = vpack.c.bf16 %v922, %v922
    %v1167 = vunpack.c.l.b16 %v228
    %v1168 = vunpack.c.h.b16 %v228
    %v1169 = vunpack.c.l.b16 %v229
    %v1170 = vunpack.c.l.b16 %v230
    %v1171 = vunpack.c.h.b16 %v230
    %v1172 = vunpack.c.l.b16 %v231
    %v1173 = vunpack.c.l.b16 %v232
    %v1174 = vunpack.c.h.b16 %v232
    %v1175 = vunpack.c.l.b16 %v233
    %v1176 = vunpack.c.l.b16 %v234
    %v1177 = vunpack.c.h.b16 %v234
    %v1178 = vunpack.c.l.b16 %v235
    %v1179 = vunpack.c.l.b16 %v236
    %v1180 = vunpack.c.h.b16 %v236
    %v1181 = vunpack.c.l.b16 %v237
    %v1182 = vunpack.c.l.b16 %v238
    %v1183 = vunpack.c.h.b16 %v238
    %v1184 = vunpack.c.l.b16 %v239
    %v1185 = vunpack.c.l.b16 %v240
    %v1186 = vunpack.c.h.b16 %v240
    %v1187 = vunpack.c.l.b16 %v241
    %v1188 = vunpack.c.l.b16 %v242
    %v1189 = vunpack.c.h.b16 %v242
    %v1190 = vunpack.c.l.b16 %v243
    %v1191 = vunpack.c.l.b16 %v244
    %v1192 = vunpack.c.h.b16 %v244
    %v1193 = vunpack.c.l.b16 %v245
    %v1194 = vunpack.c.l.b16 %v246
    %v1195 = vunpack.c.h.b16 %v246
    %v1196 = vunpack.c.l.b16 %v247
    %v1197 = vunpack.c.l.b16 %v248
    %v1198 = vunpack.c.h.b16 %v248
    %v1199 = vunpack.c.l.b16 %v249
    %v1200 = vunpack.c.l.b16 %v250
    %v1201 = vunpack.c.h.b16 %v250
    %v1202 = vunpack.c.l.b16 %v251
    %v1203 = vunpack.c.l.b16 %v252
    %v1204 = vunpack.c.h.b16 %v252
    %v1205 = vunpack.c.l.b16 %v253
    %v1206 = vunpack.c.l.b16 %v254
    %v1207 = vunpack.c.h.b16 %v254
    %v1208 = vunpack.c.l.b16 %v255
    %v1209 = vunpack.c.l.b16 %v256
    %v1210 = vunpack.c.h.b16 %v256
    %v1211 = vunpack.c.l.b16 %v257
    %v1212 = vunpack.c.l.b16 %v258
    %v1213 = vunpack.c.h.b16 %v258
    %v1214 = vunpack.c.l.b16 %v259
    %v1215 = vpack.c.b16 %v1170, %v1167
    %v1216 = vpack.c.b16 %v1171, %v1168
    %v1217 = vpack.c.b16 %v1172, %v1169
    %v1218 = vpack.c.b16 %v1176, %v1173
    %v1219 = vpack.c.b16 %v1177, %v1174
    %v1220 = vpack.c.b16 %v1178, %v1175
    %v1221 = vpack.c.b16 %v1182, %v1179
    %v1222 = vpack.c.b16 %v1183, %v1180
    %v1223 = vpack.c.b16 %v1184, %v1181
    %v1224 = vpack.c.b16 %v1188, %v1185
    %v1225 = vpack.c.b16 %v1189, %v1186
    %v1226 = vpack.c.b16 %v1190, %v1187
    %v1227 = vpack.c.b16 %v1194, %v1191
    %v1228 = vpack.c.b16 %v1195, %v1192
    %v1229 = vpack.c.b16 %v1196, %v1193
    %v1230 = vpack.c.b16 %v1200, %v1197
    %v1231 = vpack.c.b16 %v1201, %v1198
    %v1232 = vpack.c.b16 %v1202, %v1199
    %v1233 = vpack.c.b16 %v1206, %v1203
    %v1234 = vpack.c.b16 %v1207, %v1204
    %v1235 = vpack.c.b16 %v1208, %v1205
    %v1236 = vpack.c.b16 %v1212, %v1209
    %v1237 = vpack.c.b16 %v1213, %v1210
    %v1238 = vpack.c.b16 %v1214, %v1211
    %1263 = vmatprep.subr.bf16.mxu0 %v1216
    %1264 = vmatpush1.bf16.msra.mxu0 %v1215
    %1265 = vmatprep.subr.bf16.mxu0 %v1219
    %1266 = vmatpush1.bf16.msra.mxu0 %v1218
    %1267 = vmatprep.subr.bf16.mxu0 %v1222
    %1268 = vmatpush1.bf16.msra.mxu0 %v1221
    %1269 = vmatprep.subr.bf16.mxu0 %v1225
    %1270 = vmatpush1.bf16.msra.mxu0 %v1224
    %1271 = vmatprep.subr.bf16.mxu0 %v1228
    %1272 = vmatpush1.bf16.msra.mxu0 %v1227
    %1273 = vmatprep.subr.bf16.mxu0 %v1231
    %1274 = vmatpush1.bf16.msra.mxu0 %v1230
    %1275 = vmatprep.subr.bf16.mxu0 %v1234
    %1276 = vmatpush1.bf16.msra.mxu0 %v1233
    %1277 = vmatprep.subr.bf16.mxu0 %v1237
    %1278 = vmatpush1.bf16.msra.mxu0 %v1236
    %1279 = vmatprep.subr.bf16.mxu0 0
    %1280 = vmatpush1.bf16.msra.mxu0 0
    %1281 = vmatprep.subr.bf16.mxu0 0
    %1282 = vmatpush1.bf16.msra.mxu0 0
    %1283 = vmatprep.subr.bf16.mxu0 0
    %1284 = vmatpush1.bf16.msra.mxu0 0
    %1285 = vmatprep.subr.bf16.mxu0 0
    %1286 = vmatpush1.bf16.msra.mxu0 0
    %1287 = vmatprep.subr.bf16.mxu0 0
    %1288 = vmatpush1.bf16.msra.mxu0 0
    %1289 = vmatprep.subr.bf16.mxu0 0
    %1290 = vmatpush1.bf16.msra.mxu0 0
    %1291 = vmatprep.subr.bf16.mxu0 0
    %1292 = vmatpush1.bf16.msra.mxu0 0
    %1293 = vmatprep.subr.bf16.mxu0 0
    %1294 = vmatpush1.bf16.msra.mxu0 0
    %1295 = vmatprep.mubr.bf16.mxu0 0
    %1296 = vmatmul.mubr.bf16.gmra.mrb[0].mxu0 %v1134
    %v1297 = vpop.f32.mrb[0].mxu0
    %v1298 = vadd.f32 %v678, %v1297
    %v1299 = vpop.f32.mrb[0].mxu0
    %v1300 = vadd.f32 %v682, %v1299
    %v1301 = vpop.f32.mrb[0].mxu0
    %v1302 = vpop.f32.mrb[0].mxu0
    %1303 = vdwg.mxu0
    %1304 = vmatprep.subr.bf16.mxu0 0
    %1305 = vmatpush1.bf16.msra.mxu0 %v1217
    %1306 = vmatprep.subr.bf16.mxu0 0
    %1307 = vmatpush1.bf16.msra.mxu0 %v1220
    %1308 = vmatprep.subr.bf16.mxu0 0
    %1309 = vmatpush1.bf16.msra.mxu0 %v1223
    %1310 = vmatprep.subr.bf16.mxu0 0
    %1311 = vmatpush1.bf16.msra.mxu0 %v1226
    %1312 = vmatprep.subr.bf16.mxu0 0
    %1313 = vmatpush1.bf16.msra.mxu0 %v1229
    %1314 = vmatprep.subr.bf16.mxu0 0
    %1315 = vmatpush1.bf16.msra.mxu0 %v1232
    %1316 = vmatprep.subr.bf16.mxu0 0
    %1317 = vmatpush1.bf16.msra.mxu0 %v1235
    %1318 = vmatprep.subr.bf16.mxu0 0
    %1319 = vmatpush1.bf16.msra.mxu0 %v1238
    %1320 = vmatprep.subr.bf16.mxu0 0
    %1321 = vmatpush1.bf16.msra.mxu0 0
    %1322 = vmatprep.subr.bf16.mxu0 0
    %1323 = vmatpush1.bf16.msra.mxu0 0
    %1324 = vmatprep.subr.bf16.mxu0 0
    %1325 = vmatpush1.bf16.msra.mxu0 0
    %1326 = vmatprep.subr.bf16.mxu0 0
    %1327 = vmatpush1.bf16.msra.mxu0 0
    %1328 = vmatprep.subr.bf16.mxu0 0
    %1329 = vmatpush1.bf16.msra.mxu0 0
    %1330 = vmatprep.subr.bf16.mxu0 0
    %1331 = vmatpush1.bf16.msra.mxu0 0
    %1332 = vmatprep.subr.bf16.mxu0 0
    %1333 = vmatpush1.bf16.msra.mxu0 0
    %1334 = vmatprep.subr.bf16.mxu0 0
    %1335 = vmatpush1.bf16.msra.mxu0 0
    %1336 = vmatprep.mubr.bf16.mxu0 0
    %1337 = vmatmul.mubr.bf16.gmra.mrb[0].mxu0 %v1134
    %v1338 = vpop.f32.mrb[0].mxu0
    %v1339 = vadd.f32 %v686, %v1338
    %v1340 = vpop.f32.mrb[0].mxu0
    %v1341 = vpop.f32.mrb[0].mxu0
    %v1342 = vpop.f32.mrb[0].mxu0
    %1343 = vdwg.mxu0
    %v1344 = vadd.f32 %v1088, %v1298
    %v1345 = vxor.u32 %v1344, 2147483648
    %v1346 = vmul.f32 %v1345, 1.442695
    %v1347 = vpow.pop %v1346
    %v1348 = vadd.f32 %v1347, 1.0
    %v1349 = vrcp.pop %v1348
    %v1350 = vmul.f32 1.0, %v1349
    %v1351 = vadd.f32 %v1090, %v1300
    %v1352 = vxor.u32 %v1351, 2147483648
    %v1353 = vmul.f32 %v1352, 1.442695
    %v1354 = vpow.pop %v1353
    %v1355 = vadd.f32 %v1354, 1.0
    %v1356 = vrcp.pop %v1355
    %v1357 = vmul.f32 1.0, %v1356
    %v1358 = vmul.f32 %v1350, %v1339
    %v1359 = vadd.f32 %v1129, %v1358
    %v1360 = vtanh.pop %v1359
    %v1361 = vsub.f32 1.0, %v1357
    %v1362 = vmul.f32 %v1361, %v1360
    %v1363 = vmul.f32 %v1357, %v922
    %v1364 = vadd.f32 %v1362, %v1363
    %s1365 = scalar_lea.vmem [#allocation2], 24
    %v1366 = vld [vmem:[%s1365] sm:$0xff]
    %v1367 = vld [vmem:[%s1365 + $0x8] sm:$0xff]
    %v1368 = vld [vmem:[%s1365 + $0x10] sm:$0xff]
    %v1369 = vpack.c.bf16 %v1364, %v1364
    %1370 = vmatprep.subr.bf16.mxu0 %v774
    %1371 = vmatpush1.bf16.msra.mxu0 %v773
    %1372 = vmatprep.subr.bf16.mxu0 %v777
    %1373 = vmatpush1.bf16.msra.mxu0 %v776
    %1374 = vmatprep.subr.bf16.mxu0 %v780
    %1375 = vmatpush1.bf16.msra.mxu0 %v779
    %1376 = vmatprep.subr.bf16.mxu0 %v783
    %1377 = vmatpush1.bf16.msra.mxu0 %v782
    %1378 = vmatprep.subr.bf16.mxu0 %v786
    %1379 = vmatpush1.bf16.msra.mxu0 %v785
    %1380 = vmatprep.subr.bf16.mxu0 %v789
    %1381 = vmatpush1.bf16.msra.mxu0 %v788
    %1382 = vmatprep.subr.bf16.mxu0 %v792
    %1383 = vmatpush1.bf16.msra.mxu0 %v791
    %1384 = vmatprep.subr.bf16.mxu0 %v795
    %1385 = vmatpush1.bf16.msra.mxu0 %v794
    %1386 = vmatprep.subr.bf16.mxu0 0
    %1387 = vmatpush1.bf16.msra.mxu0 0
    %1388 = vmatprep.subr.bf16.mxu0 0
    %1389 = vmatpush1.bf16.msra.mxu0 0
    %1390 = vmatprep.subr.bf16.mxu0 0
    %1391 = vmatpush1.bf16.msra.mxu0 0
    %1392 = vmatprep.subr.bf16.mxu0 0
    %1393 = vmatpush1.bf16.msra.mxu0 0
    %1394 = vmatprep.subr.bf16.mxu0 0
    %1395 = vmatpush1.bf16.msra.mxu0 0
    %1396 = vmatprep.subr.bf16.mxu0 0
    %1397 = vmatpush1.bf16.msra.mxu0 0
    %1398 = vmatprep.subr.bf16.mxu0 0
    %1399 = vmatpush1.bf16.msra.mxu0 0
    %1400 = vmatprep.subr.bf16.mxu0 0
    %1401 = vmatpush1.bf16.msra.mxu0 0
    %1402 = vmatprep.mubr.bf16.mxu0 0
    %1403 = vmatmul.mubr.bf16.gmra.mrb[0].mxu0 %v1369
    %v1404 = vpop.f32.mrb[0].mxu0
    %v1405 = vadd.f32 %v644, %v1404
    %v1406 = vpop.f32.mrb[0].mxu0
    %v1407 = vadd.f32 %v648, %v1406
    %v1408 = vpop.f32.mrb[0].mxu0
    %v1409 = vpop.f32.mrb[0].mxu0
    %1410 = vdwg.mxu0
    %1411 = vmatprep.subr.bf16.mxu0 0
    %1412 = vmatpush1.bf16.msra.mxu0 %v775
    %1413 = vmatprep.subr.bf16.mxu0 0
    %1414 = vmatpush1.bf16.msra.mxu0 %v778
    %1415 = vmatprep.subr.bf16.mxu0 0
    %1416 = vmatpush1.bf16.msra.mxu0 %v781
    %1417 = vmatprep.subr.bf16.mxu0 0
    %1418 = vmatpush1.bf16.msra.mxu0 %v784
    %1419 = vmatprep.subr.bf16.mxu0 0
    %1420 = vmatpush1.bf16.msra.mxu0 %v787
    %1421 = vmatprep.subr.bf16.mxu0 0
    %1422 = vmatpush1.bf16.msra.mxu0 %v790
    %1423 = vmatprep.subr.bf16.mxu0 0
    %1424 = vmatpush1.bf16.msra.mxu0 %v793
    %1425 = vmatprep.subr.bf16.mxu0 0
    %1426 = vmatpush1.bf16.msra.mxu0 %v796
    %1427 = vmatprep.subr.bf16.mxu0 0
    %1428 = vmatpush1.bf16.msra.mxu0 0
    %1429 = vmatprep.subr.bf16.mxu0 0
    %1430 = vmatpush1.bf16.msra.mxu0 0
    %1431 = vmatprep.subr.bf16.mxu0 0
    %1432 = vmatpush1.bf16.msra.mxu0 0
    %1433 = vmatprep.subr.bf16.mxu0 0
    %1434 = vmatpush1.bf16.msra.mxu0 0
    %1435 = vmatprep.subr.bf16.mxu0 0
    %1436 = vmatpush1.bf16.msra.mxu0 0
    %1437 = vmatprep.subr.bf16.mxu0 0
    %1438 = vmatpush1.bf16.msra.mxu0 0
    %1439 = vmatprep.subr.bf16.mxu0 0
    %1440 = vmatpush1.bf16.msra.mxu0 0
    %1441 = vmatprep.subr.bf16.mxu0 0
    %1442 = vmatpush1.bf16.msra.mxu0 0
    %1443 = vmatprep.mubr.bf16.mxu0 0
    %1444 = vmatmul.mubr.bf16.gmra.mrb[0].mxu0 %v1369
    %v1445 = vpop.f32.mrb[0].mxu0
    %v1446 = vadd.f32 %v652, %v1445
    %v1447 = vpop.f32.mrb[0].mxu0
    %v1448 = vpop.f32.mrb[0].mxu0
    %v1449 = vpop.f32.mrb[0].mxu0
    %1450 = vdwg.mxu0
    %v1451 = vadd.f32 %v1366, %v1405
    %v1452 = vxor.u32 %v1451, 2147483648
    %v1453 = vmul.f32 %v1452, 1.442695
    %v1454 = vpow.pop %v1453
    %v1455 = vadd.f32 %v1454, 1.0
    %v1456 = vrcp.pop %v1455
    %v1457 = vmul.f32 1.0, %v1456
    %v1458 = vadd.f32 %v1367, %v1407
    %v1459 = vxor.u32 %v1458, 2147483648
    %v1460 = vmul.f32 %v1459, 1.442695
    %v1461 = vpow.pop %v1460
    %v1462 = vadd.f32 %v1461, 1.0
    %v1463 = vrcp.pop %v1462
    %v1464 = vmul.f32 1.0, %v1463
    %v1465 = vmul.f32 %v1457, %v1446
    %v1466 = vadd.f32 %v1368, %v1465
    %v1467 = vtanh.pop %v1466
    %v1468 = vsub.f32 1.0, %v1464
    %v1469 = vmul.f32 %v1468, %v1467
    %v1470 = vmul.f32 %v1464, %v1364
    %v1471 = vadd.f32 %v1469, %v1470
    %v1472 = vmul.f32 %v1471, %v319
    %v1473 = vpack.c.bf16 %v1472, %v1472
    %1474 = vmatprep.subr.bf16.mxu0 %v1006
    %1475 = vmatpush1.bf16.msra.mxu0 %v1005
    %1476 = vmatprep.subr.bf16.mxu0 %v1009
    %1477 = vmatpush1.bf16.msra.mxu0 %v1008
    %1478 = vmatprep.subr.bf16.mxu0 %v1012
    %1479 = vmatpush1.bf16.msra.mxu0 %v1011
    %1480 = vmatprep.subr.bf16.mxu0 %v1015
    %1481 = vmatpush1.bf16.msra.mxu0 %v1014
    %1482 = vmatprep.subr.bf16.mxu0 %v1018
    %1483 = vmatpush1.bf16.msra.mxu0 %v1017
    %1484 = vmatprep.subr.bf16.mxu0 %v1021
    %1485 = vmatpush1.bf16.msra.mxu0 %v1020
    %1486 = vmatprep.subr.bf16.mxu0 %v1024
    %1487 = vmatpush1.bf16.msra.mxu0 %v1023
    %1488 = vmatprep.subr.bf16.mxu0 %v1027
    %1489 = vmatpush1.bf16.msra.mxu0 %v1026
    %1490 = vmatprep.subr.bf16.mxu0 0
    %1491 = vmatpush1.bf16.msra.mxu0 0
    %1492 = vmatprep.subr.bf16.mxu0 0
    %1493 = vmatpush1.bf16.msra.mxu0 0
    %1494 = vmatprep.subr.bf16.mxu0 0
    %1495 = vmatpush1.bf16.msra.mxu0 0
    %1496 = vmatprep.subr.bf16.mxu0 0
    %1497 = vmatpush1.bf16.msra.mxu0 0
    %1498 = vmatprep.subr.bf16.mxu0 0
    %1499 = vmatpush1.bf16.msra.mxu0 0
    %1500 = vmatprep.subr.bf16.mxu0 0
    %1501 = vmatpush1.bf16.msra.mxu0 0
    %1502 = vmatprep.subr.bf16.mxu0 0
    %1503 = vmatpush1.bf16.msra.mxu0 0
    %1504 = vmatprep.subr.bf16.mxu0 0
    %1505 = vmatpush1.bf16.msra.mxu0 0
    %1506 = vmatprep.mubr.bf16.mxu0 0
    %1507 = vmatmul.mubr.bf16.gmra.mrb[0].mxu0 %v1473
    %v1508 = vpop.f32.mrb[0].mxu0
    %v1509 = vadd.f32 %v661, %v1508
    %v1510 = vpop.f32.mrb[0].mxu0
    %v1511 = vadd.f32 %v665, %v1510
    %v1512 = vpop.f32.mrb[0].mxu0
    %v1513 = vpop.f32.mrb[0].mxu0
    %1514 = vdwg.mxu0
    %1515 = vmatprep.subr.bf16.mxu0 0
    %1516 = vmatpush1.bf16.msra.mxu0 %v1007
    %1517 = vmatprep.subr.bf16.mxu0 0
    %1518 = vmatpush1.bf16.msra.mxu0 %v1010
    %1519 = vmatprep.subr.bf16.mxu0 0
    %1520 = vmatpush1.bf16.msra.mxu0 %v1013
    %1521 = vmatprep.subr.bf16.mxu0 0
    %1522 = vmatpush1.bf16.msra.mxu0 %v1016
    %1523 = vmatprep.subr.bf16.mxu0 0
    %1524 = vmatpush1.bf16.msra.mxu0 %v1019
    %1525 = vmatprep.subr.bf16.mxu0 0
    %1526 = vmatpush1.bf16.msra.mxu0 %v1022
    %1527 = vmatprep.subr.bf16.mxu0 0
    %1528 = vmatpush1.bf16.msra.mxu0 %v1025
    %1529 = vmatprep.subr.bf16.mxu0 0
    %1530 = vmatpush1.bf16.msra.mxu0 %v1028
    %1531 = vmatprep.subr.bf16.mxu0 0
    %1532 = vmatpush1.bf16.msra.mxu0 0
    %1533 = vmatprep.subr.bf16.mxu0 0
    %1534 = vmatpush1.bf16.msra.mxu0 0
    %1535 = vmatprep.subr.bf16.mxu0 0
    %1536 = vmatpush1.bf16.msra.mxu0 0
    %1537 = vmatprep.subr.bf16.mxu0 0
    %1538 = vmatpush1.bf16.msra.mxu0 0
    %1539 = vmatprep.subr.bf16.mxu0 0
    %1540 = vmatpush1.bf16.msra.mxu0 0
    %1541 = vmatprep.subr.bf16.mxu0 0
    %1542 = vmatpush1.bf16.msra.mxu0 0
    %1543 = vmatprep.subr.bf16.mxu0 0
    %1544 = vmatpush1.bf16.msra.mxu0 0
    %1545 = vmatprep.subr.bf16.mxu0 0
    %1546 = vmatpush1.bf16.msra.mxu0 0
    %1547 = vmatprep.mubr.bf16.mxu0 0
    %1548 = vmatmul.mubr.bf16.gmra.mrb[0].mxu0 %v1473
    %v1549 = vpop.f32.mrb[0].mxu0
    %v1550 = vadd.f32 %v669, %v1549
    %v1551 = vpop.f32.mrb[0].mxu0
    %v1552 = vpop.f32.mrb[0].mxu0
    %v1553 = vpop.f32.mrb[0].mxu0
    %1554 = vdwg.mxu0
    %v1555 = vpack.c.bf16 %v1471, %v1471
    %1556 = vmatprep.subr.bf16.mxu0 %v1216
    %1557 = vmatpush1.bf16.msra.mxu0 %v1215
    %1558 = vmatprep.subr.bf16.mxu0 %v1219
    %1559 = vmatpush1.bf16.msra.mxu0 %v1218
    %1560 = vmatprep.subr.bf16.mxu0 %v1222
    %1561 = vmatpush1.bf16.msra.mxu0 %v1221
    %1562 = vmatprep.subr.bf16.mxu0 %v1225
    %1563 = vmatpush1.bf16.msra.mxu0 %v1224
    %1564 = vmatprep.subr.bf16.mxu0 %v1228
    %1565 = vmatpush1.bf16.msra.mxu0 %v1227
    %1566 = vmatprep.subr.bf16.mxu0 %v1231
    %1567 = vmatpush1.bf16.msra.mxu0 %v1230
    %1568 = vmatprep.subr.bf16.mxu0 %v1234
    %1569 = vmatpush1.bf16.msra.mxu0 %v1233
    %1570 = vmatprep.subr.bf16.mxu0 %v1237
    %1571 = vmatpush1.bf16.msra.mxu0 %v1236
    %1572 = vmatprep.subr.bf16.mxu0 0
    %1573 = vmatpush1.bf16.msra.mxu0 0
    %1574 = vmatprep.subr.bf16.mxu0 0
    %1575 = vmatpush1.bf16.msra.mxu0 0
    %1576 = vmatprep.subr.bf16.mxu0 0
    %1577 = vmatpush1.bf16.msra.mxu0 0
    %1578 = vmatprep.subr.bf16.mxu0 0
    %1579 = vmatpush1.bf16.msra.mxu0 0
    %1580 = vmatprep.subr.bf16.mxu0 0
    %1581 = vmatpush1.bf16.msra.mxu0 0
    %1582 = vmatprep.subr.bf16.mxu0 0
    %1583 = vmatpush1.bf16.msra.mxu0 0
    %1584 = vmatprep.subr.bf16.mxu0 0
    %1585 = vmatpush1.bf16.msra.mxu0 0
    %1586 = vmatprep.subr.bf16.mxu0 0
    %1587 = vmatpush1.bf16.msra.mxu0 0
    %1588 = vmatprep.mubr.bf16.mxu0 0
    %1589 = vmatmul.mubr.bf16.gmra.mrb[0].mxu0 %v1555
    %v1590 = vpop.f32.mrb[0].mxu0
    %v1591 = vadd.f32 %v678, %v1590
    %v1592 = vpop.f32.mrb[0].mxu0
    %v1593 = vadd.f32 %v682, %v1592
    %v1594 = vpop.f32.mrb[0].mxu0
    %v1595 = vpop.f32.mrb[0].mxu0
    %1596 = vdwg.mxu0
    %1597 = vmatprep.subr.bf16.mxu0 0
    %1598 = vmatpush1.bf16.msra.mxu0 %v1217
    %1599 = vmatprep.subr.bf16.mxu0 0
    %1600 = vmatpush1.bf16.msra.mxu0 %v1220
    %1601 = vmatprep.subr.bf16.mxu0 0
    %1602 = vmatpush1.bf16.msra.mxu0 %v1223
    %1603 = vmatprep.subr.bf16.mxu0 0
    %1604 = vmatpush1.bf16.msra.mxu0 %v1226
    %1605 = vmatprep.subr.bf16.mxu0 0
    %1606 = vmatpush1.bf16.msra.mxu0 %v1229
    %1607 = vmatprep.subr.bf16.mxu0 0
    %1608 = vmatpush1.bf16.msra.mxu0 %v1232
    %1609 = vmatprep.subr.bf16.mxu0 0
    %1610 = vmatpush1.bf16.msra.mxu0 %v1235
    %1611 = vmatprep.subr.bf16.mxu0 0
    %1612 = vmatpush1.bf16.msra.mxu0 %v1238
    %1613 = vmatprep.subr.bf16.mxu0 0
    %1614 = vmatpush1.bf16.msra.mxu0 0
    %1615 = vmatprep.subr.bf16.mxu0 0
    %1616 = vmatpush1.bf16.msra.mxu0 0
    %1617 = vmatprep.subr.bf16.mxu0 0
    %1618 = vmatpush1.bf16.msra.mxu0 0
    %1619 = vmatprep.subr.bf16.mxu0 0
    %1620 = vmatpush1.bf16.msra.mxu0 0
    %1621 = vmatprep.subr.bf16.mxu0 0
    %1622 = vmatpush1.bf16.msra.mxu0 0
    %1623 = vmatprep.subr.bf16.mxu0 0
    %1624 = vmatpush1.bf16.msra.mxu0 0
    %1625 = vmatprep.subr.bf16.mxu0 0
    %1626 = vmatpush1.bf16.msra.mxu0 0
    %1627 = vmatprep.subr.bf16.mxu0 0
    %1628 = vmatpush1.bf16.msra.mxu0 0
    %1629 = vmatprep.mubr.bf16.mxu0 0
    %1630 = vmatmul.mubr.bf16.gmra.mrb[0].mxu0 %v1555
    %v1631 = vpop.f32.mrb[0].mxu0
    %v1632 = vadd.f32 %v686, %v1631
    %v1633 = vpop.f32.mrb[0].mxu0
    %v1634 = vpop.f32.mrb[0].mxu0
    %v1635 = vpop.f32.mrb[0].mxu0
    %1636 = vdwg.mxu0
    %v1637 = vadd.f32 %v1509, %v1591
    %v1638 = vxor.u32 %v1637, 2147483648
    %v1639 = vmul.f32 %v1638, 1.442695
    %v1640 = vpow.pop %v1639
    %v1641 = vadd.f32 %v1640, 1.0
    %v1642 = vrcp.pop %v1641
    %v1643 = vmul.f32 1.0, %v1642
    %v1644 = vadd.f32 %v1511, %v1593
    %v1645 = vxor.u32 %v1644, 2147483648
    %v1646 = vmul.f32 %v1645, 1.442695
    %v1647 = vpow.pop %v1646
    %v1648 = vadd.f32 %v1647, 1.0
    %v1649 = vrcp.pop %v1648
    %v1650 = vmul.f32 1.0, %v1649
    %v1651 = vmul.f32 %v1643, %v1632
    %v1652 = vadd.f32 %v1550, %v1651
    %v1653 = vtanh.pop %v1652
    %v1654 = vsub.f32 1.0, %v1650
    %v1655 = vmul.f32 %v1654, %v1653
    %v1656 = vmul.f32 %v1650, %v1471
    %v1657 = vadd.f32 %v1655, %v1656
    %s1658 = scalar_lea.vmem [#allocation2], 48
    %v1659 = vld [vmem:[%s1658] sm:$0xff]
    %v1660 = vld [vmem:[%s1658 + $0x8] sm:$0xff]
    %v1661 = vld [vmem:[%s1658 + $0x10] sm:$0xff]
    %v1662 = vpack.c.bf16 %v1657, %v1657
    %1663 = vmatprep.subr.bf16.mxu0 %v774
    %1664 = vmatpush1.bf16.msra.mxu0 %v773
    %1665 = vmatprep.subr.bf16.mxu0 %v777
    %1666 = vmatpush1.bf16.msra.mxu0 %v776
    %1667 = vmatprep.subr.bf16.mxu0 %v780
    %1668 = vmatpush1.bf16.msra.mxu0 %v779
    %1669 = vmatprep.subr.bf16.mxu0 %v783
    %1670 = vmatpush1.bf16.msra.mxu0 %v782
    %1671 = vmatprep.subr.bf16.mxu0 %v786
    %1672 = vmatpush1.bf16.msra.mxu0 %v785
    %1673 = vmatprep.subr.bf16.mxu0 %v789
    %1674 = vmatpush1.bf16.msra.mxu0 %v788
    %1675 = vmatprep.subr.bf16.mxu0 %v792
    %1676 = vmatpush1.bf16.msra.mxu0 %v791
    %1677 = vmatprep.subr.bf16.mxu0 %v795
    %1678 = vmatpush1.bf16.msra.mxu0 %v794
    %1679 = vmatprep.subr.bf16.mxu0 0
    %1680 = vmatpush1.bf16.msra.mxu0 0
    %1681 = vmatprep.subr.bf16.mxu0 0
    %1682 = vmatpush1.bf16.msra.mxu0 0
    %1683 = vmatprep.subr.bf16.mxu0 0
    %1684 = vmatpush1.bf16.msra.mxu0 0
    %1685 = vmatprep.subr.bf16.mxu0 0
    %1686 = vmatpush1.bf16.msra.mxu0 0
    %1687 = vmatprep.subr.bf16.mxu0 0
    %1688 = vmatpush1.bf16.msra.mxu0 0
    %1689 = vmatprep.subr.bf16.mxu0 0
    %1690 = vmatpush1.bf16.msra.mxu0 0
    %1691 = vmatprep.subr.bf16.mxu0 0
    %1692 = vmatpush1.bf16.msra.mxu0 0
    %1693 = vmatprep.subr.bf16.mxu0 0
    %1694 = vmatpush1.bf16.msra.mxu0 0
    %1695 = vmatprep.mubr.bf16.mxu0 0
    %1696 = vmatmul.mubr.bf16.gmra.mrb[0].mxu0 %v1662
    %v1697 = vpop.f32.mrb[0].mxu0
    %v1698 = vadd.f32 %v644, %v1697
    %v1699 = vpop.f32.mrb[0].mxu0
    %v1700 = vadd.f32 %v648, %v1699
    %v1701 = vpop.f32.mrb[0].mxu0
    %v1702 = vpop.f32.mrb[0].mxu0
    %1703 = vdwg.mxu0
    %1704 = vmatprep.subr.bf16.mxu0 0
    %1705 = vmatpush1.bf16.msra.mxu0 %v775
    %1706 = vmatprep.subr.bf16.mxu0 0
    %1707 = vmatpush1.bf16.msra.mxu0 %v778
    %1708 = vmatprep.subr.bf16.mxu0 0
    %1709 = vmatpush1.bf16.msra.mxu0 %v781
    %1710 = vmatprep.subr.bf16.mxu0 0
    %1711 = vmatpush1.bf16.msra.mxu0 %v784
    %1712 = vmatprep.subr.bf16.mxu0 0
    %1713 = vmatpush1.bf16.msra.mxu0 %v787
    %1714 = vmatprep.subr.bf16.mxu0 0
    %1715 = vmatpush1.bf16.msra.mxu0 %v790
    %1716 = vmatprep.subr.bf16.mxu0 0
    %1717 = vmatpush1.bf16.msra.mxu0 %v793
    %1718 = vmatprep.subr.bf16.mxu0 0
    %1719 = vmatpush1.bf16.msra.mxu0 %v796
    %1720 = vmatprep.subr.bf16.mxu0 0
    %1721 = vmatpush1.bf16.msra.mxu0 0
    %1722 = vmatprep.subr.bf16.mxu0 0
    %1723 = vmatpush1.bf16.msra.mxu0 0
    %1724 = vmatprep.subr.bf16.mxu0 0
    %1725 = vmatpush1.bf16.msra.mxu0 0
    %1726 = vmatprep.subr.bf16.mxu0 0
    %1727 = vmatpush1.bf16.msra.mxu0 0
    %1728 = vmatprep.subr.bf16.mxu0 0
    %1729 = vmatpush1.bf16.msra.mxu0 0
    %1730 = vmatprep.subr.bf16.mxu0 0
    %1731 = vmatpush1.bf16.msra.mxu0 0
    %1732 = vmatprep.subr.bf16.mxu0 0
    %1733 = vmatpush1.bf16.msra.mxu0 0
    %1734 = vmatprep.subr.bf16.mxu0 0
    %1735 = vmatpush1.bf16.msra.mxu0 0
    %1736 = vmatprep.mubr.bf16.mxu0 0
    %1737 = vmatmul.mubr.bf16.gmra.mrb[0].mxu0 %v1662
    %v1738 = vpop.f32.mrb[0].mxu0
    %v1739 = vadd.f32 %v652, %v1738
    %v1740 = vpop.f32.mrb[0].mxu0
    %v1741 = vpop.f32.mrb[0].mxu0
    %v1742 = vpop.f32.mrb[0].mxu0
    %1743 = vdwg.mxu0
    %v1744 = vadd.f32 %v1659, %v1698
    %v1745 = vxor.u32 %v1744, 2147483648
    %v1746 = vmul.f32 %v1745, 1.442695
    %v1747 = vpow.pop %v1746
    %v1748 = vadd.f32 %v1747, 1.0
    %v1749 = vrcp.pop %v1748
    %v1750 = vmul.f32 1.0, %v1749
    %v1751 = vadd.f32 %v1660, %v1700
    %v1752 = vxor.u32 %v1751, 2147483648
    %v1753 = vmul.f32 %v1752, 1.442695
    %v1754 = vpow.pop %v1753
    %v1755 = vadd.f32 %v1754, 1.0
    %v1756 = vrcp.pop %v1755
    %v1757 = vmul.f32 1.0, %v1756
    %v1758 = vmul.f32 %v1750, %v1739
    %v1759 = vadd.f32 %v1661, %v1758
    %v1760 = vtanh.pop %v1759
    %v1761 = vsub.f32 1.0, %v1757
    %v1762 = vmul.f32 %v1761, %v1760
    %v1763 = vmul.f32 %v1757, %v1657
    %v1764 = vadd.f32 %v1762, %v1763
    %v1765 = vmul.f32 %v1764, %v319
    %v1766 = vpack.c.bf16 %v1765, %v1765
    %1767 = vmatprep.subr.bf16.mxu0 %v1006
    %1768 = vmatpush1.bf16.msra.mxu0 %v1005
    %1769 = vmatprep.subr.bf16.mxu0 %v1009
    %1770 = vmatpush1.bf16.msra.mxu0 %v1008
    %1771 = vmatprep.subr.bf16.mxu0 %v1012
    %1772 = vmatpush1.bf16.msra.mxu0 %v1011
    %1773 = vmatprep.subr.bf16.mxu0 %v1015
    %1774 = vmatpush1.bf16.msra.mxu0 %v1014
    %1775 = vmatprep.subr.bf16.mxu0 %v1018
    %1776 = vmatpush1.bf16.msra.mxu0 %v1017
    %1777 = vmatprep.subr.bf16.mxu0 %v1021
    %1778 = vmatpush1.bf16.msra.mxu0 %v1020
    %1779 = vmatprep.subr.bf16.mxu0 %v1024
    %1780 = vmatpush1.bf16.msra.mxu0 %v1023
    %1781 = vmatprep.subr.bf16.mxu0 %v1027
    %1782 = vmatpush1.bf16.msra.mxu0 %v1026
    %1783 = vmatprep.subr.bf16.mxu0 0
    %1784 = vmatpush1.bf16.msra.mxu0 0
    %1785 = vmatprep.subr.bf16.mxu0 0
    %1786 = vmatpush1.bf16.msra.mxu0 0
    %1787 = vmatprep.subr.bf16.mxu0 0
    %1788 = vmatpush1.bf16.msra.mxu0 0
    %1789 = vmatprep.subr.bf16.mxu0 0
    %1790 = vmatpush1.bf16.msra.mxu0 0
    %1791 = vmatprep.subr.bf16.mxu0 0
    %1792 = vmatpush1.bf16.msra.mxu0 0
    %1793 = vmatprep.subr.bf16.mxu0 0
    %1794 = vmatpush1.bf16.msra.mxu0 0
    %1795 = vmatprep.subr.bf16.mxu0 0
    %1796 = vmatpush1.bf16.msra.mxu0 0
    %1797 = vmatprep.subr.bf16.mxu0 0
    %1798 = vmatpush1.bf16.msra.mxu0 0
    %1799 = vmatprep.mubr.bf16.mxu0 0
    %1800 = vmatmul.mubr.bf16.gmra.mrb[0].mxu0 %v1766
    %v1801 = vpop.f32.mrb[0].mxu0
    %v1802 = vadd.f32 %v661, %v1801
    %v1803 = vpop.f32.mrb[0].mxu0
    %v1804 = vadd.f32 %v665, %v1803
    %v1805 = vpop.f32.mrb[0].mxu0
    %v1806 = vpop.f32.mrb[0].mxu0
    %1807 = vdwg.mxu0
    %1808 = vmatprep.subr.bf16.mxu0 0
    %1809 = vmatpush1.bf16.msra.mxu0 %v1007
    %1810 = vmatprep.subr.bf16.mxu0 0
    %1811 = vmatpush1.bf16.msra.mxu0 %v1010
    %1812 = vmatprep.subr.bf16.mxu0 0
    %1813 = vmatpush1.bf16.msra.mxu0 %v1013
    %1814 = vmatprep.subr.bf16.mxu0 0
    %1815 = vmatpush1.bf16.msra.mxu0 %v1016
    %1816 = vmatprep.subr.bf16.mxu0 0
    %1817 = vmatpush1.bf16.msra.mxu0 %v1019
    %1818 = vmatprep.subr.bf16.mxu0 0
    %1819 = vmatpush1.bf16.msra.mxu0 %v1022
    %1820 = vmatprep.subr.bf16.mxu0 0
    %1821 = vmatpush1.bf16.msra.mxu0 %v1025
    %1822 = vmatprep.subr.bf16.mxu0 0
    %1823 = vmatpush1.bf16.msra.mxu0 %v1028
    %1824 = vmatprep.subr.bf16.mxu0 0
    %1825 = vmatpush1.bf16.msra.mxu0 0
    %1826 = vmatprep.subr.bf16.mxu0 0
    %1827 = vmatpush1.bf16.msra.mxu0 0
    %1828 = vmatprep.subr.bf16.mxu0 0
    %1829 = vmatpush1.bf16.msra.mxu0 0
    %1830 = vmatprep.subr.bf16.mxu0 0
    %1831 = vmatpush1.bf16.msra.mxu0 0
    %1832 = vmatprep.subr.bf16.mxu0 0
    %1833 = vmatpush1.bf16.msra.mxu0 0
    %1834 = vmatprep.subr.bf16.mxu0 0
    %1835 = vmatpush1.bf16.msra.mxu0 0
    %1836 = vmatprep.subr.bf16.mxu0 0
    %1837 = vmatpush1.bf16.msra.mxu0 0
    %1838 = vmatprep.subr.bf16.mxu0 0
    %1839 = vmatpush1.bf16.msra.mxu0 0
    %1840 = vmatprep.mubr.bf16.mxu0 0
    %1841 = vmatmul.mubr.bf16.gmra.mrb[0].mxu0 %v1766
    %v1842 = vpop.f32.mrb[0].mxu0
    %v1843 = vadd.f32 %v669, %v1842
    %v1844 = vpop.f32.mrb[0].mxu0
    %v1845 = vpop.f32.mrb[0].mxu0
    %v1846 = vpop.f32.mrb[0].mxu0
    %1847 = vdwg.mxu0
    %v1848 = vpack.c.bf16 %v1764, %v1764
    %1849 = vmatprep.subr.bf16.mxu0 %v1216
    %1850 = vmatpush1.bf16.msra.mxu0 %v1215
    %1851 = vmatprep.subr.bf16.mxu0 %v1219
    %1852 = vmatpush1.bf16.msra.mxu0 %v1218
    %1853 = vmatprep.subr.bf16.mxu0 %v1222
    %1854 = vmatpush1.bf16.msra.mxu0 %v1221
    %1855 = vmatprep.subr.bf16.mxu0 %v1225
    %1856 = vmatpush1.bf16.msra.mxu0 %v1224
    %1857 = vmatprep.subr.bf16.mxu0 %v1228
    %1858 = vmatpush1.bf16.msra.mxu0 %v1227
    %1859 = vmatprep.subr.bf16.mxu0 %v1231
    %1860 = vmatpush1.bf16.msra.mxu0 %v1230
    %1861 = vmatprep.subr.bf16.mxu0 %v1234
    %1862 = vmatpush1.bf16.msra.mxu0 %v1233
    %1863 = vmatprep.subr.bf16.mxu0 %v1237
    %1864 = vmatpush1.bf16.msra.mxu0 %v1236
    %1865 = vmatprep.subr.bf16.mxu0 0
    %1866 = vmatpush1.bf16.msra.mxu0 0
    %1867 = vmatprep.subr.bf16.mxu0 0
    %1868 = vmatpush1.bf16.msra.mxu0 0
    %1869 = vmatprep.subr.bf16.mxu0 0
    %1870 = vmatpush1.bf16.msra.mxu0 0
    %1871 = vmatprep.subr.bf16.mxu0 0
    %1872 = vmatpush1.bf16.msra.mxu0 0
    %1873 = vmatprep.subr.bf16.mxu0 0
    %1874 = vmatpush1.bf16.msra.mxu0 0
    %1875 = vmatprep.subr.bf16.mxu0 0
    %1876 = vmatpush1.bf16.msra.mxu0 0
    %1877 = vmatprep.subr.bf16.mxu0 0
    %1878 = vmatpush1.bf16.msra.mxu0 0
    %1879 = vmatprep.subr.bf16.mxu0 0
    %1880 = vmatpush1.bf16.msra.mxu0 0
    %1881 = vmatprep.mubr.bf16.mxu0 0
    %1882 = vmatmul.mubr.bf16.gmra.mrb[0].mxu0 %v1848
    %v1883 = vpop.f32.mrb[0].mxu0
    %v1884 = vadd.f32 %v678, %v1883
    %v1885 = vpop.f32.mrb[0].mxu0
    %v1886 = vadd.f32 %v682, %v1885
    %v1887 = vpop.f32.mrb[0].mxu0
    %v1888 = vpop.f32.mrb[0].mxu0
    %1889 = vdwg.mxu0
    %1890 = vmatprep.subr.bf16.mxu0 0
    %1891 = vmatpush1.bf16.msra.mxu0 %v1217
    %1892 = vmatprep.subr.bf16.mxu0 0
    %1893 = vmatpush1.bf16.msra.mxu0 %v1220
    %1894 = vmatprep.subr.bf16.mxu0 0
    %1895 = vmatpush1.bf16.msra.mxu0 %v1223
    %1896 = vmatprep.subr.bf16.mxu0 0
    %1897 = vmatpush1.bf16.msra.mxu0 %v1226
    %1898 = vmatprep.subr.bf16.mxu0 0
    %1899 = vmatpush1.bf16.msra.mxu0 %v1229
    %1900 = vmatprep.subr.bf16.mxu0 0
    %1901 = vmatpush1.bf16.msra.mxu0 %v1232
    %1902 = vmatprep.subr.bf16.mxu0 0
    %1903 = vmatpush1.bf16.msra.mxu0 %v1235
    %1904 = vmatprep.subr.bf16.mxu0 0
    %1905 = vmatpush1.bf16.msra.mxu0 %v1238
    %1906 = vmatprep.subr.bf16.mxu0 0
    %1907 = vmatpush1.bf16.msra.mxu0 0
    %1908 = vmatprep.subr.bf16.mxu0 0
    %1909 = vmatpush1.bf16.msra.mxu0 0
    %1910 = vmatprep.subr.bf16.mxu0 0
    %1911 = vmatpush1.bf16.msra.mxu0 0
    %1912 = vmatprep.subr.bf16.mxu0 0
    %1913 = vmatpush1.bf16.msra.mxu0 0
    %1914 = vmatprep.subr.bf16.mxu0 0
    %1915 = vmatpush1.bf16.msra.mxu0 0
    %1916 = vmatprep.subr.bf16.mxu0 0
    %1917 = vmatpush1.bf16.msra.mxu0 0
    %1918 = vmatprep.subr.bf16.mxu0 0
    %1919 = vmatpush1.bf16.msra.mxu0 0
    %1920 = vmatprep.subr.bf16.mxu0 0
    %1921 = vmatpush1.bf16.msra.mxu0 0
    %1922 = vmatprep.mubr.bf16.mxu0 0
    %1923 = vmatmul.mubr.bf16.gmra.mrb[0].mxu0 %v1848
    %v1924 = vpop.f32.mrb[0].mxu0
    %v1925 = vadd.f32 %v686, %v1924
    %v1926 = vpop.f32.mrb[0].mxu0
    %v1927 = vpop.f32.mrb[0].mxu0
    %v1928 = vpop.f32.mrb[0].mxu0
    %1929 = vdwg.mxu0
    %v1930 = vadd.f32 %v1802, %v1884
    %v1931 = vxor.u32 %v1930, 2147483648
    %v1932 = vmul.f32 %v1931, 1.442695
    %v1933 = vpow.pop %v1932
    %v1934 = vadd.f32 %v1933, 1.0
    %v1935 = vrcp.pop %v1934
    %v1936 = vmul.f32 1.0, %v1935
    %v1937 = vadd.f32 %v1804, %v1886
    %v1938 = vxor.u32 %v1937, 2147483648
    %v1939 = vmul.f32 %v1938, 1.442695
    %v1940 = vpow.pop %v1939
    %v1941 = vadd.f32 %v1940, 1.0
    %v1942 = vrcp.pop %v1941
    %v1943 = vmul.f32 1.0, %v1942
    %v1944 = vmul.f32 %v1936, %v1925
    %v1945 = vadd.f32 %v1843, %v1944
    %v1946 = vtanh.pop %v1945
    %v1947 = vsub.f32 1.0, %v1943
    %v1948 = vmul.f32 %v1947, %v1946
    %v1949 = vmul.f32 %v1943, %v1764
    %v1950 = vadd.f32 %v1948, %v1949
    %s1951 = scalar_lea.vmem [#allocation2], 72
    %v1952 = vld [vmem:[%s1951] sm:$0xff]
    %v1953 = vld [vmem:[%s1951 + $0x8] sm:$0xff]
    %v1954 = vld [vmem:[%s1951 + $0x10] sm:$0xff]
    %v1955 = vpack.c.bf16 %v1950, %v1950
    %1956 = vmatprep.subr.bf16.mxu0 %v774
    %1957 = vmatpush1.bf16.msra.mxu0 %v773
    %1958 = vmatprep.subr.bf16.mxu0 %v777
    %1959 = vmatpush1.bf16.msra.mxu0 %v776
    %1960 = vmatprep.subr.bf16.mxu0 %v780
    %1961 = vmatpush1.bf16.msra.mxu0 %v779
    %1962 = vmatprep.subr.bf16.mxu0 %v783
    %1963 = vmatpush1.bf16.msra.mxu0 %v782
    %1964 = vmatprep.subr.bf16.mxu0 %v786
    %1965 = vmatpush1.bf16.msra.mxu0 %v785
    %1966 = vmatprep.subr.bf16.mxu0 %v789
    %1967 = vmatpush1.bf16.msra.mxu0 %v788
    %1968 = vmatprep.subr.bf16.mxu0 %v792
    %1969 = vmatpush1.bf16.msra.mxu0 %v791
    %1970 = vmatprep.subr.bf16.mxu0 %v795
    %1971 = vmatpush1.bf16.msra.mxu0 %v794
    %1972 = vmatprep.subr.bf16.mxu0 0
    %1973 = vmatpush1.bf16.msra.mxu0 0
    %1974 = vmatprep.subr.bf16.mxu0 0
    %1975 = vmatpush1.bf16.msra.mxu0 0
    %1976 = vmatprep.subr.bf16.mxu0 0
    %1977 = vmatpush1.bf16.msra.mxu0 0
    %1978 = vmatprep.subr.bf16.mxu0 0
    %1979 = vmatpush1.bf16.msra.mxu0 0
    %1980 = vmatprep.subr.bf16.mxu0 0
    %1981 = vmatpush1.bf16.msra.mxu0 0
    %1982 = vmatprep.subr.bf16.mxu0 0
    %1983 = vmatpush1.bf16.msra.mxu0 0
    %1984 = vmatprep.subr.bf16.mxu0 0
    %1985 = vmatpush1.bf16.msra.mxu0 0
    %1986 = vmatprep.subr.bf16.mxu0 0
    %1987 = vmatpush1.bf16.msra.mxu0 0
    %1988 = vmatprep.mubr.bf16.mxu0 0
    %1989 = vmatmul.mubr.bf16.gmra.mrb[0].mxu0 %v1955
    %v1990 = vpop.f32.mrb[0].mxu0
    %v1991 = vadd.f32 %v644, %v1990
    %v1992 = vpop.f32.mrb[0].mxu0
    %v1993 = vadd.f32 %v648, %v1992
    %v1994 = vpop.f32.mrb[0].mxu0
    %v1995 = vpop.f32.mrb[0].mxu0
    %1996 = vdwg.mxu0
    %1997 = vmatprep.subr.bf16.mxu0 0
    %1998 = vmatpush1.bf16.msra.mxu0 %v775
    %1999 = vmatprep.subr.bf16.mxu0 0
    %2000 = vmatpush1.bf16.msra.mxu0 %v778
    %2001 = vmatprep.subr.bf16.mxu0 0
    %2002 = vmatpush1.bf16.msra.mxu0 %v781
    %2003 = vmatprep.subr.bf16.mxu0 0
    %2004 = vmatpush1.bf16.msra.mxu0 %v784
    %2005 = vmatprep.subr.bf16.mxu0 0
    %2006 = vmatpush1.bf16.msra.mxu0 %v787
    %2007 = vmatprep.subr.bf16.mxu0 0
    %2008 = vmatpush1.bf16.msra.mxu0 %v790
    %2009 = vmatprep.subr.bf16.mxu0 0
    %2010 = vmatpush1.bf16.msra.mxu0 %v793
    %2011 = vmatprep.subr.bf16.mxu0 0
    %2012 = vmatpush1.bf16.msra.mxu0 %v796
    %2013 = vmatprep.subr.bf16.mxu0 0
    %2014 = vmatpush1.bf16.msra.mxu0 0
    %2015 = vmatprep.subr.bf16.mxu0 0
    %2016 = vmatpush1.bf16.msra.mxu0 0
    %2017 = vmatprep.subr.bf16.mxu0 0
    %2018 = vmatpush1.bf16.msra.mxu0 0
    %2019 = vmatprep.subr.bf16.mxu0 0
    %2020 = vmatpush1.bf16.msra.mxu0 0
    %2021 = vmatprep.subr.bf16.mxu0 0
    %2022 = vmatpush1.bf16.msra.mxu0 0
    %2023 = vmatprep.subr.bf16.mxu0 0
    %2024 = vmatpush1.bf16.msra.mxu0 0
    %2025 = vmatprep.subr.bf16.mxu0 0
    %2026 = vmatpush1.bf16.msra.mxu0 0
    %2027 = vmatprep.subr.bf16.mxu0 0
    %2028 = vmatpush1.bf16.msra.mxu0 0
    %2029 = vmatprep.mubr.bf16.mxu0 0
    %2030 = vmatmul.mubr.bf16.gmra.mrb[0].mxu0 %v1955
    %v2031 = vpop.f32.mrb[0].mxu0
    %v2032 = vadd.f32 %v652, %v2031
    %v2033 = vpop.f32.mrb[0].mxu0
    %v2034 = vpop.f32.mrb[0].mxu0
    %v2035 = vpop.f32.mrb[0].mxu0
    %2036 = vdwg.mxu0
    %v2037 = vadd.f32 %v1952, %v1991
    %v2038 = vxor.u32 %v2037, 2147483648
    %v2039 = vmul.f32 %v2038, 1.442695
    %v2040 = vpow.pop %v2039
    %v2041 = vadd.f32 %v2040, 1.0
    %v2042 = vrcp.pop %v2041
    %v2043 = vmul.f32 1.0, %v2042
    %v2044 = vadd.f32 %v1953, %v1993
    %v2045 = vxor.u32 %v2044, 2147483648
    %v2046 = vmul.f32 %v2045, 1.442695
    %v2047 = vpow.pop %v2046
    %v2048 = vadd.f32 %v2047, 1.0
    %v2049 = vrcp.pop %v2048
    %v2050 = vmul.f32 1.0, %v2049
    %v2051 = vmul.f32 %v2043, %v2032
    %v2052 = vadd.f32 %v1954, %v2051
    %v2053 = vtanh.pop %v2052
    %v2054 = vsub.f32 1.0, %v2050
    %v2055 = vmul.f32 %v2054, %v2053
    %v2056 = vmul.f32 %v2050, %v1950
    %v2057 = vadd.f32 %v2055, %v2056
    %v2058 = vmul.f32 %v2057, %v319
    %v2059 = vpack.c.bf16 %v2058, %v2058
    %2060 = vmatprep.subr.bf16.mxu0 %v1006
    %2061 = vmatpush1.bf16.msra.mxu0 %v1005
    %2062 = vmatprep.subr.bf16.mxu0 %v1009
    %2063 = vmatpush1.bf16.msra.mxu0 %v1008
    %2064 = vmatprep.subr.bf16.mxu0 %v1012
    %2065 = vmatpush1.bf16.msra.mxu0 %v1011
    %2066 = vmatprep.subr.bf16.mxu0 %v1015
    %2067 = vmatpush1.bf16.msra.mxu0 %v1014
    %2068 = vmatprep.subr.bf16.mxu0 %v1018
    %2069 = vmatpush1.bf16.msra.mxu0 %v1017
    %2070 = vmatprep.subr.bf16.mxu0 %v1021
    %2071 = vmatpush1.bf16.msra.mxu0 %v1020
    %2072 = vmatprep.subr.bf16.mxu0 %v1024
    %2073 = vmatpush1.bf16.msra.mxu0 %v1023
    %2074 = vmatprep.subr.bf16.mxu0 %v1027
    %2075 = vmatpush1.bf16.msra.mxu0 %v1026
    %2076 = vmatprep.subr.bf16.mxu0 0
    %2077 = vmatpush1.bf16.msra.mxu0 0
    %2078 = vmatprep.subr.bf16.mxu0 0
    %2079 = vmatpush1.bf16.msra.mxu0 0
    %2080 = vmatprep.subr.bf16.mxu0 0
    %2081 = vmatpush1.bf16.msra.mxu0 0
    %2082 = vmatprep.subr.bf16.mxu0 0
    %2083 = vmatpush1.bf16.msra.mxu0 0
    %2084 = vmatprep.subr.bf16.mxu0 0
    %2085 = vmatpush1.bf16.msra.mxu0 0
    %2086 = vmatprep.subr.bf16.mxu0 0
    %2087 = vmatpush1.bf16.msra.mxu0 0
    %2088 = vmatprep.subr.bf16.mxu0 0
    %2089 = vmatpush1.bf16.msra.mxu0 0
    %2090 = vmatprep.subr.bf16.mxu0 0
    %2091 = vmatpush1.bf16.msra.mxu0 0
    %2092 = vmatprep.mubr.bf16.mxu0 0
    %2093 = vmatmul.mubr.bf16.gmra.mrb[0].mxu0 %v2059
    %v2094 = vpop.f32.mrb[0].mxu0
    %v2095 = vadd.f32 %v661, %v2094
    %v2096 = vpop.f32.mrb[0].mxu0
    %v2097 = vadd.f32 %v665, %v2096
    %v2098 = vpop.f32.mrb[0].mxu0
    %v2099 = vpop.f32.mrb[0].mxu0
    %2100 = vdwg.mxu0
    %2101 = vmatprep.subr.bf16.mxu0 0
    %2102 = vmatpush1.bf16.msra.mxu0 %v1007
    %2103 = vmatprep.subr.bf16.mxu0 0
    %2104 = vmatpush1.bf16.msra.mxu0 %v1010
    %2105 = vmatprep.subr.bf16.mxu0 0
    %2106 = vmatpush1.bf16.msra.mxu0 %v1013
    %2107 = vmatprep.subr.bf16.mxu0 0
    %2108 = vmatpush1.bf16.msra.mxu0 %v1016
    %2109 = vmatprep.subr.bf16.mxu0 0
    %2110 = vmatpush1.bf16.msra.mxu0 %v1019
    %2111 = vmatprep.subr.bf16.mxu0 0
    %2112 = vmatpush1.bf16.msra.mxu0 %v1022
    %2113 = vmatprep.subr.bf16.mxu0 0
    %2114 = vmatpush1.bf16.msra.mxu0 %v1025
    %2115 = vmatprep.subr.bf16.mxu0 0
    %2116 = vmatpush1.bf16.msra.mxu0 %v1028
    %2117 = vmatprep.subr.bf16.mxu0 0
    %2118 = vmatpush1.bf16.msra.mxu0 0
    %2119 = vmatprep.subr.bf16.mxu0 0
    %2120 = vmatpush1.bf16.msra.mxu0 0
    %2121 = vmatprep.subr.bf16.mxu0 0
    %2122 = vmatpush1.bf16.msra.mxu0 0
    %2123 = vmatprep.subr.bf16.mxu0 0
    %2124 = vmatpush1.bf16.msra.mxu0 0
    %2125 = vmatprep.subr.bf16.mxu0 0
    %2126 = vmatpush1.bf16.msra.mxu0 0
    %2127 = vmatprep.subr.bf16.mxu0 0
    %2128 = vmatpush1.bf16.msra.mxu0 0
    %2129 = vmatprep.subr.bf16.mxu0 0
    %2130 = vmatpush1.bf16.msra.mxu0 0
    %2131 = vmatprep.subr.bf16.mxu0 0
    %2132 = vmatpush1.bf16.msra.mxu0 0
    %2133 = vmatprep.mubr.bf16.mxu0 0
    %2134 = vmatmul.mubr.bf16.gmra.mrb[0].mxu0 %v2059
    %v2135 = vpop.f32.mrb[0].mxu0
    %v2136 = vadd.f32 %v669, %v2135
    %v2137 = vpop.f32.mrb[0].mxu0
    %v2138 = vpop.f32.mrb[0].mxu0
    %v2139 = vpop.f32.mrb[0].mxu0
    %2140 = vdwg.mxu0
    %v2141 = vpack.c.bf16 %v2057, %v2057
    %2142 = vmatprep.subr.bf16.mxu0 %v1216
    %2143 = vmatpush1.bf16.msra.mxu0 %v1215
    %2144 = vmatprep.subr.bf16.mxu0 %v1219
    %2145 = vmatpush1.bf16.msra.mxu0 %v1218
    %2146 = vmatprep.subr.bf16.mxu0 %v1222
    %2147 = vmatpush1.bf16.msra.mxu0 %v1221
    %2148 = vmatprep.subr.bf16.mxu0 %v1225
    %2149 = vmatpush1.bf16.msra.mxu0 %v1224
    %2150 = vmatprep.subr.bf16.mxu0 %v1228
    %2151 = vmatpush1.bf16.msra.mxu0 %v1227
    %2152 = vmatprep.subr.bf16.mxu0 %v1231
    %2153 = vmatpush1.bf16.msra.mxu0 %v1230
    %2154 = vmatprep.subr.bf16.mxu0 %v1234
    %2155 = vmatpush1.bf16.msra.mxu0 %v1233
    %2156 = vmatprep.subr.bf16.mxu0 %v1237
    %2157 = vmatpush1.bf16.msra.mxu0 %v1236
    %2158 = vmatprep.subr.bf16.mxu0 0
    %2159 = vmatpush1.bf16.msra.mxu0 0
    %2160 = vmatprep.subr.bf16.mxu0 0
    %2161 = vmatpush1.bf16.msra.mxu0 0
    %2162 = vmatprep.subr.bf16.mxu0 0
    %2163 = vmatpush1.bf16.msra.mxu0 0
    %2164 = vmatprep.subr.bf16.mxu0 0
    %2165 = vmatpush1.bf16.msra.mxu0 0
    %2166 = vmatprep.subr.bf16.mxu0 0
    %2167 = vmatpush1.bf16.msra.mxu0 0
    %2168 = vmatprep.subr.bf16.mxu0 0
    %2169 = vmatpush1.bf16.msra.mxu0 0
    %2170 = vmatprep.subr.bf16.mxu0 0
    %2171 = vmatpush1.bf16.msra.mxu0 0
    %2172 = vmatprep.subr.bf16.mxu0 0
    %2173 = vmatpush1.bf16.msra.mxu0 0
    %2174 = vmatprep.mubr.bf16.mxu0 0
    %2175 = vmatmul.mubr.bf16.gmra.mrb[0].mxu0 %v2141
    %v2176 = vpop.f32.mrb[0].mxu0
    %v2177 = vadd.f32 %v678, %v2176
    %v2178 = vpop.f32.mrb[0].mxu0
    %v2179 = vadd.f32 %v682, %v2178
    %v2180 = vpop.f32.mrb[0].mxu0
    %v2181 = vpop.f32.mrb[0].mxu0
    %2182 = vdwg.mxu0
    %2183 = vmatprep.subr.bf16.mxu0 0
    %2184 = vmatpush1.bf16.msra.mxu0 %v1217
    %2185 = vmatprep.subr.bf16.mxu0 0
    %2186 = vmatpush1.bf16.msra.mxu0 %v1220
    %2187 = vmatprep.subr.bf16.mxu0 0
    %2188 = vmatpush1.bf16.msra.mxu0 %v1223
    %2189 = vmatprep.subr.bf16.mxu0 0
    %2190 = vmatpush1.bf16.msra.mxu0 %v1226
    %2191 = vmatprep.subr.bf16.mxu0 0
    %2192 = vmatpush1.bf16.msra.mxu0 %v1229
    %2193 = vmatprep.subr.bf16.mxu0 0
    %2194 = vmatpush1.bf16.msra.mxu0 %v1232
    %2195 = vmatprep.subr.bf16.mxu0 0
    %2196 = vmatpush1.bf16.msra.mxu0 %v1235
    %2197 = vmatprep.subr.bf16.mxu0 0
    %2198 = vmatpush1.bf16.msra.mxu0 %v1238
    %2199 = vmatprep.subr.bf16.mxu0 0
    %2200 = vmatpush1.bf16.msra.mxu0 0
    %2201 = vmatprep.subr.bf16.mxu0 0
    %2202 = vmatpush1.bf16.msra.mxu0 0
    %2203 = vmatprep.subr.bf16.mxu0 0
    %2204 = vmatpush1.bf16.msra.mxu0 0
    %2205 = vmatprep.subr.bf16.mxu0 0
    %2206 = vmatpush1.bf16.msra.mxu0 0
    %2207 = vmatprep.subr.bf16.mxu0 0
    %2208 = vmatpush1.bf16.msra.mxu0 0
    %2209 = vmatprep.subr.bf16.mxu0 0
    %2210 = vmatpush1.bf16.msra.mxu0 0
    %2211 = vmatprep.subr.bf16.mxu0 0
    %2212 = vmatpush1.bf16.msra.mxu0 0
    %2213 = vmatprep.subr.bf16.mxu0 0
    %2214 = vmatpush1.bf16.msra.mxu0 0
    %2215 = vmatprep.mubr.bf16.mxu0 0
    %2216 = vmatmul.mubr.bf16.gmra.mrb[0].mxu0 %v2141
    %v2217 = vpop.f32.mrb[0].mxu0
    %v2218 = vadd.f32 %v686, %v2217
    %v2219 = vpop.f32.mrb[0].mxu0
    %v2220 = vpop.f32.mrb[0].mxu0
    %v2221 = vpop.f32.mrb[0].mxu0
    %2222 = vdwg.mxu0
    %v2223 = vadd.f32 %v2095, %v2177
    %v2224 = vxor.u32 %v2223, 2147483648
    %v2225 = vmul.f32 %v2224, 1.442695
    %v2226 = vpow.pop %v2225
    %v2227 = vadd.f32 %v2226, 1.0
    %v2228 = vrcp.pop %v2227
    %v2229 = vmul.f32 1.0, %v2228
    %v2230 = vadd.f32 %v2097, %v2179
    %v2231 = vxor.u32 %v2230, 2147483648
    %v2232 = vmul.f32 %v2231, 1.442695
    %v2233 = vpow.pop %v2232
    %v2234 = vadd.f32 %v2233, 1.0
    %v2235 = vrcp.pop %v2234
    %v2236 = vmul.f32 1.0, %v2235
    %v2237 = vmul.f32 %v2229, %v2218
    %v2238 = vadd.f32 %v2136, %v2237
    %v2239 = vtanh.pop %v2238
    %v2240 = vsub.f32 1.0, %v2236
    %v2241 = vmul.f32 %v2240, %v2239
    %v2242 = vmul.f32 %v2236, %v2057
    %v2243 = vadd.f32 %v2241, %v2242
    %s2244 = scalar_lea.vmem [#allocation2], 96
    %v2245 = vld [vmem:[%s2244] sm:$0xff]
    %v2246 = vld [vmem:[%s2244 + $0x8] sm:$0xff]
    %v2247 = vld [vmem:[%s2244 + $0x10] sm:$0xff]
    %v2248 = vpack.c.bf16 %v2243, %v2243
    %2249 = vmatprep.subr.bf16.mxu0 %v774
    %2250 = vmatpush1.bf16.msra.mxu0 %v773
    %2251 = vmatprep.subr.bf16.mxu0 %v777
    %2252 = vmatpush1.bf16.msra.mxu0 %v776
    %2253 = vmatprep.subr.bf16.mxu0 %v780
    %2254 = vmatpush1.bf16.msra.mxu0 %v779
    %2255 = vmatprep.subr.bf16.mxu0 %v783
    %2256 = vmatpush1.bf16.msra.mxu0 %v782
    %2257 = vmatprep.subr.bf16.mxu0 %v786
    %2258 = vmatpush1.bf16.msra.mxu0 %v785
    %2259 = vmatprep.subr.bf16.mxu0 %v789
    %2260 = vmatpush1.bf16.msra.mxu0 %v788
    %2261 = vmatprep.subr.bf16.mxu0 %v792
    %2262 = vmatpush1.bf16.msra.mxu0 %v791
    %2263 = vmatprep.subr.bf16.mxu0 %v795
    %2264 = vmatpush1.bf16.msra.mxu0 %v794
    %2265 = vmatprep.subr.bf16.mxu0 0
    %2266 = vmatpush1.bf16.msra.mxu0 0
    %2267 = vmatprep.subr.bf16.mxu0 0
    %2268 = vmatpush1.bf16.msra.mxu0 0
    %2269 = vmatprep.subr.bf16.mxu0 0
    %2270 = vmatpush1.bf16.msra.mxu0 0
    %2271 = vmatprep.subr.bf16.mxu0 0
    %2272 = vmatpush1.bf16.msra.mxu0 0
    %2273 = vmatprep.subr.bf16.mxu0 0
    %2274 = vmatpush1.bf16.msra.mxu0 0
    %2275 = vmatprep.subr.bf16.mxu0 0
    %2276 = vmatpush1.bf16.msra.mxu0 0
    %2277 = vmatprep.subr.bf16.mxu0 0
    %2278 = vmatpush1.bf16.msra.mxu0 0
    %2279 = vmatprep.subr.bf16.mxu0 0
    %2280 = vmatpush1.bf16.msra.mxu0 0
    %2281 = vmatprep.mubr.bf16.mxu0 0
    %2282 = vmatmul.mubr.bf16.gmra.mrb[0].mxu0 %v2248
    %v2283 = vpop.f32.mrb[0].mxu0
    %v2284 = vadd.f32 %v644, %v2283
    %v2285 = vpop.f32.mrb[0].mxu0
    %v2286 = vadd.f32 %v648, %v2285
    %v2287 = vpop.f32.mrb[0].mxu0
    %v2288 = vpop.f32.mrb[0].mxu0
    %2289 = vdwg.mxu0
    %2290 = vmatprep.subr.bf16.mxu0 0
    %2291 = vmatpush1.bf16.msra.mxu0 %v775
    %2292 = vmatprep.subr.bf16.mxu0 0
    %2293 = vmatpush1.bf16.msra.mxu0 %v778
    %2294 = vmatprep.subr.bf16.mxu0 0
    %2295 = vmatpush1.bf16.msra.mxu0 %v781
    %2296 = vmatprep.subr.bf16.mxu0 0
    %2297 = vmatpush1.bf16.msra.mxu0 %v784
    %2298 = vmatprep.subr.bf16.mxu0 0
    %2299 = vmatpush1.bf16.msra.mxu0 %v787
    %2300 = vmatprep.subr.bf16.mxu0 0
    %2301 = vmatpush1.bf16.msra.mxu0 %v790
    %2302 = vmatprep.subr.bf16.mxu0 0
    %2303 = vmatpush1.bf16.msra.mxu0 %v793
    %2304 = vmatprep.subr.bf16.mxu0 0
    %2305 = vmatpush1.bf16.msra.mxu0 %v796
    %2306 = vmatprep.subr.bf16.mxu0 0
    %2307 = vmatpush1.bf16.msra.mxu0 0
    %2308 = vmatprep.subr.bf16.mxu0 0
    %2309 = vmatpush1.bf16.msra.mxu0 0
    %2310 = vmatprep.subr.bf16.mxu0 0
    %2311 = vmatpush1.bf16.msra.mxu0 0
    %2312 = vmatprep.subr.bf16.mxu0 0
    %2313 = vmatpush1.bf16.msra.mxu0 0
    %2314 = vmatprep.subr.bf16.mxu0 0
    %2315 = vmatpush1.bf16.msra.mxu0 0
    %2316 = vmatprep.subr.bf16.mxu0 0
    %2317 = vmatpush1.bf16.msra.mxu0 0
    %2318 = vmatprep.subr.bf16.mxu0 0
    %2319 = vmatpush1.bf16.msra.mxu0 0
    %2320 = vmatprep.subr.bf16.mxu0 0
    %2321 = vmatpush1.bf16.msra.mxu0 0
    %2322 = vmatprep.mubr.bf16.mxu0 0
    %2323 = vmatmul.mubr.bf16.gmra.mrb[0].mxu0 %v2248
    %v2324 = vpop.f32.mrb[0].mxu0
    %v2325 = vadd.f32 %v652, %v2324
    %v2326 = vpop.f32.mrb[0].mxu0
    %v2327 = vpop.f32.mrb[0].mxu0
    %v2328 = vpop.f32.mrb[0].mxu0
    %2329 = vdwg.mxu0
    %v2330 = vadd.f32 %v2245, %v2284
    %v2331 = vxor.u32 %v2330, 2147483648
    %v2332 = vmul.f32 %v2331, 1.442695
    %v2333 = vpow.pop %v2332
    %v2334 = vadd.f32 %v2333, 1.0
    %v2335 = vrcp.pop %v2334
    %v2336 = vmul.f32 1.0, %v2335
    %v2337 = vadd.f32 %v2246, %v2286
    %v2338 = vxor.u32 %v2337, 2147483648
    %v2339 = vmul.f32 %v2338, 1.442695
    %v2340 = vpow.pop %v2339
    %v2341 = vadd.f32 %v2340, 1.0
    %v2342 = vrcp.pop %v2341
    %v2343 = vmul.f32 1.0, %v2342
    %v2344 = vmul.f32 %v2336, %v2325
    %v2345 = vadd.f32 %v2247, %v2344
    %v2346 = vtanh.pop %v2345
    %v2347 = vsub.f32 1.0, %v2343
    %v2348 = vmul.f32 %v2347, %v2346
    %v2349 = vmul.f32 %v2343, %v2243
    %v2350 = vadd.f32 %v2348, %v2349
    %v2351 = vmul.f32 %v2350, %v319
    %v2352 = vpack.c.bf16 %v2351, %v2351
    %2353 = vmatprep.subr.bf16.mxu0 %v1006
    %2354 = vmatpush1.bf16.msra.mxu0 %v1005
    %2355 = vmatprep.subr.bf16.mxu0 %v1009
    %2356 = vmatpush1.bf16.msra.mxu0 %v1008
    %2357 = vmatprep.subr.bf16.mxu0 %v1012
    %2358 = vmatpush1.bf16.msra.mxu0 %v1011
    %2359 = vmatprep.subr.bf16.mxu0 %v1015
    %2360 = vmatpush1.bf16.msra.mxu0 %v1014
    %2361 = vmatprep.subr.bf16.mxu0 %v1018
    %2362 = vmatpush1.bf16.msra.mxu0 %v1017
    %2363 = vmatprep.subr.bf16.mxu0 %v1021
    %2364 = vmatpush1.bf16.msra.mxu0 %v1020
    %2365 = vmatprep.subr.bf16.mxu0 %v1024
    %2366 = vmatpush1.bf16.msra.mxu0 %v1023
    %2367 = vmatprep.subr.bf16.mxu0 %v1027
    %2368 = vmatpush1.bf16.msra.mxu0 %v1026
    %2369 = vmatprep.subr.bf16.mxu0 0
    %2370 = vmatpush1.bf16.msra.mxu0 0
    %2371 = vmatprep.subr.bf16.mxu0 0
    %2372 = vmatpush1.bf16.msra.mxu0 0
    %2373 = vmatprep.subr.bf16.mxu0 0
    %2374 = vmatpush1.bf16.msra.mxu0 0
    %2375 = vmatprep.subr.bf16.mxu0 0
    %2376 = vmatpush1.bf16.msra.mxu0 0
    %2377 = vmatprep.subr.bf16.mxu0 0
    %2378 = vmatpush1.bf16.msra.mxu0 0
    %2379 = vmatprep.subr.bf16.mxu0 0
    %2380 = vmatpush1.bf16.msra.mxu0 0
    %2381 = vmatprep.subr.bf16.mxu0 0
    %2382 = vmatpush1.bf16.msra.mxu0 0
    %2383 = vmatprep.subr.bf16.mxu0 0
    %2384 = vmatpush1.bf16.msra.mxu0 0
    %2385 = vmatprep.mubr.bf16.mxu0 0
    %2386 = vmatmul.mubr.bf16.gmra.mrb[0].mxu0 %v2352
    %v2387 = vpop.f32.mrb[0].mxu0
    %v2388 = vadd.f32 %v661, %v2387
    %v2389 = vpop.f32.mrb[0].mxu0
    %v2390 = vadd.f32 %v665, %v2389
    %v2391 = vpop.f32.mrb[0].mxu0
    %v2392 = vpop.f32.mrb[0].mxu0
    %2393 = vdwg.mxu0
    %2394 = vmatprep.subr.bf16.mxu0 0
    %2395 = vmatpush1.bf16.msra.mxu0 %v1007
    %2396 = vmatprep.subr.bf16.mxu0 0
    %2397 = vmatpush1.bf16.msra.mxu0 %v1010
    %2398 = vmatprep.subr.bf16.mxu0 0
    %2399 = vmatpush1.bf16.msra.mxu0 %v1013
    %2400 = vmatprep.subr.bf16.mxu0 0
    %2401 = vmatpush1.bf16.msra.mxu0 %v1016
    %2402 = vmatprep.subr.bf16.mxu0 0
    %2403 = vmatpush1.bf16.msra.mxu0 %v1019
    %2404 = vmatprep.subr.bf16.mxu0 0
    %2405 = vmatpush1.bf16.msra.mxu0 %v1022
    %2406 = vmatprep.subr.bf16.mxu0 0
    %2407 = vmatpush1.bf16.msra.mxu0 %v1025
    %2408 = vmatprep.subr.bf16.mxu0 0
    %2409 = vmatpush1.bf16.msra.mxu0 %v1028
    %2410 = vmatprep.subr.bf16.mxu0 0
    %2411 = vmatpush1.bf16.msra.mxu0 0
    %2412 = vmatprep.subr.bf16.mxu0 0
    %2413 = vmatpush1.bf16.msra.mxu0 0
    %2414 = vmatprep.subr.bf16.mxu0 0
    %2415 = vmatpush1.bf16.msra.mxu0 0
    %2416 = vmatprep.subr.bf16.mxu0 0
    %2417 = vmatpush1.bf16.msra.mxu0 0
    %2418 = vmatprep.subr.bf16.mxu0 0
    %2419 = vmatpush1.bf16.msra.mxu0 0
    %2420 = vmatprep.subr.bf16.mxu0 0
    %2421 = vmatpush1.bf16.msra.mxu0 0
    %2422 = vmatprep.subr.bf16.mxu0 0
    %2423 = vmatpush1.bf16.msra.mxu0 0
    %2424 = vmatprep.subr.bf16.mxu0 0
    %2425 = vmatpush1.bf16.msra.mxu0 0
    %2426 = vmatprep.mubr.bf16.mxu0 0
    %2427 = vmatmul.mubr.bf16.gmra.mrb[0].mxu0 %v2352
    %v2428 = vpop.f32.mrb[0].mxu0
    %v2429 = vadd.f32 %v669, %v2428
    %v2430 = vpop.f32.mrb[0].mxu0
    %v2431 = vpop.f32.mrb[0].mxu0
    %v2432 = vpop.f32.mrb[0].mxu0
    %2433 = vdwg.mxu0
    %v2434 = vpack.c.bf16 %v2350, %v2350
    %2435 = vmatprep.subr.bf16.mxu0 %v1216
    %2436 = vmatpush1.bf16.msra.mxu0 %v1215
    %2437 = vmatprep.subr.bf16.mxu0 %v1219
    %2438 = vmatpush1.bf16.msra.mxu0 %v1218
    %2439 = vmatprep.subr.bf16.mxu0 %v1222
    %2440 = vmatpush1.bf16.msra.mxu0 %v1221
    %2441 = vmatprep.subr.bf16.mxu0 %v1225
    %2442 = vmatpush1.bf16.msra.mxu0 %v1224
    %2443 = vmatprep.subr.bf16.mxu0 %v1228
    %2444 = vmatpush1.bf16.msra.mxu0 %v1227
    %2445 = vmatprep.subr.bf16.mxu0 %v1231
    %2446 = vmatpush1.bf16.msra.mxu0 %v1230
    %2447 = vmatprep.subr.bf16.mxu0 %v1234
    %2448 = vmatpush1.bf16.msra.mxu0 %v1233
    %2449 = vmatprep.subr.bf16.mxu0 %v1237
    %2450 = vmatpush1.bf16.msra.mxu0 %v1236
    %2451 = vmatprep.subr.bf16.mxu0 0
    %2452 = vmatpush1.bf16.msra.mxu0 0
    %2453 = vmatprep.subr.bf16.mxu0 0
    %2454 = vmatpush1.bf16.msra.mxu0 0
    %2455 = vmatprep.subr.bf16.mxu0 0
    %2456 = vmatpush1.bf16.msra.mxu0 0
    %2457 = vmatprep.subr.bf16.mxu0 0
    %2458 = vmatpush1.bf16.msra.mxu0 0
    %2459 = vmatprep.subr.bf16.mxu0 0
    %2460 = vmatpush1.bf16.msra.mxu0 0
    %2461 = vmatprep.subr.bf16.mxu0 0
    %2462 = vmatpush1.bf16.msra.mxu0 0
    %2463 = vmatprep.subr.bf16.mxu0 0
    %2464 = vmatpush1.bf16.msra.mxu0 0
    %2465 = vmatprep.subr.bf16.mxu0 0
    %2466 = vmatpush1.bf16.msra.mxu0 0
    %2467 = vmatprep.mubr.bf16.mxu0 0
    %2468 = vmatmul.mubr.bf16.gmra.mrb[0].mxu0 %v2434
    %v2469 = vpop.f32.mrb[0].mxu0
    %v2470 = vadd.f32 %v678, %v2469
    %v2471 = vpop.f32.mrb[0].mxu0
    %v2472 = vadd.f32 %v682, %v2471
    %v2473 = vpop.f32.mrb[0].mxu0
    %v2474 = vpop.f32.mrb[0].mxu0
    %2475 = vdwg.mxu0
    %2476 = vmatprep.subr.bf16.mxu0 0
    %2477 = vmatpush1.bf16.msra.mxu0 %v1217
    %2478 = vmatprep.subr.bf16.mxu0 0
    %2479 = vmatpush1.bf16.msra.mxu0 %v1220
    %2480 = vmatprep.subr.bf16.mxu0 0
    %2481 = vmatpush1.bf16.msra.mxu0 %v1223
    %2482 = vmatprep.subr.bf16.mxu0 0
    %2483 = vmatpush1.bf16.msra.mxu0 %v1226
    %2484 = vmatprep.subr.bf16.mxu0 0
    %2485 = vmatpush1.bf16.msra.mxu0 %v1229
    %2486 = vmatprep.subr.bf16.mxu0 0
    %2487 = vmatpush1.bf16.msra.mxu0 %v1232
    %2488 = vmatprep.subr.bf16.mxu0 0
    %2489 = vmatpush1.bf16.msra.mxu0 %v1235
    %2490 = vmatprep.subr.bf16.mxu0 0
    %2491 = vmatpush1.bf16.msra.mxu0 %v1238
    %2492 = vmatprep.subr.bf16.mxu0 0
    %2493 = vmatpush1.bf16.msra.mxu0 0
    %2494 = vmatprep.subr.bf16.mxu0 0
    %2495 = vmatpush1.bf16.msra.mxu0 0
    %2496 = vmatprep.subr.bf16.mxu0 0
    %2497 = vmatpush1.bf16.msra.mxu0 0
    %2498 = vmatprep.subr.bf16.mxu0 0
    %2499 = vmatpush1.bf16.msra.mxu0 0
    %2500 = vmatprep.subr.bf16.mxu0 0
    %2501 = vmatpush1.bf16.msra.mxu0 0
    %2502 = vmatprep.subr.bf16.mxu0 0
    %2503 = vmatpush1.bf16.msra.mxu0 0
    %2504 = vmatprep.subr.bf16.mxu0 0
    %2505 = vmatpush1.bf16.msra.mxu0 0
    %2506 = vmatprep.subr.bf16.mxu0 0
    %2507 = vmatpush1.bf16.msra.mxu0 0
    %2508 = vmatprep.mubr.bf16.mxu0 0
    %2509 = vmatmul.mubr.bf16.gmra.mrb[0].mxu0 %v2434
    %v2510 = vpop.f32.mrb[0].mxu0
    %v2511 = vadd.f32 %v686, %v2510
    %v2512 = vpop.f32.mrb[0].mxu0
    %v2513 = vpop.f32.mrb[0].mxu0
    %v2514 = vpop.f32.mrb[0].mxu0
    %2515 = vdwg.mxu0
    %v2516 = vadd.f32 %v2388, %v2470
    %v2517 = vxor.u32 %v2516, 2147483648
    %v2518 = vmul.f32 %v2517, 1.442695
    %v2519 = vpow.pop %v2518
    %v2520 = vadd.f32 %v2519, 1.0
    %v2521 = vrcp.pop %v2520
    %v2522 = vmul.f32 1.0, %v2521
    %v2523 = vadd.f32 %v2390, %v2472
    %v2524 = vxor.u32 %v2523, 2147483648
    %v2525 = vmul.f32 %v2524, 1.442695
    %v2526 = vpow.pop %v2525
    %v2527 = vadd.f32 %v2526, 1.0
    %v2528 = vrcp.pop %v2527
    %v2529 = vmul.f32 1.0, %v2528
    %v2530 = vmul.f32 %v2522, %v2511
    %v2531 = vadd.f32 %v2429, %v2530
    %v2532 = vtanh.pop %v2531
    %v2533 = vsub.f32 1.0, %v2529
    %v2534 = vmul.f32 %v2533, %v2532
    %v2535 = vmul.f32 %v2529, %v2350
    %v2536 = vadd.f32 %v2534, %v2535
    %s2537 = scalar_lea.vmem [#allocation2], 120
    %v2538 = vld [vmem:[%s2537] sm:$0xff]
    %v2539 = vld [vmem:[%s2537 + $0x8] sm:$0xff]
    %v2540 = vld [vmem:[%s2537 + $0x10] sm:$0xff]
    %v2541 = vpack.c.bf16 %v2536, %v2536
    %2542 = vmatprep.subr.bf16.mxu0 %v774
    %2543 = vmatpush1.bf16.msra.mxu0 %v773
    %2544 = vmatprep.subr.bf16.mxu0 %v777
    %2545 = vmatpush1.bf16.msra.mxu0 %v776
    %2546 = vmatprep.subr.bf16.mxu0 %v780
    %2547 = vmatpush1.bf16.msra.mxu0 %v779
    %2548 = vmatprep.subr.bf16.mxu0 %v783
    %2549 = vmatpush1.bf16.msra.mxu0 %v782
    %2550 = vmatprep.subr.bf16.mxu0 %v786
    %2551 = vmatpush1.bf16.msra.mxu0 %v785
    %2552 = vmatprep.subr.bf16.mxu0 %v789
    %2553 = vmatpush1.bf16.msra.mxu0 %v788
    %2554 = vmatprep.subr.bf16.mxu0 %v792
    %2555 = vmatpush1.bf16.msra.mxu0 %v791
    %2556 = vmatprep.subr.bf16.mxu0 %v795
    %2557 = vmatpush1.bf16.msra.mxu0 %v794
    %2558 = vmatprep.subr.bf16.mxu0 0
    %2559 = vmatpush1.bf16.msra.mxu0 0
    %2560 = vmatprep.subr.bf16.mxu0 0
    %2561 = vmatpush1.bf16.msra.mxu0 0
    %2562 = vmatprep.subr.bf16.mxu0 0
    %2563 = vmatpush1.bf16.msra.mxu0 0
    %2564 = vmatprep.subr.bf16.mxu0 0
    %2565 = vmatpush1.bf16.msra.mxu0 0
    %2566 = vmatprep.subr.bf16.mxu0 0
    %2567 = vmatpush1.bf16.msra.mxu0 0
    %2568 = vmatprep.subr.bf16.mxu0 0
    %2569 = vmatpush1.bf16.msra.mxu0 0
    %2570 = vmatprep.subr.bf16.mxu0 0
    %2571 = vmatpush1.bf16.msra.mxu0 0
    %2572 = vmatprep.subr.bf16.mxu0 0
    %2573 = vmatpush1.bf16.msra.mxu0 0
    %2574 = vmatprep.mubr.bf16.mxu0 0
    %2575 = vmatmul.mubr.bf16.gmra.mrb[0].mxu0 %v2541
    %v2576 = vpop.f32.mrb[0].mxu0
    %v2577 = vadd.f32 %v644, %v2576
    %v2578 = vpop.f32.mrb[0].mxu0
    %v2579 = vadd.f32 %v648, %v2578
    %v2580 = vpop.f32.mrb[0].mxu0
    %v2581 = vpop.f32.mrb[0].mxu0
    %2582 = vdwg.mxu0
    %2583 = vmatprep.subr.bf16.mxu0 0
    %2584 = vmatpush1.bf16.msra.mxu0 %v775
    %2585 = vmatprep.subr.bf16.mxu0 0
    %2586 = vmatpush1.bf16.msra.mxu0 %v778
    %2587 = vmatprep.subr.bf16.mxu0 0
    %2588 = vmatpush1.bf16.msra.mxu0 %v781
    %2589 = vmatprep.subr.bf16.mxu0 0
    %2590 = vmatpush1.bf16.msra.mxu0 %v784
    %2591 = vmatprep.subr.bf16.mxu0 0
    %2592 = vmatpush1.bf16.msra.mxu0 %v787
    %2593 = vmatprep.subr.bf16.mxu0 0
    %2594 = vmatpush1.bf16.msra.mxu0 %v790
    %2595 = vmatprep.subr.bf16.mxu0 0
    %2596 = vmatpush1.bf16.msra.mxu0 %v793
    %2597 = vmatprep.subr.bf16.mxu0 0
    %2598 = vmatpush1.bf16.msra.mxu0 %v796
    %2599 = vmatprep.subr.bf16.mxu0 0
    %2600 = vmatpush1.bf16.msra.mxu0 0
    %2601 = vmatprep.subr.bf16.mxu0 0
    %2602 = vmatpush1.bf16.msra.mxu0 0
    %2603 = vmatprep.subr.bf16.mxu0 0
    %2604 = vmatpush1.bf16.msra.mxu0 0
    %2605 = vmatprep.subr.bf16.mxu0 0
    %2606 = vmatpush1.bf16.msra.mxu0 0
    %2607 = vmatprep.subr.bf16.mxu0 0
    %2608 = vmatpush1.bf16.msra.mxu0 0
    %2609 = vmatprep.subr.bf16.mxu0 0
    %2610 = vmatpush1.bf16.msra.mxu0 0
    %2611 = vmatprep.subr.bf16.mxu0 0
    %2612 = vmatpush1.bf16.msra.mxu0 0
    %2613 = vmatprep.subr.bf16.mxu0 0
    %2614 = vmatpush1.bf16.msra.mxu0 0
    %2615 = vmatprep.mubr.bf16.mxu0 0
    %2616 = vmatmul.mubr.bf16.gmra.mrb[0].mxu0 %v2541
    %v2617 = vpop.f32.mrb[0].mxu0
    %v2618 = vadd.f32 %v652, %v2617
    %v2619 = vpop.f32.mrb[0].mxu0
    %v2620 = vpop.f32.mrb[0].mxu0
    %v2621 = vpop.f32.mrb[0].mxu0
    %2622 = vdwg.mxu0
    %v2623 = vadd.f32 %v2538, %v2577
    %v2624 = vxor.u32 %v2623, 2147483648
    %v2625 = vmul.f32 %v2624, 1.442695
    %v2626 = vpow.pop %v2625
    %v2627 = vadd.f32 %v2626, 1.0
    %v2628 = vrcp.pop %v2627
    %v2629 = vmul.f32 1.0, %v2628
    %v2630 = vadd.f32 %v2539, %v2579
    %v2631 = vxor.u32 %v2630, 2147483648
    %v2632 = vmul.f32 %v2631, 1.442695
    %v2633 = vpow.pop %v2632
    %v2634 = vadd.f32 %v2633, 1.0
    %v2635 = vrcp.pop %v2634
    %v2636 = vmul.f32 1.0, %v2635
    %v2637 = vmul.f32 %v2629, %v2618
    %v2638 = vadd.f32 %v2540, %v2637
    %v2639 = vtanh.pop %v2638
    %v2640 = vsub.f32 1.0, %v2636
    %v2641 = vmul.f32 %v2640, %v2639
    %v2642 = vmul.f32 %v2636, %v2536
    %v2643 = vadd.f32 %v2641, %v2642
    %v2644 = vmul.f32 %v2643, %v319
    %v2645 = vpack.c.bf16 %v2644, %v2644
    %2646 = vmatprep.subr.bf16.mxu0 %v1006
    %2647 = vmatpush1.bf16.msra.mxu0 %v1005
    %2648 = vmatprep.subr.bf16.mxu0 %v1009
    %2649 = vmatpush1.bf16.msra.mxu0 %v1008
    %2650 = vmatprep.subr.bf16.mxu0 %v1012
    %2651 = vmatpush1.bf16.msra.mxu0 %v1011
    %2652 = vmatprep.subr.bf16.mxu0 %v1015
    %2653 = vmatpush1.bf16.msra.mxu0 %v1014
    %2654 = vmatprep.subr.bf16.mxu0 %v1018
    %2655 = vmatpush1.bf16.msra.mxu0 %v1017
    %2656 = vmatprep.subr.bf16.mxu0 %v1021
    %2657 = vmatpush1.bf16.msra.mxu0 %v1020
    %2658 = vmatprep.subr.bf16.mxu0 %v1024
    %2659 = vmatpush1.bf16.msra.mxu0 %v1023
    %2660 = vmatprep.subr.bf16.mxu0 %v1027
    %2661 = vmatpush1.bf16.msra.mxu0 %v1026
    %2662 = vmatprep.subr.bf16.mxu0 0
    %2663 = vmatpush1.bf16.msra.mxu0 0
    %2664 = vmatprep.subr.bf16.mxu0 0
    %2665 = vmatpush1.bf16.msra.mxu0 0
    %2666 = vmatprep.subr.bf16.mxu0 0
    %2667 = vmatpush1.bf16.msra.mxu0 0
    %2668 = vmatprep.subr.bf16.mxu0 0
    %2669 = vmatpush1.bf16.msra.mxu0 0
    %2670 = vmatprep.subr.bf16.mxu0 0
    %2671 = vmatpush1.bf16.msra.mxu0 0
    %2672 = vmatprep.subr.bf16.mxu0 0
    %2673 = vmatpush1.bf16.msra.mxu0 0
    %2674 = vmatprep.subr.bf16.mxu0 0
    %2675 = vmatpush1.bf16.msra.mxu0 0
    %2676 = vmatprep.subr.bf16.mxu0 0
    %2677 = vmatpush1.bf16.msra.mxu0 0
    %2678 = vmatprep.mubr.bf16.mxu0 0
    %2679 = vmatmul.mubr.bf16.gmra.mrb[0].mxu0 %v2645
    %v2680 = vpop.f32.mrb[0].mxu0
    %v2681 = vadd.f32 %v661, %v2680
    %v2682 = vpop.f32.mrb[0].mxu0
    %v2683 = vadd.f32 %v665, %v2682
    %v2684 = vpop.f32.mrb[0].mxu0
    %v2685 = vpop.f32.mrb[0].mxu0
    %2686 = vdwg.mxu0
    %2687 = vmatprep.subr.bf16.mxu0 0
    %2688 = vmatpush1.bf16.msra.mxu0 %v1007
    %2689 = vmatprep.subr.bf16.mxu0 0
    %2690 = vmatpush1.bf16.msra.mxu0 %v1010
    %2691 = vmatprep.subr.bf16.mxu0 0
    %2692 = vmatpush1.bf16.msra.mxu0 %v1013
    %2693 = vmatprep.subr.bf16.mxu0 0
    %2694 = vmatpush1.bf16.msra.mxu0 %v1016
    %2695 = vmatprep.subr.bf16.mxu0 0
    %2696 = vmatpush1.bf16.msra.mxu0 %v1019
    %2697 = vmatprep.subr.bf16.mxu0 0
    %2698 = vmatpush1.bf16.msra.mxu0 %v1022
    %2699 = vmatprep.subr.bf16.mxu0 0
    %2700 = vmatpush1.bf16.msra.mxu0 %v1025
    %2701 = vmatprep.subr.bf16.mxu0 0
    %2702 = vmatpush1.bf16.msra.mxu0 %v1028
    %2703 = vmatprep.subr.bf16.mxu0 0
    %2704 = vmatpush1.bf16.msra.mxu0 0
    %2705 = vmatprep.subr.bf16.mxu0 0
    %2706 = vmatpush1.bf16.msra.mxu0 0
    %2707 = vmatprep.subr.bf16.mxu0 0
    %2708 = vmatpush1.bf16.msra.mxu0 0
    %2709 = vmatprep.subr.bf16.mxu0 0
    %2710 = vmatpush1.bf16.msra.mxu0 0
    %2711 = vmatprep.subr.bf16.mxu0 0
    %2712 = vmatpush1.bf16.msra.mxu0 0
    %2713 = vmatprep.subr.bf16.mxu0 0
    %2714 = vmatpush1.bf16.msra.mxu0 0
    %2715 = vmatprep.subr.bf16.mxu0 0
    %2716 = vmatpush1.bf16.msra.mxu0 0
    %2717 = vmatprep.subr.bf16.mxu0 0
    %2718 = vmatpush1.bf16.msra.mxu0 0
    %2719 = vmatprep.mubr.bf16.mxu0 0
    %2720 = vmatmul.mubr.bf16.gmra.mrb[0].mxu0 %v2645
    %v2721 = vpop.f32.mrb[0].mxu0
    %v2722 = vadd.f32 %v669, %v2721
    %v2723 = vpop.f32.mrb[0].mxu0
    %v2724 = vpop.f32.mrb[0].mxu0
    %v2725 = vpop.f32.mrb[0].mxu0
    %2726 = vdwg.mxu0
    %v2727 = vpack.c.bf16 %v2643, %v2643
    %2728 = vmatprep.subr.bf16.mxu0 %v1216
    %2729 = vmatpush1.bf16.msra.mxu0 %v1215
    %2730 = vmatprep.subr.bf16.mxu0 %v1219
    %2731 = vmatpush1.bf16.msra.mxu0 %v1218
    %2732 = vmatprep.subr.bf16.mxu0 %v1222
    %2733 = vmatpush1.bf16.msra.mxu0 %v1221
    %2734 = vmatprep.subr.bf16.mxu0 %v1225
    %2735 = vmatpush1.bf16.msra.mxu0 %v1224
    %2736 = vmatprep.subr.bf16.mxu0 %v1228
    %2737 = vmatpush1.bf16.msra.mxu0 %v1227
    %2738 = vmatprep.subr.bf16.mxu0 %v1231
    %2739 = vmatpush1.bf16.msra.mxu0 %v1230
    %2740 = vmatprep.subr.bf16.mxu0 %v1234
    %2741 = vmatpush1.bf16.msra.mxu0 %v1233
    %2742 = vmatprep.subr.bf16.mxu0 %v1237
    %2743 = vmatpush1.bf16.msra.mxu0 %v1236
    %2744 = vmatprep.subr.bf16.mxu0 0
    %2745 = vmatpush1.bf16.msra.mxu0 0
    %2746 = vmatprep.subr.bf16.mxu0 0
    %2747 = vmatpush1.bf16.msra.mxu0 0
    %2748 = vmatprep.subr.bf16.mxu0 0
    %2749 = vmatpush1.bf16.msra.mxu0 0
    %2750 = vmatprep.subr.bf16.mxu0 0
    %2751 = vmatpush1.bf16.msra.mxu0 0
    %2752 = vmatprep.subr.bf16.mxu0 0
    %2753 = vmatpush1.bf16.msra.mxu0 0
    %2754 = vmatprep.subr.bf16.mxu0 0
    %2755 = vmatpush1.bf16.msra.mxu0 0
    %2756 = vmatprep.subr.bf16.mxu0 0
    %2757 = vmatpush1.bf16.msra.mxu0 0
    %2758 = vmatprep.subr.bf16.mxu0 0
    %2759 = vmatpush1.bf16.msra.mxu0 0
    %2760 = vmatprep.mubr.bf16.mxu0 0
    %2761 = vmatmul.mubr.bf16.gmra.mrb[0].mxu0 %v2727
    %v2762 = vpop.f32.mrb[0].mxu0
    %v2763 = vadd.f32 %v678, %v2762
    %v2764 = vpop.f32.mrb[0].mxu0
    %v2765 = vadd.f32 %v682, %v2764
    %v2766 = vpop.f32.mrb[0].mxu0
    %v2767 = vpop.f32.mrb[0].mxu0
    %2768 = vdwg.mxu0
    %2769 = vmatprep.subr.bf16.mxu0 0
    %2770 = vmatpush1.bf16.msra.mxu0 %v1217
    %2771 = vmatprep.subr.bf16.mxu0 0
    %2772 = vmatpush1.bf16.msra.mxu0 %v1220
    %2773 = vmatprep.subr.bf16.mxu0 0
    %2774 = vmatpush1.bf16.msra.mxu0 %v1223
    %2775 = vmatprep.subr.bf16.mxu0 0
    %2776 = vmatpush1.bf16.msra.mxu0 %v1226
    %2777 = vmatprep.subr.bf16.mxu0 0
    %2778 = vmatpush1.bf16.msra.mxu0 %v1229
    %2779 = vmatprep.subr.bf16.mxu0 0
    %2780 = vmatpush1.bf16.msra.mxu0 %v1232
    %2781 = vmatprep.subr.bf16.mxu0 0
    %2782 = vmatpush1.bf16.msra.mxu0 %v1235
    %2783 = vmatprep.subr.bf16.mxu0 0
    %2784 = vmatpush1.bf16.msra.mxu0 %v1238
    %2785 = vmatprep.subr.bf16.mxu0 0
    %2786 = vmatpush1.bf16.msra.mxu0 0
    %2787 = vmatprep.subr.bf16.mxu0 0
    %2788 = vmatpush1.bf16.msra.mxu0 0
    %2789 = vmatprep.subr.bf16.mxu0 0
    %2790 = vmatpush1.bf16.msra.mxu0 0
    %2791 = vmatprep.subr.bf16.mxu0 0
    %2792 = vmatpush1.bf16.msra.mxu0 0
    %2793 = vmatprep.subr.bf16.mxu0 0
    %2794 = vmatpush1.bf16.msra.mxu0 0
    %2795 = vmatprep.subr.bf16.mxu0 0
    %2796 = vmatpush1.bf16.msra.mxu0 0
    %2797 = vmatprep.subr.bf16.mxu0 0
    %2798 = vmatpush1.bf16.msra.mxu0 0
    %2799 = vmatprep.subr.bf16.mxu0 0
    %2800 = vmatpush1.bf16.msra.mxu0 0
    %2801 = vmatprep.mubr.bf16.mxu0 0
    %2802 = vmatmul.mubr.bf16.gmra.mrb[0].mxu0 %v2727
    %v2803 = vpop.f32.mrb[0].mxu0
    %v2804 = vadd.f32 %v686, %v2803
    %v2805 = vpop.f32.mrb[0].mxu0
    %v2806 = vpop.f32.mrb[0].mxu0
    %v2807 = vpop.f32.mrb[0].mxu0
    %2808 = vdwg.mxu0
    %v2809 = vadd.f32 %v2681, %v2763
    %v2810 = vxor.u32 %v2809, 2147483648
    %v2811 = vmul.f32 %v2810, 1.442695
    %v2812 = vpow.pop %v2811
    %v2813 = vadd.f32 %v2812, 1.0
    %v2814 = vrcp.pop %v2813
    %v2815 = vmul.f32 1.0, %v2814
    %v2816 = vadd.f32 %v2683, %v2765
    %v2817 = vxor.u32 %v2816, 2147483648
    %v2818 = vmul.f32 %v2817, 1.442695
    %v2819 = vpow.pop %v2818
    %v2820 = vadd.f32 %v2819, 1.0
    %v2821 = vrcp.pop %v2820
    %v2822 = vmul.f32 1.0, %v2821
    %v2823 = vmul.f32 %v2815, %v2804
    %v2824 = vadd.f32 %v2722, %v2823
    %v2825 = vtanh.pop %v2824
    %v2826 = vsub.f32 1.0, %v2822
    %v2827 = vmul.f32 %v2826, %v2825
    %v2828 = vmul.f32 %v2822, %v2643
    %v2829 = vadd.f32 %v2827, %v2828
    %s2830 = scalar_lea.vmem [#allocation2], 144
    %v2831 = vld [vmem:[%s2830] sm:$0xff]
    %v2832 = vld [vmem:[%s2830 + $0x8] sm:$0xff]
    %v2833 = vld [vmem:[%s2830 + $0x10] sm:$0xff]
    %v2834 = vpack.c.bf16 %v2829, %v2829
    %2835 = vmatprep.subr.bf16.mxu0 %v774
    %2836 = vmatpush1.bf16.msra.mxu0 %v773
    %2837 = vmatprep.subr.bf16.mxu0 %v777
    %2838 = vmatpush1.bf16.msra.mxu0 %v776
    %2839 = vmatprep.subr.bf16.mxu0 %v780
    %2840 = vmatpush1.bf16.msra.mxu0 %v779
    %2841 = vmatprep.subr.bf16.mxu0 %v783
    %2842 = vmatpush1.bf16.msra.mxu0 %v782
    %2843 = vmatprep.subr.bf16.mxu0 %v786
    %2844 = vmatpush1.bf16.msra.mxu0 %v785
    %2845 = vmatprep.subr.bf16.mxu0 %v789
    %2846 = vmatpush1.bf16.msra.mxu0 %v788
    %2847 = vmatprep.subr.bf16.mxu0 %v792
    %2848 = vmatpush1.bf16.msra.mxu0 %v791
    %2849 = vmatprep.subr.bf16.mxu0 %v795
    %2850 = vmatpush1.bf16.msra.mxu0 %v794
    %2851 = vmatprep.subr.bf16.mxu0 0
    %2852 = vmatpush1.bf16.msra.mxu0 0
    %2853 = vmatprep.subr.bf16.mxu0 0
    %2854 = vmatpush1.bf16.msra.mxu0 0
    %2855 = vmatprep.subr.bf16.mxu0 0
    %2856 = vmatpush1.bf16.msra.mxu0 0
    %2857 = vmatprep.subr.bf16.mxu0 0
    %2858 = vmatpush1.bf16.msra.mxu0 0
    %2859 = vmatprep.subr.bf16.mxu0 0
    %2860 = vmatpush1.bf16.msra.mxu0 0
    %2861 = vmatprep.subr.bf16.mxu0 0
    %2862 = vmatpush1.bf16.msra.mxu0 0
    %2863 = vmatprep.subr.bf16.mxu0 0
    %2864 = vmatpush1.bf16.msra.mxu0 0
    %2865 = vmatprep.subr.bf16.mxu0 0
    %2866 = vmatpush1.bf16.msra.mxu0 0
    %2867 = vmatprep.mubr.bf16.mxu0 0
    %2868 = vmatmul.mubr.bf16.gmra.mrb[0].mxu0 %v2834
    %v2869 = vpop.f32.mrb[0].mxu0
    %v2870 = vadd.f32 %v644, %v2869
    %v2871 = vpop.f32.mrb[0].mxu0
    %v2872 = vadd.f32 %v648, %v2871
    %v2873 = vpop.f32.mrb[0].mxu0
    %v2874 = vpop.f32.mrb[0].mxu0
    %2875 = vdwg.mxu0
    %2876 = vmatprep.subr.bf16.mxu0 0
    %2877 = vmatpush1.bf16.msra.mxu0 %v775
    %2878 = vmatprep.subr.bf16.mxu0 0
    %2879 = vmatpush1.bf16.msra.mxu0 %v778
    %2880 = vmatprep.subr.bf16.mxu0 0
    %2881 = vmatpush1.bf16.msra.mxu0 %v781
    %2882 = vmatprep.subr.bf16.mxu0 0
    %2883 = vmatpush1.bf16.msra.mxu0 %v784
    %2884 = vmatprep.subr.bf16.mxu0 0
    %2885 = vmatpush1.bf16.msra.mxu0 %v787
    %2886 = vmatprep.subr.bf16.mxu0 0
    %2887 = vmatpush1.bf16.msra.mxu0 %v790
    %2888 = vmatprep.subr.bf16.mxu0 0
    %2889 = vmatpush1.bf16.msra.mxu0 %v793
    %2890 = vmatprep.subr.bf16.mxu0 0
    %2891 = vmatpush1.bf16.msra.mxu0 %v796
    %2892 = vmatprep.subr.bf16.mxu0 0
    %2893 = vmatpush1.bf16.msra.mxu0 0
    %2894 = vmatprep.subr.bf16.mxu0 0
    %2895 = vmatpush1.bf16.msra.mxu0 0
    %2896 = vmatprep.subr.bf16.mxu0 0
    %2897 = vmatpush1.bf16.msra.mxu0 0
    %2898 = vmatprep.subr.bf16.mxu0 0
    %2899 = vmatpush1.bf16.msra.mxu0 0
    %2900 = vmatprep.subr.bf16.mxu0 0
    %2901 = vmatpush1.bf16.msra.mxu0 0
    %2902 = vmatprep.subr.bf16.mxu0 0
    %2903 = vmatpush1.bf16.msra.mxu0 0
    %2904 = vmatprep.subr.bf16.mxu0 0
    %2905 = vmatpush1.bf16.msra.mxu0 0
    %2906 = vmatprep.subr.bf16.mxu0 0
    %2907 = vmatpush1.bf16.msra.mxu0 0
    %2908 = vmatprep.mubr.bf16.mxu0 0
    %2909 = vmatmul.mubr.bf16.gmra.mrb[0].mxu0 %v2834
    %v2910 = vpop.f32.mrb[0].mxu0
    %v2911 = vadd.f32 %v652, %v2910
    %v2912 = vpop.f32.mrb[0].mxu0
    %v2913 = vpop.f32.mrb[0].mxu0
    %v2914 = vpop.f32.mrb[0].mxu0
    %2915 = vdwg.mxu0
    %v2916 = vadd.f32 %v2831, %v2870
    %v2917 = vxor.u32 %v2916, 2147483648
    %v2918 = vmul.f32 %v2917, 1.442695
    %v2919 = vpow.pop %v2918
    %v2920 = vadd.f32 %v2919, 1.0
    %v2921 = vrcp.pop %v2920
    %v2922 = vmul.f32 1.0, %v2921
    %v2923 = vadd.f32 %v2832, %v2872
    %v2924 = vxor.u32 %v2923, 2147483648
    %v2925 = vmul.f32 %v2924, 1.442695
    %v2926 = vpow.pop %v2925
    %v2927 = vadd.f32 %v2926, 1.0
    %v2928 = vrcp.pop %v2927
    %v2929 = vmul.f32 1.0, %v2928
    %v2930 = vmul.f32 %v2922, %v2911
    %v2931 = vadd.f32 %v2833, %v2930
    %v2932 = vtanh.pop %v2931
    %v2933 = vsub.f32 1.0, %v2929
    %v2934 = vmul.f32 %v2933, %v2932
    %v2935 = vmul.f32 %v2929, %v2829
    %v2936 = vadd.f32 %v2934, %v2935
    %v2937 = vmul.f32 %v2936, %v319
    %v2938 = vpack.c.bf16 %v2937, %v2937
    %2939 = vmatprep.subr.bf16.mxu0 %v1006
    %2940 = vmatpush1.bf16.msra.mxu0 %v1005
    %2941 = vmatprep.subr.bf16.mxu0 %v1009
    %2942 = vmatpush1.bf16.msra.mxu0 %v1008
    %2943 = vmatprep.subr.bf16.mxu0 %v1012
    %2944 = vmatpush1.bf16.msra.mxu0 %v1011
    %2945 = vmatprep.subr.bf16.mxu0 %v1015
    %2946 = vmatpush1.bf16.msra.mxu0 %v1014
    %2947 = vmatprep.subr.bf16.mxu0 %v1018
    %2948 = vmatpush1.bf16.msra.mxu0 %v1017
    %2949 = vmatprep.subr.bf16.mxu0 %v1021
    %2950 = vmatpush1.bf16.msra.mxu0 %v1020
    %2951 = vmatprep.subr.bf16.mxu0 %v1024
    %2952 = vmatpush1.bf16.msra.mxu0 %v1023
    %2953 = vmatprep.subr.bf16.mxu0 %v1027
    %2954 = vmatpush1.bf16.msra.mxu0 %v1026
    %2955 = vmatprep.subr.bf16.mxu0 0
    %2956 = vmatpush1.bf16.msra.mxu0 0
    %2957 = vmatprep.subr.bf16.mxu0 0
    %2958 = vmatpush1.bf16.msra.mxu0 0
    %2959 = vmatprep.subr.bf16.mxu0 0
    %2960 = vmatpush1.bf16.msra.mxu0 0
    %2961 = vmatprep.subr.bf16.mxu0 0
    %2962 = vmatpush1.bf16.msra.mxu0 0
    %2963 = vmatprep.subr.bf16.mxu0 0
    %2964 = vmatpush1.bf16.msra.mxu0 0
    %2965 = vmatprep.subr.bf16.mxu0 0
    %2966 = vmatpush1.bf16.msra.mxu0 0
    %2967 = vmatprep.subr.bf16.mxu0 0
    %2968 = vmatpush1.bf16.msra.mxu0 0
    %2969 = vmatprep.subr.bf16.mxu0 0
    %2970 = vmatpush1.bf16.msra.mxu0 0
    %2971 = vmatprep.mubr.bf16.mxu0 0
    %2972 = vmatmul.mubr.bf16.gmra.mrb[0].mxu0 %v2938
    %v2973 = vpop.f32.mrb[0].mxu0
    %v2974 = vadd.f32 %v661, %v2973
    %v2975 = vpop.f32.mrb[0].mxu0
    %v2976 = vadd.f32 %v665, %v2975
    %v2977 = vpop.f32.mrb[0].mxu0
    %v2978 = vpop.f32.mrb[0].mxu0
    %2979 = vdwg.mxu0
    %2980 = vmatprep.subr.bf16.mxu0 0
    %2981 = vmatpush1.bf16.msra.mxu0 %v1007
    %2982 = vmatprep.subr.bf16.mxu0 0
    %2983 = vmatpush1.bf16.msra.mxu0 %v1010
    %2984 = vmatprep.subr.bf16.mxu0 0
    %2985 = vmatpush1.bf16.msra.mxu0 %v1013
    %2986 = vmatprep.subr.bf16.mxu0 0
    %2987 = vmatpush1.bf16.msra.mxu0 %v1016
    %2988 = vmatprep.subr.bf16.mxu0 0
    %2989 = vmatpush1.bf16.msra.mxu0 %v1019
    %2990 = vmatprep.subr.bf16.mxu0 0
    %2991 = vmatpush1.bf16.msra.mxu0 %v1022
    %2992 = vmatprep.subr.bf16.mxu0 0
    %2993 = vmatpush1.bf16.msra.mxu0 %v1025
    %2994 = vmatprep.subr.bf16.mxu0 0
    %2995 = vmatpush1.bf16.msra.mxu0 %v1028
    %2996 = vmatprep.subr.bf16.mxu0 0
    %2997 = vmatpush1.bf16.msra.mxu0 0
    %2998 = vmatprep.subr.bf16.mxu0 0
    %2999 = vmatpush1.bf16.msra.mxu0 0
    %3000 = vmatprep.subr.bf16.mxu0 0
    %3001 = vmatpush1.bf16.msra.mxu0 0
    %3002 = vmatprep.subr.bf16.mxu0 0
    %3003 = vmatpush1.bf16.msra.mxu0 0
    %3004 = vmatprep.subr.bf16.mxu0 0
    %3005 = vmatpush1.bf16.msra.mxu0 0
    %3006 = vmatprep.subr.bf16.mxu0 0
    %3007 = vmatpush1.bf16.msra.mxu0 0
    %3008 = vmatprep.subr.bf16.mxu0 0
    %3009 = vmatpush1.bf16.msra.mxu0 0
    %3010 = vmatprep.subr.bf16.mxu0 0
    %3011 = vmatpush1.bf16.msra.mxu0 0
    %3012 = vmatprep.mubr.bf16.mxu0 0
    %3013 = vmatmul.mubr.bf16.gmra.mrb[0].mxu0 %v2938
    %v3014 = vpop.f32.mrb[0].mxu0
    %v3015 = vadd.f32 %v669, %v3014
    %v3016 = vpop.f32.mrb[0].mxu0
    %v3017 = vpop.f32.mrb[0].mxu0
    %v3018 = vpop.f32.mrb[0].mxu0
    %3019 = vdwg.mxu0
    %v3020 = vpack.c.bf16 %v2936, %v2936
    %3021 = vmatprep.subr.bf16.mxu0 %v1216
    %3022 = vmatpush1.bf16.msra.mxu0 %v1215
    %3023 = vmatprep.subr.bf16.mxu0 %v1219
    %3024 = vmatpush1.bf16.msra.mxu0 %v1218
    %3025 = vmatprep.subr.bf16.mxu0 %v1222
    %3026 = vmatpush1.bf16.msra.mxu0 %v1221
    %3027 = vmatprep.subr.bf16.mxu0 %v1225
    %3028 = vmatpush1.bf16.msra.mxu0 %v1224
    %3029 = vmatprep.subr.bf16.mxu0 %v1228
    %3030 = vmatpush1.bf16.msra.mxu0 %v1227
    %3031 = vmatprep.subr.bf16.mxu0 %v1231
    %3032 = vmatpush1.bf16.msra.mxu0 %v1230
    %3033 = vmatprep.subr.bf16.mxu0 %v1234
    %3034 = vmatpush1.bf16.msra.mxu0 %v1233
    %3035 = vmatprep.subr.bf16.mxu0 %v1237
    %3036 = vmatpush1.bf16.msra.mxu0 %v1236
    %3037 = vmatprep.subr.bf16.mxu0 0
    %3038 = vmatpush1.bf16.msra.mxu0 0
    %3039 = vmatprep.subr.bf16.mxu0 0
    %3040 = vmatpush1.bf16.msra.mxu0 0
    %3041 = vmatprep.subr.bf16.mxu0 0
    %3042 = vmatpush1.bf16.msra.mxu0 0
    %3043 = vmatprep.subr.bf16.mxu0 0
    %3044 = vmatpush1.bf16.msra.mxu0 0
    %3045 = vmatprep.subr.bf16.mxu0 0
    %3046 = vmatpush1.bf16.msra.mxu0 0
    %3047 = vmatprep.subr.bf16.mxu0 0
    %3048 = vmatpush1.bf16.msra.mxu0 0
    %3049 = vmatprep.subr.bf16.mxu0 0
    %3050 = vmatpush1.bf16.msra.mxu0 0
    %3051 = vmatprep.subr.bf16.mxu0 0
    %3052 = vmatpush1.bf16.msra.mxu0 0
    %3053 = vmatprep.mubr.bf16.mxu0 0
    %3054 = vmatmul.mubr.bf16.gmra.mrb[0].mxu0 %v3020
    %v3055 = vpop.f32.mrb[0].mxu0
    %v3056 = vadd.f32 %v678, %v3055
    %v3057 = vpop.f32.mrb[0].mxu0
    %v3058 = vadd.f32 %v682, %v3057
    %v3059 = vpop.f32.mrb[0].mxu0
    %v3060 = vpop.f32.mrb[0].mxu0
    %3061 = vdwg.mxu0
    %3062 = vmatprep.subr.bf16.mxu0 0
    %3063 = vmatpush1.bf16.msra.mxu0 %v1217
    %3064 = vmatprep.subr.bf16.mxu0 0
    %3065 = vmatpush1.bf16.msra.mxu0 %v1220
    %3066 = vmatprep.subr.bf16.mxu0 0
    %3067 = vmatpush1.bf16.msra.mxu0 %v1223
    %3068 = vmatprep.subr.bf16.mxu0 0
    %3069 = vmatpush1.bf16.msra.mxu0 %v1226
    %3070 = vmatprep.subr.bf16.mxu0 0
    %3071 = vmatpush1.bf16.msra.mxu0 %v1229
    %3072 = vmatprep.subr.bf16.mxu0 0
    %3073 = vmatpush1.bf16.msra.mxu0 %v1232
    %3074 = vmatprep.subr.bf16.mxu0 0
    %3075 = vmatpush1.bf16.msra.mxu0 %v1235
    %3076 = vmatprep.subr.bf16.mxu0 0
    %3077 = vmatpush1.bf16.msra.mxu0 %v1238
    %3078 = vmatprep.subr.bf16.mxu0 0
    %3079 = vmatpush1.bf16.msra.mxu0 0
    %3080 = vmatprep.subr.bf16.mxu0 0
    %3081 = vmatpush1.bf16.msra.mxu0 0
    %3082 = vmatprep.subr.bf16.mxu0 0
    %3083 = vmatpush1.bf16.msra.mxu0 0
    %3084 = vmatprep.subr.bf16.mxu0 0
    %3085 = vmatpush1.bf16.msra.mxu0 0
    %3086 = vmatprep.subr.bf16.mxu0 0
    %3087 = vmatpush1.bf16.msra.mxu0 0
    %3088 = vmatprep.subr.bf16.mxu0 0
    %3089 = vmatpush1.bf16.msra.mxu0 0
    %3090 = vmatprep.subr.bf16.mxu0 0
    %3091 = vmatpush1.bf16.msra.mxu0 0
    %3092 = vmatprep.subr.bf16.mxu0 0
    %3093 = vmatpush1.bf16.msra.mxu0 0
    %3094 = vmatprep.mubr.bf16.mxu0 0
    %3095 = vmatmul.mubr.bf16.gmra.mrb[0].mxu0 %v3020
    %v3096 = vpop.f32.mrb[0].mxu0
    %v3097 = vadd.f32 %v686, %v3096
    %v3098 = vpop.f32.mrb[0].mxu0
    %v3099 = vpop.f32.mrb[0].mxu0
    %v3100 = vpop.f32.mrb[0].mxu0
    %3101 = vdwg.mxu0
    %v3102 = vadd.f32 %v2974, %v3056
    %v3103 = vxor.u32 %v3102, 2147483648
    %v3104 = vmul.f32 %v3103, 1.442695
    %v3105 = vpow.pop %v3104
    %v3106 = vadd.f32 %v3105, 1.0
    %v3107 = vrcp.pop %v3106
    %v3108 = vmul.f32 1.0, %v3107
    %v3109 = vadd.f32 %v2976, %v3058
    %v3110 = vxor.u32 %v3109, 2147483648
    %v3111 = vmul.f32 %v3110, 1.442695
    %v3112 = vpow.pop %v3111
    %v3113 = vadd.f32 %v3112, 1.0
    %v3114 = vrcp.pop %v3113
    %v3115 = vmul.f32 1.0, %v3114
    %v3116 = vmul.f32 %v3108, %v3097
    %v3117 = vadd.f32 %v3015, %v3116
    %v3118 = vtanh.pop %v3117
    %v3119 = vsub.f32 1.0, %v3115
    %v3120 = vmul.f32 %v3119, %v3118
    %v3121 = vmul.f32 %v3115, %v2936
    %v3122 = vadd.f32 %v3120, %v3121
    %s3123 = scalar_lea.vmem [#allocation2], 168
    %v3124 = vld [vmem:[%s3123] sm:$0xff]
    %v3125 = vld [vmem:[%s3123 + $0x8] sm:$0xff]
    %v3126 = vld [vmem:[%s3123 + $0x10] sm:$0xff]
    %v3127 = vpack.c.bf16 %v3122, %v3122
    %3128 = vmatprep.subr.bf16.mxu0 %v774
    %3129 = vmatpush1.bf16.msra.mxu0 %v773
    %3130 = vmatprep.subr.bf16.mxu0 %v777
    %3131 = vmatpush1.bf16.msra.mxu0 %v776
    %3132 = vmatprep.subr.bf16.mxu0 %v780
    %3133 = vmatpush1.bf16.msra.mxu0 %v779
    %3134 = vmatprep.subr.bf16.mxu0 %v783
    %3135 = vmatpush1.bf16.msra.mxu0 %v782
    %3136 = vmatprep.subr.bf16.mxu0 %v786
    %3137 = vmatpush1.bf16.msra.mxu0 %v785
    %3138 = vmatprep.subr.bf16.mxu0 %v789
    %3139 = vmatpush1.bf16.msra.mxu0 %v788
    %3140 = vmatprep.subr.bf16.mxu0 %v792
    %3141 = vmatpush1.bf16.msra.mxu0 %v791
    %3142 = vmatprep.subr.bf16.mxu0 %v795
    %3143 = vmatpush1.bf16.msra.mxu0 %v794
    %3144 = vmatprep.subr.bf16.mxu0 0
    %3145 = vmatpush1.bf16.msra.mxu0 0
    %3146 = vmatprep.subr.bf16.mxu0 0
    %3147 = vmatpush1.bf16.msra.mxu0 0
    %3148 = vmatprep.subr.bf16.mxu0 0
    %3149 = vmatpush1.bf16.msra.mxu0 0
    %3150 = vmatprep.subr.bf16.mxu0 0
    %3151 = vmatpush1.bf16.msra.mxu0 0
    %3152 = vmatprep.subr.bf16.mxu0 0
    %3153 = vmatpush1.bf16.msra.mxu0 0
    %3154 = vmatprep.subr.bf16.mxu0 0
    %3155 = vmatpush1.bf16.msra.mxu0 0
    %3156 = vmatprep.subr.bf16.mxu0 0
    %3157 = vmatpush1.bf16.msra.mxu0 0
    %3158 = vmatprep.subr.bf16.mxu0 0
    %3159 = vmatpush1.bf16.msra.mxu0 0
    %3160 = vmatprep.mubr.bf16.mxu0 0
    %3161 = vmatmul.mubr.bf16.gmra.mrb[0].mxu0 %v3127
    %v3162 = vpop.f32.mrb[0].mxu0
    %v3163 = vadd.f32 %v644, %v3162
    %v3164 = vpop.f32.mrb[0].mxu0
    %v3165 = vadd.f32 %v648, %v3164
    %v3166 = vpop.f32.mrb[0].mxu0
    %v3167 = vpop.f32.mrb[0].mxu0
    %3168 = vdwg.mxu0
    %3169 = vmatprep.subr.bf16.mxu0 0
    %3170 = vmatpush1.bf16.msra.mxu0 %v775
    %3171 = vmatprep.subr.bf16.mxu0 0
    %3172 = vmatpush1.bf16.msra.mxu0 %v778
    %3173 = vmatprep.subr.bf16.mxu0 0
    %3174 = vmatpush1.bf16.msra.mxu0 %v781
    %3175 = vmatprep.subr.bf16.mxu0 0
    %3176 = vmatpush1.bf16.msra.mxu0 %v784
    %3177 = vmatprep.subr.bf16.mxu0 0
    %3178 = vmatpush1.bf16.msra.mxu0 %v787
    %3179 = vmatprep.subr.bf16.mxu0 0
    %3180 = vmatpush1.bf16.msra.mxu0 %v790
    %3181 = vmatprep.subr.bf16.mxu0 0
    %3182 = vmatpush1.bf16.msra.mxu0 %v793
    %3183 = vmatprep.subr.bf16.mxu0 0
    %3184 = vmatpush1.bf16.msra.mxu0 %v796
    %3185 = vmatprep.subr.bf16.mxu0 0
    %3186 = vmatpush1.bf16.msra.mxu0 0
    %3187 = vmatprep.subr.bf16.mxu0 0
    %3188 = vmatpush1.bf16.msra.mxu0 0
    %3189 = vmatprep.subr.bf16.mxu0 0
    %3190 = vmatpush1.bf16.msra.mxu0 0
    %3191 = vmatprep.subr.bf16.mxu0 0
    %3192 = vmatpush1.bf16.msra.mxu0 0
    %3193 = vmatprep.subr.bf16.mxu0 0
    %3194 = vmatpush1.bf16.msra.mxu0 0
    %3195 = vmatprep.subr.bf16.mxu0 0
    %3196 = vmatpush1.bf16.msra.mxu0 0
    %3197 = vmatprep.subr.bf16.mxu0 0
    %3198 = vmatpush1.bf16.msra.mxu0 0
    %3199 = vmatprep.subr.bf16.mxu0 0
    %3200 = vmatpush1.bf16.msra.mxu0 0
    %3201 = vmatprep.mubr.bf16.mxu0 0
    %3202 = vmatmul.mubr.bf16.gmra.mrb[0].mxu0 %v3127
    %v3203 = vpop.f32.mrb[0].mxu0
    %v3204 = vadd.f32 %v652, %v3203
    %v3205 = vpop.f32.mrb[0].mxu0
    %v3206 = vpop.f32.mrb[0].mxu0
    %v3207 = vpop.f32.mrb[0].mxu0
    %3208 = vdwg.mxu0
    %v3209 = vadd.f32 %v3124, %v3163
    %v3210 = vxor.u32 %v3209, 2147483648
    %v3211 = vmul.f32 %v3210, 1.442695
    %v3212 = vpow.pop %v3211
    %v3213 = vadd.f32 %v3212, 1.0
    %v3214 = vrcp.pop %v3213
    %v3215 = vmul.f32 1.0, %v3214
    %v3216 = vadd.f32 %v3125, %v3165
    %v3217 = vxor.u32 %v3216, 2147483648
    %v3218 = vmul.f32 %v3217, 1.442695
    %v3219 = vpow.pop %v3218
    %v3220 = vadd.f32 %v3219, 1.0
    %v3221 = vrcp.pop %v3220
    %v3222 = vmul.f32 1.0, %v3221
    %v3223 = vmul.f32 %v3215, %v3204
    %v3224 = vadd.f32 %v3126, %v3223
    %v3225 = vtanh.pop %v3224
    %v3226 = vsub.f32 1.0, %v3222
    %v3227 = vmul.f32 %v3226, %v3225
    %v3228 = vmul.f32 %v3222, %v3122
    %v3229 = vadd.f32 %v3227, %v3228
    %v3230 = vmul.f32 %v3229, %v319
    %v3231 = vpack.c.bf16 %v3230, %v3230
    %3232 = vmatprep.subr.bf16.mxu0 %v1006
    %3233 = vmatpush1.bf16.msra.mxu0 %v1005
    %3234 = vmatprep.subr.bf16.mxu0 %v1009
    %3235 = vmatpush1.bf16.msra.mxu0 %v1008
    %3236 = vmatprep.subr.bf16.mxu0 %v1012
    %3237 = vmatpush1.bf16.msra.mxu0 %v1011
    %3238 = vmatprep.subr.bf16.mxu0 %v1015
    %3239 = vmatpush1.bf16.msra.mxu0 %v1014
    %3240 = vmatprep.subr.bf16.mxu0 %v1018
    %3241 = vmatpush1.bf16.msra.mxu0 %v1017
    %3242 = vmatprep.subr.bf16.mxu0 %v1021
    %3243 = vmatpush1.bf16.msra.mxu0 %v1020
    %3244 = vmatprep.subr.bf16.mxu0 %v1024
    %3245 = vmatpush1.bf16.msra.mxu0 %v1023
    %3246 = vmatprep.subr.bf16.mxu0 %v1027
    %3247 = vmatpush1.bf16.msra.mxu0 %v1026
    %3248 = vmatprep.subr.bf16.mxu0 0
    %3249 = vmatpush1.bf16.msra.mxu0 0
    %3250 = vmatprep.subr.bf16.mxu0 0
    %3251 = vmatpush1.bf16.msra.mxu0 0
    %3252 = vmatprep.subr.bf16.mxu0 0
    %3253 = vmatpush1.bf16.msra.mxu0 0
    %3254 = vmatprep.subr.bf16.mxu0 0
    %3255 = vmatpush1.bf16.msra.mxu0 0
    %3256 = vmatprep.subr.bf16.mxu0 0
    %3257 = vmatpush1.bf16.msra.mxu0 0
    %3258 = vmatprep.subr.bf16.mxu0 0
    %3259 = vmatpush1.bf16.msra.mxu0 0
    %3260 = vmatprep.subr.bf16.mxu0 0
    %3261 = vmatpush1.bf16.msra.mxu0 0
    %3262 = vmatprep.subr.bf16.mxu0 0
    %3263 = vmatpush1.bf16.msra.mxu0 0
    %3264 = vmatprep.mubr.bf16.mxu0 0
    %3265 = vmatmul.mubr.bf16.gmra.mrb[0].mxu0 %v3231
    %v3266 = vpop.f32.mrb[0].mxu0
    %v3267 = vadd.f32 %v661, %v3266
    %v3268 = vpop.f32.mrb[0].mxu0
    %v3269 = vadd.f32 %v665, %v3268
    %v3270 = vpop.f32.mrb[0].mxu0
    %v3271 = vpop.f32.mrb[0].mxu0
    %3272 = vdwg.mxu0
    %3273 = vmatprep.subr.bf16.mxu0 0
    %3274 = vmatpush1.bf16.msra.mxu0 %v1007
    %3275 = vmatprep.subr.bf16.mxu0 0
    %3276 = vmatpush1.bf16.msra.mxu0 %v1010
    %3277 = vmatprep.subr.bf16.mxu0 0
    %3278 = vmatpush1.bf16.msra.mxu0 %v1013
    %3279 = vmatprep.subr.bf16.mxu0 0
    %3280 = vmatpush1.bf16.msra.mxu0 %v1016
    %3281 = vmatprep.subr.bf16.mxu0 0
    %3282 = vmatpush1.bf16.msra.mxu0 %v1019
    %3283 = vmatprep.subr.bf16.mxu0 0
    %3284 = vmatpush1.bf16.msra.mxu0 %v1022
    %3285 = vmatprep.subr.bf16.mxu0 0
    %3286 = vmatpush1.bf16.msra.mxu0 %v1025
    %3287 = vmatprep.subr.bf16.mxu0 0
    %3288 = vmatpush1.bf16.msra.mxu0 %v1028
    %3289 = vmatprep.subr.bf16.mxu0 0
    %3290 = vmatpush1.bf16.msra.mxu0 0
    %3291 = vmatprep.subr.bf16.mxu0 0
    %3292 = vmatpush1.bf16.msra.mxu0 0
    %3293 = vmatprep.subr.bf16.mxu0 0
    %3294 = vmatpush1.bf16.msra.mxu0 0
    %3295 = vmatprep.subr.bf16.mxu0 0
    %3296 = vmatpush1.bf16.msra.mxu0 0
    %3297 = vmatprep.subr.bf16.mxu0 0
    %3298 = vmatpush1.bf16.msra.mxu0 0
    %3299 = vmatprep.subr.bf16.mxu0 0
    %3300 = vmatpush1.bf16.msra.mxu0 0
    %3301 = vmatprep.subr.bf16.mxu0 0
    %3302 = vmatpush1.bf16.msra.mxu0 0
    %3303 = vmatprep.subr.bf16.mxu0 0
    %3304 = vmatpush1.bf16.msra.mxu0 0
    %3305 = vmatprep.mubr.bf16.mxu0 0
    %3306 = vmatmul.mubr.bf16.gmra.mrb[0].mxu0 %v3231
    %v3307 = vpop.f32.mrb[0].mxu0
    %v3308 = vadd.f32 %v669, %v3307
    %v3309 = vpop.f32.mrb[0].mxu0
    %v3310 = vpop.f32.mrb[0].mxu0
    %v3311 = vpop.f32.mrb[0].mxu0
    %3312 = vdwg.mxu0
    %v3313 = vpack.c.bf16 %v3229, %v3229
    %3314 = vmatprep.subr.bf16.mxu0 %v1216
    %3315 = vmatpush1.bf16.msra.mxu0 %v1215
    %3316 = vmatprep.subr.bf16.mxu0 %v1219
    %3317 = vmatpush1.bf16.msra.mxu0 %v1218
    %3318 = vmatprep.subr.bf16.mxu0 %v1222
    %3319 = vmatpush1.bf16.msra.mxu0 %v1221
    %3320 = vmatprep.subr.bf16.mxu0 %v1225
    %3321 = vmatpush1.bf16.msra.mxu0 %v1224
    %3322 = vmatprep.subr.bf16.mxu0 %v1228
    %3323 = vmatpush1.bf16.msra.mxu0 %v1227
    %3324 = vmatprep.subr.bf16.mxu0 %v1231
    %3325 = vmatpush1.bf16.msra.mxu0 %v1230
    %3326 = vmatprep.subr.bf16.mxu0 %v1234
    %3327 = vmatpush1.bf16.msra.mxu0 %v1233
    %3328 = vmatprep.subr.bf16.mxu0 %v1237
    %3329 = vmatpush1.bf16.msra.mxu0 %v1236
    %3330 = vmatprep.subr.bf16.mxu0 0
    %3331 = vmatpush1.bf16.msra.mxu0 0
    %3332 = vmatprep.subr.bf16.mxu0 0
    %3333 = vmatpush1.bf16.msra.mxu0 0
    %3334 = vmatprep.subr.bf16.mxu0 0
    %3335 = vmatpush1.bf16.msra.mxu0 0
    %3336 = vmatprep.subr.bf16.mxu0 0
    %3337 = vmatpush1.bf16.msra.mxu0 0
    %3338 = vmatprep.subr.bf16.mxu0 0
    %3339 = vmatpush1.bf16.msra.mxu0 0
    %3340 = vmatprep.subr.bf16.mxu0 0
    %3341 = vmatpush1.bf16.msra.mxu0 0
    %3342 = vmatprep.subr.bf16.mxu0 0
    %3343 = vmatpush1.bf16.msra.mxu0 0
    %3344 = vmatprep.subr.bf16.mxu0 0
    %3345 = vmatpush1.bf16.msra.mxu0 0
    %3346 = vmatprep.mubr.bf16.mxu0 0
    %3347 = vmatmul.mubr.bf16.gmra.mrb[0].mxu0 %v3313
    %v3348 = vpop.f32.mrb[0].mxu0
    %v3349 = vadd.f32 %v678, %v3348
    %v3350 = vpop.f32.mrb[0].mxu0
    %v3351 = vadd.f32 %v682, %v3350
    %v3352 = vpop.f32.mrb[0].mxu0
    %v3353 = vpop.f32.mrb[0].mxu0
    %3354 = vdwg.mxu0
    %3355 = vmatprep.subr.bf16.mxu0 0
    %3356 = vmatpush1.bf16.msra.mxu0 %v1217
    %3357 = vmatprep.subr.bf16.mxu0 0
    %3358 = vmatpush1.bf16.msra.mxu0 %v1220
    %3359 = vmatprep.subr.bf16.mxu0 0
    %3360 = vmatpush1.bf16.msra.mxu0 %v1223
    %3361 = vmatprep.subr.bf16.mxu0 0
    %3362 = vmatpush1.bf16.msra.mxu0 %v1226
    %3363 = vmatprep.subr.bf16.mxu0 0
    %3364 = vmatpush1.bf16.msra.mxu0 %v1229
    %3365 = vmatprep.subr.bf16.mxu0 0
    %3366 = vmatpush1.bf16.msra.mxu0 %v1232
    %3367 = vmatprep.subr.bf16.mxu0 0
    %3368 = vmatpush1.bf16.msra.mxu0 %v1235
    %3369 = vmatprep.subr.bf16.mxu0 0
    %3370 = vmatpush1.bf16.msra.mxu0 %v1238
    %3371 = vmatprep.subr.bf16.mxu0 0
    %3372 = vmatpush1.bf16.msra.mxu0 0
    %3373 = vmatprep.subr.bf16.mxu0 0
    %3374 = vmatpush1.bf16.msra.mxu0 0
    %3375 = vmatprep.subr.bf16.mxu0 0
    %3376 = vmatpush1.bf16.msra.mxu0 0
    %3377 = vmatprep.subr.bf16.mxu0 0
    %3378 = vmatpush1.bf16.msra.mxu0 0
    %3379 = vmatprep.subr.bf16.mxu0 0
    %3380 = vmatpush1.bf16.msra.mxu0 0
    %3381 = vmatprep.subr.bf16.mxu0 0
    %3382 = vmatpush1.bf16.msra.mxu0 0
    %3383 = vmatprep.subr.bf16.mxu0 0
    %3384 = vmatpush1.bf16.msra.mxu0 0
    %3385 = vmatprep.subr.bf16.mxu0 0
    %3386 = vmatpush1.bf16.msra.mxu0 0
    %3387 = vmatprep.mubr.bf16.mxu0 0
    %3388 = vmatmul.mubr.bf16.gmra.mrb[0].mxu0 %v3313
    %v3389 = vpop.f32.mrb[0].mxu0
    %v3390 = vadd.f32 %v686, %v3389
    %v3391 = vpop.f32.mrb[0].mxu0
    %v3392 = vpop.f32.mrb[0].mxu0
    %v3393 = vpop.f32.mrb[0].mxu0
    %3394 = vdwg.mxu0
    %v3395 = vadd.f32 %v3267, %v3349
    %v3396 = vxor.u32 %v3395, 2147483648
    %v3397 = vmul.f32 %v3396, 1.442695
    %v3398 = vpow.pop %v3397
    %v3399 = vadd.f32 %v3398, 1.0
    %v3400 = vrcp.pop %v3399
    %v3401 = vmul.f32 1.0, %v3400
    %v3402 = vadd.f32 %v3269, %v3351
    %v3403 = vxor.u32 %v3402, 2147483648
    %v3404 = vmul.f32 %v3403, 1.442695
    %v3405 = vpow.pop %v3404
    %v3406 = vadd.f32 %v3405, 1.0
    %v3407 = vrcp.pop %v3406
    %v3408 = vmul.f32 1.0, %v3407
    %v3409 = vmul.f32 %v3401, %v3390
    %v3410 = vadd.f32 %v3308, %v3409
    %v3411 = vtanh.pop %v3410
    %v3412 = vsub.f32 1.0, %v3408
    %v3413 = vmul.f32 %v3412, %v3411
    %v3414 = vmul.f32 %v3408, %v3229
    %v3415 = vadd.f32 %v3413, %v3414
    %v3416 = vld [vmem:[%s12] sm:$0x1]
    %v3418 = vlaneseq
    %v3419 = vshrl.u32 %v3418, 7
    %v3420 = vsub.s32 0, %v3419
    %v3421 = vrot.slane %v3416, %v3420
    %v3423 = vmul.f32 %v3415, %v3421
    %3424 = vadd.xlane.f32.xlu0 %v3423
    %v3425 = vpop.xlane.xlu0 %3424
    %v3426 = vld [vmem:[#allocation3] sm:$0x1]
    %v3428 = vlaneseq
    %v3429 = vshrl.u32 %v3428, 7
    %v3430 = vsub.s32 0, %v3429
    %v3431 = vrot.slane %v3426, %v3430
    %v3433 = vadd.f32 %v3425, %v3431
    %v3434 = vxor.u32 %v3433, 2147483648
    %v3435 = vmul.f32 %v3434, 1.442695
    %v3436 = vpow.pop %v3435
    %v3437 = vadd.f32 %v3436, 1.0
    %v3438 = vrcp.pop %v3437
    %v3439 = vmul.f32 1.0, %v3438
    %vm3440 = vcmask 7168
    %3441 = vst.msk [vmem:[%s14] sm:$0xff] %vm3440, %v3439
    // Predicated region
    $region82: #{tpu_custom_call.1} parent=1 // pred_check
      _
    $region83: #{tpu_custom_call.1} parent=1 // pred_check_branch
      %3443 = sbr.rel (0) target = $region85
    $region84: #{tpu_custom_call.1} parent=1 // pred_region
      _
    $region85: #{tpu_custom_call.1} parent=1 // pred_fallthru
      _
    // Predicated region
    $region86: #{tpu_custom_call.1} parent=1 // pred_check
      _
    $region87: #{tpu_custom_call.1} parent=1 // pred_check_branch
      %3445 = sbr.rel (0) target = $region89
    $region88: #{tpu_custom_call.1} parent=1 // pred_region
      _
    $region89: #{tpu_custom_call.1} parent=1 // pred_fallthru
      _
    %3446 = vsyncpa [#allocation5], 1
    %3447 = vsyncpa [#allocation7], 1
    %3448 = vsyncpa [#allocation10], 1
    %3449 = vsyncpa [#allocation13], 1

</llo_original>
